<compile_context>
chip_gen: v5e
topology: v5e:2x2
jax: 0.10.0
libtpu: 0.0.40
codegen_flags: <defaults>
</compile_context>

<pallas_src>
import functools

import jax
import jax.numpy as jnp
from jax.experimental import pallas as pl
from jax.experimental.pallas import tpu as pltpu

EPS = 1e-5          # nn.BatchNorm3d default eps
NEG_SLOPE = 0.2     # nn.LeakyReLU(0.2)


# ---------------- Pallas kernels ----------------

def conv_bn_stats_kernel(k, Wp, *refs):
    """One (n, d_out) grid step: full k^3-tap conv for one output depth plane,
    plus fused per-(n, d) BatchNorm partial statistics.

    refs = (x_d0 .. x_d{k-1}, w, mask, y, psum, psumsq)
      x_dkd : (1, 1, Rp, C_in) bf16   padded input plane at depth d + kd
      w     : (k, k*k, C_in, C_out) bf16   whole weight, VMEM-resident
      mask  : (R, 1) f32   1.0 on valid raster rows, 0.0 on the W overhang
      y     : (1, 1, R, C_out) f32   conv output over the (Ho, Wp) raster
      psum, psumsq : (1, 1, 1, C_out) f32   per-(n, d) partial BN stats
    """
    x_refs = refs[:k]
    w_ref, mask_ref = refs[k], refs[k + 1]
    y_ref, psum_ref, psumsq_ref = refs[k + 2], refs[k + 3], refs[k + 4]
    R = y_ref.shape[2]

    acc = None
    for kd in range(k):
        for j in range(k * k):
            kh, kw = divmod(j, k)
            off = kh * Wp + kw
            lhs = x_refs[kd][0, 0, off:off + R, :]            # (R, C_in) bf16
            part = jnp.dot(lhs, w_ref[kd, j],
                           preferred_element_type=jnp.float32)  # (R, C_out) f32
            acc = part if acc is None else acc + part

    y_ref[0, 0] = acc
    ym = acc * mask_ref[...]            # exclude W-overhang rows from the stats
    psum_ref[0, 0] = jnp.sum(ym, axis=0, keepdims=True)
    psumsq_ref[0, 0] = jnp.sum(ym * acc, axis=0, keepdims=True)


def bn_lrelu_kernel(y_ref, scale_ref, shift_ref, o_ref):
    # z = (y - mean) * rsqrt(var+eps) * gamma + beta, folded into scale/shift.
    z = y_ref[...] * scale_ref[...] + shift_ref[...]
    o_ref[...] = jnp.where(z >= 0, z, NEG_SLOPE * z)


# ---------------- helpers ----------------

def _row_block(rows, lane, max_bytes=4 << 20):
    """Row tile for the elementwise pass: the full extent if it fits a ~4 MiB
    block, else the largest multiple-of-8 divisor of `rows` under the budget."""
    max_rows = max(8, max_bytes // (lane * 4))
    if rows <= max_rows:
        return rows
    best = None
    d = 8
    while d <= max_rows:
        if rows % d == 0:
            best = d
        d += 8
    return best if best is not None else rows


# ---------------- wrapper ----------------

@functools.partial(jax.jit, static_argnames=("padding",))
def conv3d_bn_lrelu(x, w, gamma, beta, *, padding):
    N, C_in, D, H, W = x.shape
    C_out, _, k, _, _ = w.shape
    p = padding

    Do, Ho, Wo = D + 2 * p - k + 1, H + 2 * p - k + 1, W + 2 * p - k + 1
    Dp, Hp, Wp = D + 2 * p, H + 2 * p, W + 2 * p
    R = Ho * Wp                # per-plane computed raster rows (with W overhang)
    Rp = (Hp + 1) * Wp         # padded plane rows (+1 zero H row keeps every
                               # static tap slice off:off+R inside the block)

    # Single channels-last spatially-padded copy (no k^3 blow-up); bf16 operands.
    xp = jnp.pad(x.transpose(0, 2, 3, 4, 1),
                 ((0, 0), (p, p), (p, p + 1), (p, p), (0, 0)))
    x_flat = xp.reshape(N, Dp, Rp, C_in).astype(jnp.bfloat16)

    # Weight -> per-kd stack of k*k (C_in, C_out) tap matrices, bf16.
    wt = w.transpose(2, 3, 4, 1, 0).reshape(k, k * k, C_in, C_out)
    wt = wt.astype(jnp.bfloat16)

    # Raster-row validity mask (0.0 on the Wp-Wo overhang columns).
    mask = jnp.tile(jnp.arange(Wp) < Wo, Ho).astype(jnp.float32).reshape(R, 1)

    # ---- kernel 1: implicit-GEMM conv + fused BN partial statistics ----
    # The k depth taps are k depth-shifted views of the same padded volume.
    in_specs = [pl.BlockSpec((1, 1, Rp, C_in),
                             (lambda n, d, kd=kd: (n, d + kd, 0, 0)))
                for kd in range(k)]
    in_specs += [pl.BlockSpec((k, k * k, C_in, C_out), lambda n, d: (0, 0, 0, 0)),
                 pl.BlockSpec((R, 1), lambda n, d: (0, 0))]

    kern = functools.partial(conv_bn_stats_kernel, k, Wp)
    conv_out, psum, psumsq = pl.pallas_call(
        kern,
        out_shape=(jax.ShapeDtypeStruct((N, Do, R, C_out), jnp.float32),
                   jax.ShapeDtypeStruct((N, Do, 1, C_out), jnp.float32),
                   jax.ShapeDtypeStruct((N, Do, 1, C_out), jnp.float32)),
        grid_spec=pltpu.PrefetchScalarGridSpec(
            num_scalar_prefetch=0,
            grid=(N, Do),
            in_specs=in_specs,
            out_specs=[
                pl.BlockSpec((1, 1, R, C_out), lambda n, d: (n, d, 0, 0)),
                pl.BlockSpec((1, 1, 1, C_out), lambda n, d: (n, d, 0, 0)),
                pl.BlockSpec((1, 1, 1, C_out), lambda n, d: (n, d, 0, 0)),
            ],
        ),
        compiler_params=pltpu.CompilerParams(
            dimension_semantics=("parallel", "parallel")),
    )(*([x_flat] * k), wt, mask)

    # Fold the tiny per-(n, d) partials into BN scale/shift (all f32; variance
    # clamped since E[y^2]-E[y]^2 can go slightly negative numerically).
    cnt = jnp.float32(N * Do * Ho * Wo)
    mean = jnp.sum(psum, axis=(0, 1, 2)) / cnt
    var = jnp.maximum(jnp.sum(psumsq, axis=(0, 1, 2)) / cnt - mean * mean, 0.0)
    inv_std = jax.lax.rsqrt(var + EPS)
    scale = gamma * inv_std                       # (C_out,)
    shift = beta - mean * scale                   # (C_out,)
    # TODO(synk): BatchNorm3d running_mean/var buffer updates (training side
    # effect) are not emitted; only the forward output is produced.

    # ---- kernel 2: lane-dense normalize + LeakyReLU (aliased in-place) ----
    total = N * Do * R * C_out
    if 128 % C_out == 0 and total % 128 == 0:
        lane = 128                                # channels repeat every C_out lanes
    else:
        lane = C_out                              # fallback: channel-width lanes
    reps = lane // C_out
    rows = total // lane
    scale_t = jnp.tile(scale, reps).reshape(1, lane)
    shift_t = jnp.tile(shift, reps).reshape(1, lane)
    y2 = conv_out.reshape(rows, lane)             # contiguous reshape (no copy)

    tr = _row_block(rows, lane)
    out2 = pl.pallas_call(
        bn_lrelu_kernel,
        out_shape=jax.ShapeDtypeStruct((rows, lane), jnp.float32),
        grid=(rows // tr,),
        in_specs=[pl.BlockSpec((tr, lane), lambda i: (i, 0)),
                  pl.BlockSpec((1, lane), lambda i: (0, 0)),
                  pl.BlockSpec((1, lane), lambda i: (0, 0))],
        out_specs=pl.BlockSpec((tr, lane), lambda i: (i, 0)),
        input_output_aliases={0: 0},
        compiler_params=pltpu.CompilerParams(
            dimension_semantics=("parallel",)),
    )(y2, scale_t, shift_t)

    # Drop the W overhang and return to NCDHW.
    out = out2.reshape(N, Do, Ho, Wp, C_out)[:, :, :, :Wo, :]
    return out.transpose(0, 4, 1, 2, 3)


if __name__ == "__main__":
    key = jax.random.PRNGKey(0)
    k1, k2, k3, k4 = jax.random.split(key, 4)

    N, C_in, D, H, W = 2, 4, 8, 8, 8
    C_out, ksize, pad = 8, 3, 1

    x = jax.random.normal(k1, (N, C_in, D, H, W), jnp.float32)
    fan_in = C_in * ksize ** 3
    w = jax.random.normal(k2, (C_out, C_in, ksize, ksize, ksize),
                          jnp.float32) / jnp.sqrt(fan_in)
    gamma = 1.0 + 0.1 * jax.random.normal(k3, (C_out,), jnp.float32)
    beta = 0.1 * jax.random.normal(k4, (C_out,), jnp.float32)

    out = conv3d_bn_lrelu(x, w, gamma, beta, padding=pad)
    out = jax.block_until_ready(out)

    # pure-JAX reference for correctness
    y = jax.lax.conv_general_dilated(
        x, w, (1, 1, 1), [(pad, pad)] * 3,
        dimension_numbers=("NCDHW", "OIDHW", "NCDHW"),
        precision=jax.lax.Precision.HIGHEST)
    mean = y.mean(axis=(0, 2, 3, 4), keepdims=True)
    var = jnp.square(y - mean).mean(axis=(0, 2, 3, 4), keepdims=True)
    z = (y - mean) / jnp.sqrt(var + EPS) * gamma.reshape(1, -1, 1, 1, 1) \
        + beta.reshape(1, -1, 1, 1, 1)
    ref = jnp.where(z >= 0, z, NEG_SLOPE * z)

    assert out.shape == (N, C_out, D, H, W)
    # bf16 matmul operands (f32 accumulation) vs f32-HIGHEST reference.
    assert jnp.allclose(out, ref, atol=3e-2, rtol=3e-2), \
        float(jnp.max(jnp.abs(out - ref)))
    print("KERNEL_OK")
</pallas_src>

<mosaic_0001>
module attributes {stable_mosaic.version = 11 : i64} {
  func.func @conv_bn_stats_kernel(%arg0: i32, %arg1: i32, %arg2: memref<1x1x110x4xbf16, #tpu.memory_space<vmem>>, %arg3: memref<1x1x110x4xbf16, #tpu.memory_space<vmem>>, %arg4: memref<1x1x110x4xbf16, #tpu.memory_space<vmem>>, %arg5: memref<3x9x4x8xbf16, #tpu.memory_space<vmem>>, %arg6: memref<80x1xf32, #tpu.memory_space<vmem>>, %arg7: memref<1x1x80x8xf32, #tpu.memory_space<vmem>>, %arg8: memref<1x1x1x8xf32, #tpu.memory_space<vmem>>, %arg9: memref<1x1x1x8xf32, #tpu.memory_space<vmem>>) attributes {dimension_semantics = [#tpu.dimension_semantics<parallel>, #tpu.dimension_semantics<parallel>], iteration_bounds = array<i64: 2, 8>, scalar_prefetch = 0 : i64, scratch_operands = 0 : i64, tpu.core_type = #tpu.core_type<tc>, window_params = [{transform_indices = @transform_0, window_bounds = array<i64: 1, 1, 110, 4>}, {transform_indices = @transform_1, window_bounds = array<i64: 1, 1, 110, 4>}, {transform_indices = @transform_2, window_bounds = array<i64: 1, 1, 110, 4>}, {pipeline_mode = #tpu.pipeline_mode<synchronous>, transform_indices = @transform_3, window_bounds = array<i64: 3, 9, 4, 8>}, {pipeline_mode = #tpu.pipeline_mode<synchronous>, transform_indices = @transform_4, window_bounds = array<i64: 80, 1>}, {transform_indices = @transform_5, window_bounds = array<i64: 1, 1, 80, 8>}, {transform_indices = @transform_6, window_bounds = array<i64: 1, 1, 1, 8>}, {transform_indices = @transform_7, window_bounds = array<i64: 1, 1, 1, 8>}]} {
    %c0 = arith.constant 0 : index
    %c0_0 = arith.constant 0 : index
    %c0_1 = arith.constant 0 : index
    %c0_2 = arith.constant 0 : index
    %0 = vector.load %arg2[%c0, %c0_0, %c0_1, %c0_2] : memref<1x1x110x4xbf16, #tpu.memory_space<vmem>>, vector<1x1x80x4xbf16>
    %1 = vector.shape_cast %0 : vector<1x1x80x4xbf16> to vector<80x4xbf16>
    %c0_3 = arith.constant 0 : index
    %c0_4 = arith.constant 0 : index
    %c0_5 = arith.constant 0 : index
    %c0_6 = arith.constant 0 : index
    %2 = vector.load %arg5[%c0_3, %c0_4, %c0_5, %c0_6] : memref<3x9x4x8xbf16, #tpu.memory_space<vmem>>, vector<1x1x4x8xbf16>
    %3 = vector.shape_cast %2 : vector<1x1x4x8xbf16> to vector<4x8xbf16>
    %cst = arith.constant dense<0.000000e+00> : vector<80x8xf32>
    %4 = tpu.matmul %1, %3, %cst {dimension_numbers = #tpu.dot_dimension_numbers<[1], [0], [0], [1], [0, 0, 1, 1], [], []>} : vector<80x4xbf16>, vector<4x8xbf16>, vector<80x8xf32> -> vector<80x8xf32>
    %c0_7 = arith.constant 0 : index
    %c0_8 = arith.constant 0 : index
    %c1 = arith.constant 1 : index
    %c0_9 = arith.constant 0 : index
    %5 = vector.load %arg2[%c0_7, %c0_8, %c1, %c0_9] : memref<1x1x110x4xbf16, #tpu.memory_space<vmem>>, vector<1x1x80x4xbf16>
    %6 = vector.shape_cast %5 : vector<1x1x80x4xbf16> to vector<80x4xbf16>
    %c0_10 = arith.constant 0 : index
    %c1_11 = arith.constant 1 : index
    %c0_12 = arith.constant 0 : index
    %c0_13 = arith.constant 0 : index
    %7 = vector.load %arg5[%c0_10, %c1_11, %c0_12, %c0_13] : memref<3x9x4x8xbf16, #tpu.memory_space<vmem>>, vector<1x1x4x8xbf16>
    %8 = vector.shape_cast %7 : vector<1x1x4x8xbf16> to vector<4x8xbf16>
    %cst_14 = arith.constant dense<0.000000e+00> : vector<80x8xf32>
    %9 = tpu.matmul %6, %8, %cst_14 {dimension_numbers = #tpu.dot_dimension_numbers<[1], [0], [0], [1], [0, 0, 1, 1], [], []>} : vector<80x4xbf16>, vector<4x8xbf16>, vector<80x8xf32> -> vector<80x8xf32>
    %10 = arith.addf %4, %9 : vector<80x8xf32>
    %c0_15 = arith.constant 0 : index
    %c0_16 = arith.constant 0 : index
    %c2 = arith.constant 2 : index
    %c0_17 = arith.constant 0 : index
    %11 = vector.load %arg2[%c0_15, %c0_16, %c2, %c0_17] : memref<1x1x110x4xbf16, #tpu.memory_space<vmem>>, vector<1x1x80x4xbf16>
    %12 = vector.shape_cast %11 : vector<1x1x80x4xbf16> to vector<80x4xbf16>
    %c0_18 = arith.constant 0 : index
    %c2_19 = arith.constant 2 : index
    %c0_20 = arith.constant 0 : index
    %c0_21 = arith.constant 0 : index
    %13 = vector.load %arg5[%c0_18, %c2_19, %c0_20, %c0_21] : memref<3x9x4x8xbf16, #tpu.memory_space<vmem>>, vector<1x1x4x8xbf16>
    %14 = vector.shape_cast %13 : vector<1x1x4x8xbf16> to vector<4x8xbf16>
    %cst_22 = arith.constant dense<0.000000e+00> : vector<80x8xf32>
    %15 = tpu.matmul %12, %14, %cst_22 {dimension_numbers = #tpu.dot_dimension_numbers<[1], [0], [0], [1], [0, 0, 1, 1], [], []>} : vector<80x4xbf16>, vector<4x8xbf16>, vector<80x8xf32> -> vector<80x8xf32>
    %16 = arith.addf %10, %15 : vector<80x8xf32>
    %c0_23 = arith.constant 0 : index
    %c0_24 = arith.constant 0 : index
    %c10 = arith.constant 10 : index
    %c0_25 = arith.constant 0 : index
    %17 = vector.load %arg2[%c0_23, %c0_24, %c10, %c0_25] : memref<1x1x110x4xbf16, #tpu.memory_space<vmem>>, vector<1x1x80x4xbf16>
    %18 = vector.shape_cast %17 : vector<1x1x80x4xbf16> to vector<80x4xbf16>
    %c0_26 = arith.constant 0 : index
    %c3 = arith.constant 3 : index
    %c0_27 = arith.constant 0 : index
    %c0_28 = arith.constant 0 : index
    %19 = vector.load %arg5[%c0_26, %c3, %c0_27, %c0_28] : memref<3x9x4x8xbf16, #tpu.memory_space<vmem>>, vector<1x1x4x8xbf16>
    %20 = vector.shape_cast %19 : vector<1x1x4x8xbf16> to vector<4x8xbf16>
    %cst_29 = arith.constant dense<0.000000e+00> : vector<80x8xf32>
    %21 = tpu.matmul %18, %20, %cst_29 {dimension_numbers = #tpu.dot_dimension_numbers<[1], [0], [0], [1], [0, 0, 1, 1], [], []>} : vector<80x4xbf16>, vector<4x8xbf16>, vector<80x8xf32> -> vector<80x8xf32>
    %22 = arith.addf %16, %21 : vector<80x8xf32>
    %c0_30 = arith.constant 0 : index
    %c0_31 = arith.constant 0 : index
    %c11 = arith.constant 11 : index
    %c0_32 = arith.constant 0 : index
    %23 = vector.load %arg2[%c0_30, %c0_31, %c11, %c0_32] : memref<1x1x110x4xbf16, #tpu.memory_space<vmem>>, vector<1x1x80x4xbf16>
    %24 = vector.shape_cast %23 : vector<1x1x80x4xbf16> to vector<80x4xbf16>
    %c0_33 = arith.constant 0 : index
    %c4 = arith.constant 4 : index
    %c0_34 = arith.constant 0 : index
    %c0_35 = arith.constant 0 : index
    %25 = vector.load %arg5[%c0_33, %c4, %c0_34, %c0_35] : memref<3x9x4x8xbf16, #tpu.memory_space<vmem>>, vector<1x1x4x8xbf16>
    %26 = vector.shape_cast %25 : vector<1x1x4x8xbf16> to vector<4x8xbf16>
    %cst_36 = arith.constant dense<0.000000e+00> : vector<80x8xf32>
    %27 = tpu.matmul %24, %26, %cst_36 {dimension_numbers = #tpu.dot_dimension_numbers<[1], [0], [0], [1], [0, 0, 1, 1], [], []>} : vector<80x4xbf16>, vector<4x8xbf16>, vector<80x8xf32> -> vector<80x8xf32>
    %28 = arith.addf %22, %27 : vector<80x8xf32>
    %c0_37 = arith.constant 0 : index
    %c0_38 = arith.constant 0 : index
    %c12 = arith.constant 12 : index
    %c0_39 = arith.constant 0 : index
    %29 = vector.load %arg2[%c0_37, %c0_38, %c12, %c0_39] : memref<1x1x110x4xbf16, #tpu.memory_space<vmem>>, vector<1x1x80x4xbf16>
    %30 = vector.shape_cast %29 : vector<1x1x80x4xbf16> to vector<80x4xbf16>
    %c0_40 = arith.constant 0 : index
    %c5 = arith.constant 5 : index
    %c0_41 = arith.constant 0 : index
    %c0_42 = arith.constant 0 : index
    %31 = vector.load %arg5[%c0_40, %c5, %c0_41, %c0_42] : memref<3x9x4x8xbf16, #tpu.memory_space<vmem>>, vector<1x1x4x8xbf16>
    %32 = vector.shape_cast %31 : vector<1x1x4x8xbf16> to vector<4x8xbf16>
    %cst_43 = arith.constant dense<0.000000e+00> : vector<80x8xf32>
    %33 = tpu.matmul %30, %32, %cst_43 {dimension_numbers = #tpu.dot_dimension_numbers<[1], [0], [0], [1], [0, 0, 1, 1], [], []>} : vector<80x4xbf16>, vector<4x8xbf16>, vector<80x8xf32> -> vector<80x8xf32>
    %34 = arith.addf %28, %33 : vector<80x8xf32>
    %c0_44 = arith.constant 0 : index
    %c0_45 = arith.constant 0 : index
    %c20 = arith.constant 20 : index
    %c0_46 = arith.constant 0 : index
    %35 = vector.load %arg2[%c0_44, %c0_45, %c20, %c0_46] : memref<1x1x110x4xbf16, #tpu.memory_space<vmem>>, vector<1x1x80x4xbf16>
    %36 = vector.shape_cast %35 : vector<1x1x80x4xbf16> to vector<80x4xbf16>
    %c0_47 = arith.constant 0 : index
    %c6 = arith.constant 6 : index
    %c0_48 = arith.constant 0 : index
    %c0_49 = arith.constant 0 : index
    %37 = vector.load %arg5[%c0_47, %c6, %c0_48, %c0_49] : memref<3x9x4x8xbf16, #tpu.memory_space<vmem>>, vector<1x1x4x8xbf16>
    %38 = vector.shape_cast %37 : vector<1x1x4x8xbf16> to vector<4x8xbf16>
    %cst_50 = arith.constant dense<0.000000e+00> : vector<80x8xf32>
    %39 = tpu.matmul %36, %38, %cst_50 {dimension_numbers = #tpu.dot_dimension_numbers<[1], [0], [0], [1], [0, 0, 1, 1], [], []>} : vector<80x4xbf16>, vector<4x8xbf16>, vector<80x8xf32> -> vector<80x8xf32>
    %40 = arith.addf %34, %39 : vector<80x8xf32>
    %c0_51 = arith.constant 0 : index
    %c0_52 = arith.constant 0 : index
    %c21 = arith.constant 21 : index
    %c0_53 = arith.constant 0 : index
    %41 = vector.load %arg2[%c0_51, %c0_52, %c21, %c0_53] : memref<1x1x110x4xbf16, #tpu.memory_space<vmem>>, vector<1x1x80x4xbf16>
    %42 = vector.shape_cast %41 : vector<1x1x80x4xbf16> to vector<80x4xbf16>
    %c0_54 = arith.constant 0 : index
    %c7 = arith.constant 7 : index
    %c0_55 = arith.constant 0 : index
    %c0_56 = arith.constant 0 : index
    %43 = vector.load %arg5[%c0_54, %c7, %c0_55, %c0_56] : memref<3x9x4x8xbf16, #tpu.memory_space<vmem>>, vector<1x1x4x8xbf16>
    %44 = vector.shape_cast %43 : vector<1x1x4x8xbf16> to vector<4x8xbf16>
    %cst_57 = arith.constant dense<0.000000e+00> : vector<80x8xf32>
    %45 = tpu.matmul %42, %44, %cst_57 {dimension_numbers = #tpu.dot_dimension_numbers<[1], [0], [0], [1], [0, 0, 1, 1], [], []>} : vector<80x4xbf16>, vector<4x8xbf16>, vector<80x8xf32> -> vector<80x8xf32>
    %46 = arith.addf %40, %45 : vector<80x8xf32>
    %c0_58 = arith.constant 0 : index
    %c0_59 = arith.constant 0 : index
    %c22 = arith.constant 22 : index
    %c0_60 = arith.constant 0 : index
    %47 = vector.load %arg2[%c0_58, %c0_59, %c22, %c0_60] : memref<1x1x110x4xbf16, #tpu.memory_space<vmem>>, vector<1x1x80x4xbf16>
    %48 = vector.shape_cast %47 : vector<1x1x80x4xbf16> to vector<80x4xbf16>
    %c0_61 = arith.constant 0 : index
    %c8 = arith.constant 8 : index
    %c0_62 = arith.constant 0 : index
    %c0_63 = arith.constant 0 : index
    %49 = vector.load %arg5[%c0_61, %c8, %c0_62, %c0_63] : memref<3x9x4x8xbf16, #tpu.memory_space<vmem>>, vector<1x1x4x8xbf16>
    %50 = vector.shape_cast %49 : vector<1x1x4x8xbf16> to vector<4x8xbf16>
    %cst_64 = arith.constant dense<0.000000e+00> : vector<80x8xf32>
    %51 = tpu.matmul %48, %50, %cst_64 {dimension_numbers = #tpu.dot_dimension_numbers<[1], [0], [0], [1], [0, 0, 1, 1], [], []>} : vector<80x4xbf16>, vector<4x8xbf16>, vector<80x8xf32> -> vector<80x8xf32>
    %52 = arith.addf %46, %51 : vector<80x8xf32>
    %c0_65 = arith.constant 0 : index
    %c0_66 = arith.constant 0 : index
    %c0_67 = arith.constant 0 : index
    %c0_68 = arith.constant 0 : index
    %53 = vector.load %arg3[%c0_65, %c0_66, %c0_67, %c0_68] : memref<1x1x110x4xbf16, #tpu.memory_space<vmem>>, vector<1x1x80x4xbf16>
    %54 = vector.shape_cast %53 : vector<1x1x80x4xbf16> to vector<80x4xbf16>
    %c1_69 = arith.constant 1 : index
    %c0_70 = arith.constant 0 : index
    %c0_71 = arith.constant 0 : index
    %c0_72 = arith.constant 0 : index
    %55 = vector.load %arg5[%c1_69, %c0_70, %c0_71, %c0_72] : memref<3x9x4x8xbf16, #tpu.memory_space<vmem>>, vector<1x1x4x8xbf16>
    %56 = vector.shape_cast %55 : vector<1x1x4x8xbf16> to vector<4x8xbf16>
    %cst_73 = arith.constant dense<0.000000e+00> : vector<80x8xf32>
    %57 = tpu.matmul %54, %56, %cst_73 {dimension_numbers = #tpu.dot_dimension_numbers<[1], [0], [0], [1], [0, 0, 1, 1], [], []>} : vector<80x4xbf16>, vector<4x8xbf16>, vector<80x8xf32> -> vector<80x8xf32>
    %58 = arith.addf %52, %57 : vector<80x8xf32>
    %c0_74 = arith.constant 0 : index
    %c0_75 = arith.constant 0 : index
    %c1_76 = arith.constant 1 : index
    %c0_77 = arith.constant 0 : index
    %59 = vector.load %arg3[%c0_74, %c0_75, %c1_76, %c0_77] : memref<1x1x110x4xbf16, #tpu.memory_space<vmem>>, vector<1x1x80x4xbf16>
    %60 = vector.shape_cast %59 : vector<1x1x80x4xbf16> to vector<80x4xbf16>
    %c1_78 = arith.constant 1 : index
    %c1_79 = arith.constant 1 : index
    %c0_80 = arith.constant 0 : index
    %c0_81 = arith.constant 0 : index
    %61 = vector.load %arg5[%c1_78, %c1_79, %c0_80, %c0_81] : memref<3x9x4x8xbf16, #tpu.memory_space<vmem>>, vector<1x1x4x8xbf16>
    %62 = vector.shape_cast %61 : vector<1x1x4x8xbf16> to vector<4x8xbf16>
    %cst_82 = arith.constant dense<0.000000e+00> : vector<80x8xf32>
    %63 = tpu.matmul %60, %62, %cst_82 {dimension_numbers = #tpu.dot_dimension_numbers<[1], [0], [0], [1], [0, 0, 1, 1], [], []>} : vector<80x4xbf16>, vector<4x8xbf16>, vector<80x8xf32> -> vector<80x8xf32>
    %64 = arith.addf %58, %63 : vector<80x8xf32>
    %c0_83 = arith.constant 0 : index
    %c0_84 = arith.constant 0 : index
    %c2_85 = arith.constant 2 : index
    %c0_86 = arith.constant 0 : index
    %65 = vector.load %arg3[%c0_83, %c0_84, %c2_85, %c0_86] : memref<1x1x110x4xbf16, #tpu.memory_space<vmem>>, vector<1x1x80x4xbf16>
    %66 = vector.shape_cast %65 : vector<1x1x80x4xbf16> to vector<80x4xbf16>
    %c1_87 = arith.constant 1 : index
    %c2_88 = arith.constant 2 : index
    %c0_89 = arith.constant 0 : index
    %c0_90 = arith.constant 0 : index
    %67 = vector.load %arg5[%c1_87, %c2_88, %c0_89, %c0_90] : memref<3x9x4x8xbf16, #tpu.memory_space<vmem>>, vector<1x1x4x8xbf16>
    %68 = vector.shape_cast %67 : vector<1x1x4x8xbf16> to vector<4x8xbf16>
    %cst_91 = arith.constant dense<0.000000e+00> : vector<80x8xf32>
    %69 = tpu.matmul %66, %68, %cst_91 {dimension_numbers = #tpu.dot_dimension_numbers<[1], [0], [0], [1], [0, 0, 1, 1], [], []>} : vector<80x4xbf16>, vector<4x8xbf16>, vector<80x8xf32> -> vector<80x8xf32>
    %70 = arith.addf %64, %69 : vector<80x8xf32>
    %c0_92 = arith.constant 0 : index
    %c0_93 = arith.constant 0 : index
    %c10_94 = arith.constant 10 : index
    %c0_95 = arith.constant 0 : index
    %71 = vector.load %arg3[%c0_92, %c0_93, %c10_94, %c0_95] : memref<1x1x110x4xbf16, #tpu.memory_space<vmem>>, vector<1x1x80x4xbf16>
    %72 = vector.shape_cast %71 : vector<1x1x80x4xbf16> to vector<80x4xbf16>
    %c1_96 = arith.constant 1 : index
    %c3_97 = arith.constant 3 : index
    %c0_98 = arith.constant 0 : index
    %c0_99 = arith.constant 0 : index
    %73 = vector.load %arg5[%c1_96, %c3_97, %c0_98, %c0_99] : memref<3x9x4x8xbf16, #tpu.memory_space<vmem>>, vector<1x1x4x8xbf16>
    %74 = vector.shape_cast %73 : vector<1x1x4x8xbf16> to vector<4x8xbf16>
    %cst_100 = arith.constant dense<0.000000e+00> : vector<80x8xf32>
    %75 = tpu.matmul %72, %74, %cst_100 {dimension_numbers = #tpu.dot_dimension_numbers<[1], [0], [0], [1], [0, 0, 1, 1], [], []>} : vector<80x4xbf16>, vector<4x8xbf16>, vector<80x8xf32> -> vector<80x8xf32>
    %76 = arith.addf %70, %75 : vector<80x8xf32>
    %c0_101 = arith.constant 0 : index
    %c0_102 = arith.constant 0 : index
    %c11_103 = arith.constant 11 : index
    %c0_104 = arith.constant 0 : index
    %77 = vector.load %arg3[%c0_101, %c0_102, %c11_103, %c0_104] : memref<1x1x110x4xbf16, #tpu.memory_space<vmem>>, vector<1x1x80x4xbf16>
    %78 = vector.shape_cast %77 : vector<1x1x80x4xbf16> to vector<80x4xbf16>
    %c1_105 = arith.constant 1 : index
    %c4_106 = arith.constant 4 : index
    %c0_107 = arith.constant 0 : index
    %c0_108 = arith.constant 0 : index
    %79 = vector.load %arg5[%c1_105, %c4_106, %c0_107, %c0_108] : memref<3x9x4x8xbf16, #tpu.memory_space<vmem>>, vector<1x1x4x8xbf16>
    %80 = vector.shape_cast %79 : vector<1x1x4x8xbf16> to vector<4x8xbf16>
    %cst_109 = arith.constant dense<0.000000e+00> : vector<80x8xf32>
    %81 = tpu.matmul %78, %80, %cst_109 {dimension_numbers = #tpu.dot_dimension_numbers<[1], [0], [0], [1], [0, 0, 1, 1], [], []>} : vector<80x4xbf16>, vector<4x8xbf16>, vector<80x8xf32> -> vector<80x8xf32>
    %82 = arith.addf %76, %81 : vector<80x8xf32>
    %c0_110 = arith.constant 0 : index
    %c0_111 = arith.constant 0 : index
    %c12_112 = arith.constant 12 : index
    %c0_113 = arith.constant 0 : index
    %83 = vector.load %arg3[%c0_110, %c0_111, %c12_112, %c0_113] : memref<1x1x110x4xbf16, #tpu.memory_space<vmem>>, vector<1x1x80x4xbf16>
    %84 = vector.shape_cast %83 : vector<1x1x80x4xbf16> to vector<80x4xbf16>
    %c1_114 = arith.constant 1 : index
    %c5_115 = arith.constant 5 : index
    %c0_116 = arith.constant 0 : index
    %c0_117 = arith.constant 0 : index
    %85 = vector.load %arg5[%c1_114, %c5_115, %c0_116, %c0_117] : memref<3x9x4x8xbf16, #tpu.memory_space<vmem>>, vector<1x1x4x8xbf16>
    %86 = vector.shape_cast %85 : vector<1x1x4x8xbf16> to vector<4x8xbf16>
    %cst_118 = arith.constant dense<0.000000e+00> : vector<80x8xf32>
    %87 = tpu.matmul %84, %86, %cst_118 {dimension_numbers = #tpu.dot_dimension_numbers<[1], [0], [0], [1], [0, 0, 1, 1], [], []>} : vector<80x4xbf16>, vector<4x8xbf16>, vector<80x8xf32> -> vector<80x8xf32>
    %88 = arith.addf %82, %87 : vector<80x8xf32>
    %c0_119 = arith.constant 0 : index
    %c0_120 = arith.constant 0 : index
    %c20_121 = arith.constant 20 : index
    %c0_122 = arith.constant 0 : index
    %89 = vector.load %arg3[%c0_119, %c0_120, %c20_121, %c0_122] : memref<1x1x110x4xbf16, #tpu.memory_space<vmem>>, vector<1x1x80x4xbf16>
    %90 = vector.shape_cast %89 : vector<1x1x80x4xbf16> to vector<80x4xbf16>
    %c1_123 = arith.constant 1 : index
    %c6_124 = arith.constant 6 : index
    %c0_125 = arith.constant 0 : index
    %c0_126 = arith.constant 0 : index
    %91 = vector.load %arg5[%c1_123, %c6_124, %c0_125, %c0_126] : memref<3x9x4x8xbf16, #tpu.memory_space<vmem>>, vector<1x1x4x8xbf16>
    %92 = vector.shape_cast %91 : vector<1x1x4x8xbf16> to vector<4x8xbf16>
    %cst_127 = arith.constant dense<0.000000e+00> : vector<80x8xf32>
    %93 = tpu.matmul %90, %92, %cst_127 {dimension_numbers = #tpu.dot_dimension_numbers<[1], [0], [0], [1], [0, 0, 1, 1], [], []>} : vector<80x4xbf16>, vector<4x8xbf16>, vector<80x8xf32> -> vector<80x8xf32>
    %94 = arith.addf %88, %93 : vector<80x8xf32>
    %c0_128 = arith.constant 0 : index
    %c0_129 = arith.constant 0 : index
    %c21_130 = arith.constant 21 : index
    %c0_131 = arith.constant 0 : index
    %95 = vector.load %arg3[%c0_128, %c0_129, %c21_130, %c0_131] : memref<1x1x110x4xbf16, #tpu.memory_space<vmem>>, vector<1x1x80x4xbf16>
    %96 = vector.shape_cast %95 : vector<1x1x80x4xbf16> to vector<80x4xbf16>
    %c1_132 = arith.constant 1 : index
    %c7_133 = arith.constant 7 : index
    %c0_134 = arith.constant 0 : index
    %c0_135 = arith.constant 0 : index
    %97 = vector.load %arg5[%c1_132, %c7_133, %c0_134, %c0_135] : memref<3x9x4x8xbf16, #tpu.memory_space<vmem>>, vector<1x1x4x8xbf16>
    %98 = vector.shape_cast %97 : vector<1x1x4x8xbf16> to vector<4x8xbf16>
    %cst_136 = arith.constant dense<0.000000e+00> : vector<80x8xf32>
    %99 = tpu.matmul %96, %98, %cst_136 {dimension_numbers = #tpu.dot_dimension_numbers<[1], [0], [0], [1], [0, 0, 1, 1], [], []>} : vector<80x4xbf16>, vector<4x8xbf16>, vector<80x8xf32> -> vector<80x8xf32>
    %100 = arith.addf %94, %99 : vector<80x8xf32>
    %c0_137 = arith.constant 0 : index
    %c0_138 = arith.constant 0 : index
    %c22_139 = arith.constant 22 : index
    %c0_140 = arith.constant 0 : index
    %101 = vector.load %arg3[%c0_137, %c0_138, %c22_139, %c0_140] : memref<1x1x110x4xbf16, #tpu.memory_space<vmem>>, vector<1x1x80x4xbf16>
    %102 = vector.shape_cast %101 : vector<1x1x80x4xbf16> to vector<80x4xbf16>
    %c1_141 = arith.constant 1 : index
    %c8_142 = arith.constant 8 : index
    %c0_143 = arith.constant 0 : index
    %c0_144 = arith.constant 0 : index
    %103 = vector.load %arg5[%c1_141, %c8_142, %c0_143, %c0_144] : memref<3x9x4x8xbf16, #tpu.memory_space<vmem>>, vector<1x1x4x8xbf16>
    %104 = vector.shape_cast %103 : vector<1x1x4x8xbf16> to vector<4x8xbf16>
    %cst_145 = arith.constant dense<0.000000e+00> : vector<80x8xf32>
    %105 = tpu.matmul %102, %104, %cst_145 {dimension_numbers = #tpu.dot_dimension_numbers<[1], [0], [0], [1], [0, 0, 1, 1], [], []>} : vector<80x4xbf16>, vector<4x8xbf16>, vector<80x8xf32> -> vector<80x8xf32>
    %106 = arith.addf %100, %105 : vector<80x8xf32>
    %c0_146 = arith.constant 0 : index
    %c0_147 = arith.constant 0 : index
    %c0_148 = arith.constant 0 : index
    %c0_149 = arith.constant 0 : index
    %107 = vector.load %arg4[%c0_146, %c0_147, %c0_148, %c0_149] : memref<1x1x110x4xbf16, #tpu.memory_space<vmem>>, vector<1x1x80x4xbf16>
    %108 = vector.shape_cast %107 : vector<1x1x80x4xbf16> to vector<80x4xbf16>
    %c2_150 = arith.constant 2 : index
    %c0_151 = arith.constant 0 : index
    %c0_152 = arith.constant 0 : index
    %c0_153 = arith.constant 0 : index
    %109 = vector.load %arg5[%c2_150, %c0_151, %c0_152, %c0_153] : memref<3x9x4x8xbf16, #tpu.memory_space<vmem>>, vector<1x1x4x8xbf16>
    %110 = vector.shape_cast %109 : vector<1x1x4x8xbf16> to vector<4x8xbf16>
    %cst_154 = arith.constant dense<0.000000e+00> : vector<80x8xf32>
    %111 = tpu.matmul %108, %110, %cst_154 {dimension_numbers = #tpu.dot_dimension_numbers<[1], [0], [0], [1], [0, 0, 1, 1], [], []>} : vector<80x4xbf16>, vector<4x8xbf16>, vector<80x8xf32> -> vector<80x8xf32>
    %112 = arith.addf %106, %111 : vector<80x8xf32>
    %c0_155 = arith.constant 0 : index
    %c0_156 = arith.constant 0 : index
    %c1_157 = arith.constant 1 : index
    %c0_158 = arith.constant 0 : index
    %113 = vector.load %arg4[%c0_155, %c0_156, %c1_157, %c0_158] : memref<1x1x110x4xbf16, #tpu.memory_space<vmem>>, vector<1x1x80x4xbf16>
    %114 = vector.shape_cast %113 : vector<1x1x80x4xbf16> to vector<80x4xbf16>
    %c2_159 = arith.constant 2 : index
    %c1_160 = arith.constant 1 : index
    %c0_161 = arith.constant 0 : index
    %c0_162 = arith.constant 0 : index
    %115 = vector.load %arg5[%c2_159, %c1_160, %c0_161, %c0_162] : memref<3x9x4x8xbf16, #tpu.memory_space<vmem>>, vector<1x1x4x8xbf16>
    %116 = vector.shape_cast %115 : vector<1x1x4x8xbf16> to vector<4x8xbf16>
    %cst_163 = arith.constant dense<0.000000e+00> : vector<80x8xf32>
    %117 = tpu.matmul %114, %116, %cst_163 {dimension_numbers = #tpu.dot_dimension_numbers<[1], [0], [0], [1], [0, 0, 1, 1], [], []>} : vector<80x4xbf16>, vector<4x8xbf16>, vector<80x8xf32> -> vector<80x8xf32>
    %118 = arith.addf %112, %117 : vector<80x8xf32>
    %c0_164 = arith.constant 0 : index
    %c0_165 = arith.constant 0 : index
    %c2_166 = arith.constant 2 : index
    %c0_167 = arith.constant 0 : index
    %119 = vector.load %arg4[%c0_164, %c0_165, %c2_166, %c0_167] : memref<1x1x110x4xbf16, #tpu.memory_space<vmem>>, vector<1x1x80x4xbf16>
    %120 = vector.shape_cast %119 : vector<1x1x80x4xbf16> to vector<80x4xbf16>
    %c2_168 = arith.constant 2 : index
    %c2_169 = arith.constant 2 : index
    %c0_170 = arith.constant 0 : index
    %c0_171 = arith.constant 0 : index
    %121 = vector.load %arg5[%c2_168, %c2_169, %c0_170, %c0_171] : memref<3x9x4x8xbf16, #tpu.memory_space<vmem>>, vector<1x1x4x8xbf16>
    %122 = vector.shape_cast %121 : vector<1x1x4x8xbf16> to vector<4x8xbf16>
    %cst_172 = arith.constant dense<0.000000e+00> : vector<80x8xf32>
    %123 = tpu.matmul %120, %122, %cst_172 {dimension_numbers = #tpu.dot_dimension_numbers<[1], [0], [0], [1], [0, 0, 1, 1], [], []>} : vector<80x4xbf16>, vector<4x8xbf16>, vector<80x8xf32> -> vector<80x8xf32>
    %124 = arith.addf %118, %123 : vector<80x8xf32>
    %c0_173 = arith.constant 0 : index
    %c0_174 = arith.constant 0 : index
    %c10_175 = arith.constant 10 : index
    %c0_176 = arith.constant 0 : index
    %125 = vector.load %arg4[%c0_173, %c0_174, %c10_175, %c0_176] : memref<1x1x110x4xbf16, #tpu.memory_space<vmem>>, vector<1x1x80x4xbf16>
    %126 = vector.shape_cast %125 : vector<1x1x80x4xbf16> to vector<80x4xbf16>
    %c2_177 = arith.constant 2 : index
    %c3_178 = arith.constant 3 : index
    %c0_179 = arith.constant 0 : index
    %c0_180 = arith.constant 0 : index
    %127 = vector.load %arg5[%c2_177, %c3_178, %c0_179, %c0_180] : memref<3x9x4x8xbf16, #tpu.memory_space<vmem>>, vector<1x1x4x8xbf16>
    %128 = vector.shape_cast %127 : vector<1x1x4x8xbf16> to vector<4x8xbf16>
    %cst_181 = arith.constant dense<0.000000e+00> : vector<80x8xf32>
    %129 = tpu.matmul %126, %128, %cst_181 {dimension_numbers = #tpu.dot_dimension_numbers<[1], [0], [0], [1], [0, 0, 1, 1], [], []>} : vector<80x4xbf16>, vector<4x8xbf16>, vector<80x8xf32> -> vector<80x8xf32>
    %130 = arith.addf %124, %129 : vector<80x8xf32>
    %c0_182 = arith.constant 0 : index
    %c0_183 = arith.constant 0 : index
    %c11_184 = arith.constant 11 : index
    %c0_185 = arith.constant 0 : index
    %131 = vector.load %arg4[%c0_182, %c0_183, %c11_184, %c0_185] : memref<1x1x110x4xbf16, #tpu.memory_space<vmem>>, vector<1x1x80x4xbf16>
    %132 = vector.shape_cast %131 : vector<1x1x80x4xbf16> to vector<80x4xbf16>
    %c2_186 = arith.constant 2 : index
    %c4_187 = arith.constant 4 : index
    %c0_188 = arith.constant 0 : index
    %c0_189 = arith.constant 0 : index
    %133 = vector.load %arg5[%c2_186, %c4_187, %c0_188, %c0_189] : memref<3x9x4x8xbf16, #tpu.memory_space<vmem>>, vector<1x1x4x8xbf16>
    %134 = vector.shape_cast %133 : vector<1x1x4x8xbf16> to vector<4x8xbf16>
    %cst_190 = arith.constant dense<0.000000e+00> : vector<80x8xf32>
    %135 = tpu.matmul %132, %134, %cst_190 {dimension_numbers = #tpu.dot_dimension_numbers<[1], [0], [0], [1], [0, 0, 1, 1], [], []>} : vector<80x4xbf16>, vector<4x8xbf16>, vector<80x8xf32> -> vector<80x8xf32>
    %136 = arith.addf %130, %135 : vector<80x8xf32>
    %c0_191 = arith.constant 0 : index
    %c0_192 = arith.constant 0 : index
    %c12_193 = arith.constant 12 : index
    %c0_194 = arith.constant 0 : index
    %137 = vector.load %arg4[%c0_191, %c0_192, %c12_193, %c0_194] : memref<1x1x110x4xbf16, #tpu.memory_space<vmem>>, vector<1x1x80x4xbf16>
    %138 = vector.shape_cast %137 : vector<1x1x80x4xbf16> to vector<80x4xbf16>
    %c2_195 = arith.constant 2 : index
    %c5_196 = arith.constant 5 : index
    %c0_197 = arith.constant 0 : index
    %c0_198 = arith.constant 0 : index
    %139 = vector.load %arg5[%c2_195, %c5_196, %c0_197, %c0_198] : memref<3x9x4x8xbf16, #tpu.memory_space<vmem>>, vector<1x1x4x8xbf16>
    %140 = vector.shape_cast %139 : vector<1x1x4x8xbf16> to vector<4x8xbf16>
    %cst_199 = arith.constant dense<0.000000e+00> : vector<80x8xf32>
    %141 = tpu.matmul %138, %140, %cst_199 {dimension_numbers = #tpu.dot_dimension_numbers<[1], [0], [0], [1], [0, 0, 1, 1], [], []>} : vector<80x4xbf16>, vector<4x8xbf16>, vector<80x8xf32> -> vector<80x8xf32>
    %142 = arith.addf %136, %141 : vector<80x8xf32>
    %c0_200 = arith.constant 0 : index
    %c0_201 = arith.constant 0 : index
    %c20_202 = arith.constant 20 : index
    %c0_203 = arith.constant 0 : index
    %143 = vector.load %arg4[%c0_200, %c0_201, %c20_202, %c0_203] : memref<1x1x110x4xbf16, #tpu.memory_space<vmem>>, vector<1x1x80x4xbf16>
    %144 = vector.shape_cast %143 : vector<1x1x80x4xbf16> to vector<80x4xbf16>
    %c2_204 = arith.constant 2 : index
    %c6_205 = arith.constant 6 : index
    %c0_206 = arith.constant 0 : index
    %c0_207 = arith.constant 0 : index
    %145 = vector.load %arg5[%c2_204, %c6_205, %c0_206, %c0_207] : memref<3x9x4x8xbf16, #tpu.memory_space<vmem>>, vector<1x1x4x8xbf16>
    %146 = vector.shape_cast %145 : vector<1x1x4x8xbf16> to vector<4x8xbf16>
    %cst_208 = arith.constant dense<0.000000e+00> : vector<80x8xf32>
    %147 = tpu.matmul %144, %146, %cst_208 {dimension_numbers = #tpu.dot_dimension_numbers<[1], [0], [0], [1], [0, 0, 1, 1], [], []>} : vector<80x4xbf16>, vector<4x8xbf16>, vector<80x8xf32> -> vector<80x8xf32>
    %148 = arith.addf %142, %147 : vector<80x8xf32>
    %c0_209 = arith.constant 0 : index
    %c0_210 = arith.constant 0 : index
    %c21_211 = arith.constant 21 : index
    %c0_212 = arith.constant 0 : index
    %149 = vector.load %arg4[%c0_209, %c0_210, %c21_211, %c0_212] : memref<1x1x110x4xbf16, #tpu.memory_space<vmem>>, vector<1x1x80x4xbf16>
    %150 = vector.shape_cast %149 : vector<1x1x80x4xbf16> to vector<80x4xbf16>
    %c2_213 = arith.constant 2 : index
    %c7_214 = arith.constant 7 : index
    %c0_215 = arith.constant 0 : index
    %c0_216 = arith.constant 0 : index
    %151 = vector.load %arg5[%c2_213, %c7_214, %c0_215, %c0_216] : memref<3x9x4x8xbf16, #tpu.memory_space<vmem>>, vector<1x1x4x8xbf16>
    %152 = vector.shape_cast %151 : vector<1x1x4x8xbf16> to vector<4x8xbf16>
    %cst_217 = arith.constant dense<0.000000e+00> : vector<80x8xf32>
    %153 = tpu.matmul %150, %152, %cst_217 {dimension_numbers = #tpu.dot_dimension_numbers<[1], [0], [0], [1], [0, 0, 1, 1], [], []>} : vector<80x4xbf16>, vector<4x8xbf16>, vector<80x8xf32> -> vector<80x8xf32>
    %154 = arith.addf %148, %153 : vector<80x8xf32>
    %c0_218 = arith.constant 0 : index
    %c0_219 = arith.constant 0 : index
    %c22_220 = arith.constant 22 : index
    %c0_221 = arith.constant 0 : index
    %155 = vector.load %arg4[%c0_218, %c0_219, %c22_220, %c0_221] : memref<1x1x110x4xbf16, #tpu.memory_space<vmem>>, vector<1x1x80x4xbf16>
    %156 = vector.shape_cast %155 : vector<1x1x80x4xbf16> to vector<80x4xbf16>
    %c2_222 = arith.constant 2 : index
    %c8_223 = arith.constant 8 : index
    %c0_224 = arith.constant 0 : index
    %c0_225 = arith.constant 0 : index
    %157 = vector.load %arg5[%c2_222, %c8_223, %c0_224, %c0_225] : memref<3x9x4x8xbf16, #tpu.memory_space<vmem>>, vector<1x1x4x8xbf16>
    %158 = vector.shape_cast %157 : vector<1x1x4x8xbf16> to vector<4x8xbf16>
    %cst_226 = arith.constant dense<0.000000e+00> : vector<80x8xf32>
    %159 = tpu.matmul %156, %158, %cst_226 {dimension_numbers = #tpu.dot_dimension_numbers<[1], [0], [0], [1], [0, 0, 1, 1], [], []>} : vector<80x4xbf16>, vector<4x8xbf16>, vector<80x8xf32> -> vector<80x8xf32>
    %160 = arith.addf %154, %159 : vector<80x8xf32>
    %c0_227 = arith.constant 0 : index
    %c0_228 = arith.constant 0 : index
    %c0_229 = arith.constant 0 : index
    %c0_230 = arith.constant 0 : index
    %161 = vector.load %arg7[%c0_227, %c0_228, %c0_229, %c0_230] : memref<1x1x80x8xf32, #tpu.memory_space<vmem>>, vector<1x1x80x8xf32>
    %162 = vector.shape_cast %161 : vector<1x1x80x8xf32> to vector<80x8xf32>
    %163 = vector.shape_cast %160 : vector<80x8xf32> to vector<1x1x80x8xf32>
    tpu.vector_store %arg7[%c0_227, %c0_228, %c0_229, %c0_230], %163 {strides = array<i32>} : memref<1x1x80x8xf32, #tpu.memory_space<vmem>>, vector<1x1x80x8xf32>,
    %c0_231 = arith.constant 0 : index
    %c0_232 = arith.constant 0 : index
    %164 = vector.load %arg6[%c0_231, %c0_232] : memref<80x1xf32, #tpu.memory_space<vmem>>, vector<80x1xf32>
    %165 = vector.broadcast %164 : vector<80x1xf32> to vector<80x8xf32>
    %166 = arith.mulf %160, %165 : vector<80x8xf32>
    %cst_233 = arith.constant dense<0.000000e+00> : vector<8xf32>
    %167 = vector.multi_reduction <add>, %166, %cst_233 [0] : vector<80x8xf32> to vector<8xf32>
    %168 = vector.shape_cast %167 : vector<8xf32> to vector<1x8xf32>
    %c0_234 = arith.constant 0 : index
    %c0_235 = arith.constant 0 : index
    %c0_236 = arith.constant 0 : index
    %c0_237 = arith.constant 0 : index
    %169 = vector.load %arg8[%c0_234, %c0_235, %c0_236, %c0_237] : memref<1x1x1x8xf32, #tpu.memory_space<vmem>>, vector<1x1x1x8xf32>
    %170 = vector.shape_cast %169 : vector<1x1x1x8xf32> to vector<1x8xf32>
    %171 = vector.shape_cast %168 : vector<1x8xf32> to vector<1x1x1x8xf32>
    tpu.vector_store %arg8[%c0_234, %c0_235, %c0_236, %c0_237], %171 {strides = array<i32>} : memref<1x1x1x8xf32, #tpu.memory_space<vmem>>, vector<1x1x1x8xf32>,
    %172 = arith.mulf %166, %160 : vector<80x8xf32>
    %cst_238 = arith.constant dense<0.000000e+00> : vector<8xf32>
    %173 = vector.multi_reduction <add>, %172, %cst_238 [0] : vector<80x8xf32> to vector<8xf32>
    %174 = vector.shape_cast %173 : vector<8xf32> to vector<1x8xf32>
    %c0_239 = arith.constant 0 : index
    %c0_240 = arith.constant 0 : index
    %c0_241 = arith.constant 0 : index
    %c0_242 = arith.constant 0 : index
    %175 = vector.load %arg9[%c0_239, %c0_240, %c0_241, %c0_242] : memref<1x1x1x8xf32, #tpu.memory_space<vmem>>, vector<1x1x1x8xf32>
    %176 = vector.shape_cast %175 : vector<1x1x1x8xf32> to vector<1x8xf32>
    %177 = vector.shape_cast %174 : vector<1x8xf32> to vector<1x1x1x8xf32>
    tpu.vector_store %arg9[%c0_239, %c0_240, %c0_241, %c0_242], %177 {strides = array<i32>} : memref<1x1x1x8xf32, #tpu.memory_space<vmem>>, vector<1x1x1x8xf32>,
    return
  }
  func.func @transform_0(%arg0: i32, %arg1: i32) -> (i32, i32, i32, i32) {
    %c0_i32 = arith.constant 0 : i32
    %0 = arith.addi %arg1, %c0_i32 : i32
    %c0_i32_0 = arith.constant 0 : i32
    %c0_i32_1 = arith.constant 0 : i32
    %c0_i32_2 = arith.constant 0 : i32
    return %arg0, %0, %c0_i32_0, %c0_i32_1 : i32, i32, i32, i32
  }
  func.func @transform_1(%arg0: i32, %arg1: i32) -> (i32, i32, i32, i32) {
    %c1_i32 = arith.constant 1 : i32
    %0 = arith.addi %arg1, %c1_i32 : i32
    %c0_i32 = arith.constant 0 : i32
    %c0_i32_0 = arith.constant 0 : i32
    %c0_i32_1 = arith.constant 0 : i32
    return %arg0, %0, %c0_i32, %c0_i32_0 : i32, i32, i32, i32
  }
  func.func @transform_2(%arg0: i32, %arg1: i32) -> (i32, i32, i32, i32) {
    %c2_i32 = arith.constant 2 : i32
    %0 = arith.addi %arg1, %c2_i32 : i32
    %c0_i32 = arith.constant 0 : i32
    %c0_i32_0 = arith.constant 0 : i32
    %c0_i32_1 = arith.constant 0 : i32
    return %arg0, %0, %c0_i32, %c0_i32_0 : i32, i32, i32, i32
  }
  func.func @transform_3(%arg0: i32, %arg1: i32) -> (i32, i32, i32, i32) {
    %c0_i32 = arith.constant 0 : i32
    %c0_i32_0 = arith.constant 0 : i32
    %c0_i32_1 = arith.constant 0 : i32
    %c0_i32_2 = arith.constant 0 : i32
    %c0_i32_3 = arith.constant 0 : i32
    return %c0_i32, %c0_i32_0, %c0_i32_1, %c0_i32_2 : i32, i32, i32, i32
  }
  func.func @transform_4(%arg0: i32, %arg1: i32) -> (i32, i32) {
    %c0_i32 = arith.constant 0 : i32
    %c0_i32_0 = arith.constant 0 : i32
    %c0_i32_1 = arith.constant 0 : i32
    return %c0_i32, %c0_i32_0 : i32, i32
  }
  func.func @transform_5(%arg0: i32, %arg1: i32) -> (i32, i32, i32, i32) {
    %c0_i32 = arith.constant 0 : i32
    %c0_i32_0 = arith.constant 0 : i32
    %c0_i32_1 = arith.constant 0 : i32
    return %arg0, %arg1, %c0_i32, %c0_i32_0 : i32, i32, i32, i32
  }
  func.func @transform_6(%arg0: i32, %arg1: i32) -> (i32, i32, i32, i32) {
    %c0_i32 = arith.constant 0 : i32
    %c0_i32_0 = arith.constant 0 : i32
    %c0_i32_1 = arith.constant 0 : i32
    return %arg0, %arg1, %c0_i32, %c0_i32_0 : i32, i32, i32, i32
  }
  func.func @transform_7(%arg0: i32, %arg1: i32) -> (i32, i32, i32, i32) {
    %c0_i32 = arith.constant 0 : i32
    %c0_i32_0 = arith.constant 0 : i32
    %c0_i32_1 = arith.constant 0 : i32
    return %arg0, %arg1, %c0_i32, %c0_i32_0 : i32, i32, i32, i32
  }
}

module attributes {stable_mosaic.version = 11 : i64} {
  func.func @bn_lrelu_kernel(%arg0: i32, %arg1: memref<80x128xf32, #tpu.memory_space<vmem>>, %arg2: memref<1x128xf32, #tpu.memory_space<vmem>>, %arg3: memref<1x128xf32, #tpu.memory_space<vmem>>, %arg4: memref<80x128xf32, #tpu.memory_space<vmem>>) attributes {dimension_semantics = [#tpu.dimension_semantics<parallel>], iteration_bounds = array<i64: 1>, scalar_prefetch = 0 : i64, scratch_operands = 0 : i64, tpu.core_type = #tpu.core_type<tc>, window_params = [{transform_indices = @transform_0, window_bounds = array<i64: 80, 128>}, {pipeline_mode = #tpu.pipeline_mode<synchronous>, transform_indices = @transform_1, window_bounds = array<i64: 1, 128>}, {pipeline_mode = #tpu.pipeline_mode<synchronous>, transform_indices = @transform_2, window_bounds = array<i64: 1, 128>}, {transform_indices = @transform_3, window_bounds = array<i64: 80, 128>}]} {
    %c0 = arith.constant 0 : index
    %c0_0 = arith.constant 0 : index
    %0 = vector.load %arg1[%c0, %c0_0] : memref<80x128xf32, #tpu.memory_space<vmem>>, vector<80x128xf32>
    %c0_1 = arith.constant 0 : index
    %c0_2 = arith.constant 0 : index
    %1 = vector.load %arg2[%c0_1, %c0_2] : memref<1x128xf32, #tpu.memory_space<vmem>>, vector<1x128xf32>
    %2 = vector.broadcast %1 : vector<1x128xf32> to vector<80x128xf32>
    %3 = arith.mulf %0, %2 : vector<80x128xf32>
    %c0_3 = arith.constant 0 : index
    %c0_4 = arith.constant 0 : index
    %4 = vector.load %arg3[%c0_3, %c0_4] : memref<1x128xf32, #tpu.memory_space<vmem>>, vector<1x128xf32>
    %5 = vector.broadcast %4 : vector<1x128xf32> to vector<80x128xf32>
    %6 = arith.addf %3, %5 : vector<80x128xf32>
    %cst = arith.constant 0.000000e+00 : f32
    %7 = vector.broadcast %cst : f32 to vector<80x128xf32>
    %8 = arith.cmpf oge, %6, %7 : vector<80x128xf32>
    %cst_5 = arith.constant 2.000000e-01 : f32
    %9 = vector.broadcast %cst_5 : f32 to vector<80x128xf32>
    %10 = arith.mulf %9, %6 : vector<80x128xf32>
    %11 = arith.select %8, %6, %10 : vector<80x128xi1>, vector<80x128xf32>
    %c0_6 = arith.constant 0 : index
    %c0_7 = arith.constant 0 : index
    %12 = vector.load %arg4[%c0_6, %c0_7] : memref<80x128xf32, #tpu.memory_space<vmem>>, vector<80x128xf32>
    tpu.vector_store %arg4[%c0_6, %c0_7], %11 {strides = array<i32>} : memref<80x128xf32, #tpu.memory_space<vmem>>, vector<80x128xf32>,
    return
  }
  func.func @transform_0(%arg0: i32) -> (i32, i32) {
    %c0_i32 = arith.constant 0 : i32
    %c0_i32_0 = arith.constant 0 : i32
    return %arg0, %c0_i32 : i32, i32
  }
  func.func @transform_1(%arg0: i32) -> (i32, i32) {
    %c0_i32 = arith.constant 0 : i32
    %c0_i32_0 = arith.constant 0 : i32
    %c0_i32_1 = arith.constant 0 : i32
    return %c0_i32, %c0_i32_0 : i32, i32
  }
  func.func @transform_2(%arg0: i32) -> (i32, i32) {
    %c0_i32 = arith.constant 0 : i32
    %c0_i32_0 = arith.constant 0 : i32
    %c0_i32_1 = arith.constant 0 : i32
    return %c0_i32, %c0_i32_0 : i32, i32
  }
  func.func @transform_3(%arg0: i32) -> (i32, i32) {
    %c0_i32 = arith.constant 0 : i32
    %c0_i32_0 = arith.constant 0 : i32
    return %arg0, %c0_i32 : i32, i32
  }
}

</mosaic_0001>

<llo_original>
// kernel: tile.28
$region0: #{tile.28}
  #allocation0 [shape = 's32[1]{0}', space=sflag, size = 0x4, scoped, tag = 'scoped memory for tile.28']
  %s0 = inlined_call_operand.vmem [shape: f32[8], index: 0, kind: input, shape index: {}]
  %s1 = inlined_call_operand.vmem [shape: f32[16,8], index: 1, kind: output, shape index: {}]
  // Predicated region
  $region2: #{tile.28} parent=0 // pred_check
    _
  $region3: #{tile.28} parent=0 // pred_check_branch
    %3 = sbr.rel (0) target = $region5
  $region4: #{tile.28} parent=0 // pred_region
    _
  $region5: #{tile.28} parent=0 // pred_fallthru
    _
  %v4 = vld [vmem:[%s0] ss:$0 sm:$0xff]
  %5 = vst [vmem:[%s1] sm:$0xff] %v4
  %s6 = scalar_lea.vmem %s1, 8
  %7 = vst [vmem:[%s6] sm:$0xff] %v4

// kernel: tile.29
$region0: #{tile.29}
  %s0 = inlined_call_operand.vmem [shape: f32[16,8], index: 0, kind: input, shape index: {}]
  %s1 = inlined_call_operand.vmem [shape: f32[1,128], index: 1, kind: output, shape index: {}]
  $region1: #{tile.29} parent=0
    #allocation0 [shape = 'u8[4096]{0}', space=vmem, size = 0x1000, scoped, tag = 'scoped mem for output reshape']
    %v2 = vld [vmem:[%s0] sm:$0x1]
    %vm3 = vcmask 64512
    %4 = vst.msk [vmem:[#allocation0] sm:$0x1] %vm3, %v2
    %s5 = scalar_lea.vmem %s0, 15
    %v6 = vld [vmem:[%s5] sm:$0x1]
    %7 = vrot.lane.b32.xlu0 %v6, 120
    %v8 = vpop.permute.xlu0 %7
    %vm9 = vcmask 1048512
    %10 = vst.msk [vmem:[#allocation0] sm:$0x1] %vm9, %v8
    %s11 = scalar_lea.vmem %s0, 14
    %v12 = vld [vmem:[%s11] sm:$0x1]
    %13 = vrot.lane.b32.xlu0 %v12, 112
    %v14 = vpop.permute.xlu0 %13
    %vm15 = vcmask 982912
    %16 = vst.msk [vmem:[#allocation0] sm:$0x1] %vm15, %v14
    %s17 = scalar_lea.vmem %s0, 13
    %v18 = vld [vmem:[%s17] sm:$0x1]
    %19 = vrot.lane.b32.xlu0 %v18, 104
    %v20 = vpop.permute.xlu0 %19
    %vm21 = vcmask 917312
    %22 = vst.msk [vmem:[#allocation0] sm:$0x1] %vm21, %v20
    %s23 = scalar_lea.vmem %s0, 12
    %v24 = vld [vmem:[%s23] sm:$0x1]
    %25 = vrot.lane.b32.xlu0 %v24, 96
    %v26 = vpop.permute.xlu0 %25
    %vm27 = vcmask 851712
    %28 = vst.msk [vmem:[#allocation0] sm:$0x1] %vm27, %v26
    %s29 = scalar_lea.vmem %s0, 11
    %v30 = vld [vmem:[%s29] sm:$0x1]
    %31 = vrot.lane.b32.xlu0 %v30, 88
    %v32 = vpop.permute.xlu0 %31
    %vm33 = vcmask 786112
    %34 = vst.msk [vmem:[#allocation0] sm:$0x1] %vm33, %v32
    %s35 = scalar_lea.vmem %s0, 10
    %v36 = vld [vmem:[%s35] sm:$0x1]
    %37 = vrot.lane.b32.xlu0 %v36, 80
    %v38 = vpop.permute.xlu0 %37
    %vm39 = vcmask 720512
    %40 = vst.msk [vmem:[#allocation0] sm:$0x1] %vm39, %v38
    %s41 = scalar_lea.vmem %s0, 9
    %v42 = vld [vmem:[%s41] sm:$0x1]
    %43 = vrot.lane.b32.xlu0 %v42, 72
    %v44 = vpop.permute.xlu0 %43
    %vm45 = vcmask 654912
    %46 = vst.msk [vmem:[#allocation0] sm:$0x1] %vm45, %v44
    %s47 = scalar_lea.vmem %s0, 8
    %v48 = vld [vmem:[%s47] sm:$0x1]
    %49 = vrot.lane.b32.xlu0 %v48, 64
    %v50 = vpop.permute.xlu0 %49
    %vm51 = vcmask 589312
    %52 = vst.msk [vmem:[#allocation0] sm:$0x1] %vm51, %v50
    %s53 = scalar_lea.vmem %s0, 7
    %v54 = vld [vmem:[%s53] sm:$0x1]
    %55 = vrot.lane.b32.xlu0 %v54, 56
    %v56 = vpop.permute.xlu0 %55
    %vm57 = vcmask 523712
    %58 = vst.msk [vmem:[#allocation0] sm:$0x1] %vm57, %v56
    %s59 = scalar_lea.vmem %s0, 6
    %v60 = vld [vmem:[%s59] sm:$0x1]
    %61 = vrot.lane.b32.xlu0 %v60, 48
    %v62 = vpop.permute.xlu0 %61
    %vm63 = vcmask 458112
    %64 = vst.msk [vmem:[#allocation0] sm:$0x1] %vm63, %v62
    %s65 = scalar_lea.vmem %s0, 5
    %v66 = vld [vmem:[%s65] sm:$0x1]
    %67 = vrot.lane.b32.xlu0 %v66, 40
    %v68 = vpop.permute.xlu0 %67
    %vm69 = vcmask 392512
    %70 = vst.msk [vmem:[#allocation0] sm:$0x1] %vm69, %v68
    %s71 = scalar_lea.vmem %s0, 4
    %v72 = vld [vmem:[%s71] sm:$0x1]
    %73 = vrot.lane.b32.xlu0 %v72, 32
    %v74 = vpop.permute.xlu0 %73
    %vm75 = vcmask 326912
    %76 = vst.msk [vmem:[#allocation0] sm:$0x1] %vm75, %v74
    %s77 = scalar_lea.vmem %s0, 3
    %v78 = vld [vmem:[%s77] sm:$0x1]
    %79 = vrot.lane.b32.xlu0 %v78, 24
    %v80 = vpop.permute.xlu0 %79
    %vm81 = vcmask 261312
    %82 = vst.msk [vmem:[#allocation0] sm:$0x1] %vm81, %v80
    %s83 = scalar_lea.vmem %s0, 2
    %v84 = vld [vmem:[%s83] sm:$0x1]
    %85 = vrot.lane.b32.xlu0 %v84, 16
    %v86 = vpop.permute.xlu0 %85
    %vm87 = vcmask 195712
    %88 = vst.msk [vmem:[#allocation0] sm:$0x1] %vm87, %v86
    %s89 = scalar_lea.vmem %s0, 1
    %v90 = vld [vmem:[%s89] sm:$0x1]
    %91 = vrot.lane.b32.xlu0 %v90, 8
    %v92 = vpop.permute.xlu0 %91
    %vm93 = vcmask 130112
    %94 = vst.msk [vmem:[#allocation0] sm:$0x1] %vm93, %v92
    %s96 = ssub.s32 2, 1
    %v97 = vld [vmem:[#allocation0] sm:%s96]
    %s99 = ssub.s32 2, 1
    %100 = vst [vmem:[%s1] sm:%s99] %v97

// kernel: conv3d_bn_lrelu.3
$region0: #{conv3d_bn_lrelu.3}
  #allocation0 [shape = 'u32[]', space=smem, size = 0x4, offset = 0x4, fixed_abs, tag = 'smem constant byte address 0x4 - core index']
  #allocation1 [shape = 'u32[72,128]{1,0:T(1,128)}', space=vmem, size = 0x9000, scoped, tag = 'internal scratch']
  %s0 = inlined_call_operand.vmem [shape: f32[80,128], index: 0, kind: input, shape index: {}, may-alias: {0,3}]
  %s1 = inlined_call_operand.vmem [shape: f32[1,128], index: 1, kind: input, shape index: {}]
  %s2 = inlined_call_operand.vmem [shape: f32[1,128], index: 2, kind: input, shape index: {}]
  %s3 = inlined_call_operand.vmem [shape: f32[80,128], index: 3, kind: output, shape index: {}, may-alias: {0,3}]
  %s4 = sld [smem:[#allocation0]]
  $region22: #{conv3d_bn_lrelu.3} parent=0
    _
  %s6 = ssub.s32 1, %s4
  %s7 = scalar_select 0, %s6, %s4
  // Predicated region
  $region2: #{conv3d_bn_lrelu.3} parent=0 // pred_check
    _
  $region3: #{conv3d_bn_lrelu.3} parent=0 // pred_check_branch
    %9 = sbr.rel (0) target = $region5
  $region4: #{conv3d_bn_lrelu.3} parent=0 // pred_region
    _
  $region5: #{conv3d_bn_lrelu.3} parent=0 // pred_fallthru
    _
  // Predicated region
  $region6: #{conv3d_bn_lrelu.3} parent=0 // pred_check
    _
  $region7: #{conv3d_bn_lrelu.3} parent=0 // pred_check_branch
    %11 = sbr.rel (0) target = $region9
  $region8: #{conv3d_bn_lrelu.3} parent=0 // pred_region
    _
  $region9: #{conv3d_bn_lrelu.3} parent=0 // pred_fallthru
    _
  // Predicated region
  $region10: #{conv3d_bn_lrelu.3} parent=0 // pred_check
    _
  $region11: #{conv3d_bn_lrelu.3} parent=0 // pred_check_branch
    %13 = sbr.rel (0) target = $region13
  $region12: #{conv3d_bn_lrelu.3} parent=0 // pred_region
    _
  $region13: #{conv3d_bn_lrelu.3} parent=0 // pred_fallthru
    _
  %v14 = vld [vmem:[%s0] sm:$0xff]
  %v15 = vld [vmem:[%s0 + $0x8] sm:$0xff]
  %v16 = vld [vmem:[%s0 + $0x10] sm:$0xff]
  %v17 = vld [vmem:[%s0 + $0x18] sm:$0xff]
  %v18 = vld [vmem:[%s0 + $0x20] sm:$0xff]
  %v19 = vld [vmem:[%s0 + $0x28] sm:$0xff]
  %v20 = vld [vmem:[%s0 + $0x30] sm:$0xff]
  %v21 = vld [vmem:[%s0 + $0x38] sm:$0xff]
  %v22 = vld [vmem:[%s0 + $0x40] sm:$0xff]
  %v23 = vld [vmem:[%s0 + $0x48] sm:$0xff]
  %v24 = vld [vmem:[%s1] sm:$0x1]
  %v26 = vperm.slane %v24, 0
  %v28 = vmul.f32 %v14, %v26
  %v29 = vmul.f32 %v15, %v26
  %v30 = vmul.f32 %v16, %v26
  %v31 = vmul.f32 %v17, %v26
  %v32 = vmul.f32 %v18, %v26
  %v33 = vmul.f32 %v19, %v26
  %v34 = vmul.f32 %v20, %v26
  %v35 = vmul.f32 %v21, %v26
  %v36 = vmul.f32 %v22, %v26
  %v37 = vmul.f32 %v23, %v26
  %v38 = vld [vmem:[%s2] sm:$0x1]
  %v40 = vperm.slane %v38, 0
  %v42 = vadd.f32 %v28, %v40
  %v43 = vadd.f32 %v29, %v40
  %v44 = vadd.f32 %v30, %v40
  %v45 = vadd.f32 %v31, %v40
  %v46 = vadd.f32 %v32, %v40
  %v47 = vadd.f32 %v33, %v40
  %v48 = vadd.f32 %v34, %v40
  %v49 = vadd.f32 %v35, %v40
  %v50 = vadd.f32 %v36, %v40
  %v51 = vadd.f32 %v37, %v40
  %vm52 = vcmp.ge.f32.partialorder %v42, 0.0
  %vm53 = vcmp.ge.f32.partialorder %v43, 0.0
  %vm54 = vcmp.ge.f32.partialorder %v44, 0.0
  %vm55 = vcmp.ge.f32.partialorder %v45, 0.0
  %vm56 = vcmp.ge.f32.partialorder %v46, 0.0
  %vm57 = vcmp.ge.f32.partialorder %v47, 0.0
  %vm58 = vcmp.ge.f32.partialorder %v48, 0.0
  %vm59 = vcmp.ge.f32.partialorder %v49, 0.0
  %vm60 = vcmp.ge.f32.partialorder %v50, 0.0
  %vm61 = vcmp.ge.f32.partialorder %v51, 0.0
  %v62 = vmul.f32 %v42, 0.2
  %v63 = vmul.f32 %v43, 0.2
  %v64 = vmul.f32 %v44, 0.2
  %v65 = vmul.f32 %v45, 0.2
  %v66 = vmul.f32 %v46, 0.2
  %v67 = vmul.f32 %v47, 0.2
  %v68 = vmul.f32 %v48, 0.2
  %v69 = vmul.f32 %v49, 0.2
  %v70 = vmul.f32 %v50, 0.2
  %v71 = vmul.f32 %v51, 0.2
  %v72 = vsel %vm52, %v42, %v62
  %v73 = vsel %vm53, %v43, %v63
  %v74 = vsel %vm54, %v44, %v64
  %v75 = vsel %vm55, %v45, %v65
  %v76 = vsel %vm56, %v46, %v66
  %v77 = vsel %vm57, %v47, %v67
  %v78 = vsel %vm58, %v48, %v68
  %v79 = vsel %vm59, %v49, %v69
  %v80 = vsel %vm60, %v50, %v70
  %v81 = vsel %vm61, %v51, %v71
  %82 = vst [vmem:[%s3] sm:$0xff] %v72
  %83 = vst [vmem:[%s3 + $0x8] sm:$0xff] %v73
  %84 = vst [vmem:[%s3 + $0x10] sm:$0xff] %v74
  %85 = vst [vmem:[%s3 + $0x18] sm:$0xff] %v75
  %86 = vst [vmem:[%s3 + $0x20] sm:$0xff] %v76
  %87 = vst [vmem:[%s3 + $0x28] sm:$0xff] %v77
  %88 = vst [vmem:[%s3 + $0x30] sm:$0xff] %v78
  %89 = vst [vmem:[%s3 + $0x38] sm:$0xff] %v79
  %90 = vst [vmem:[%s3 + $0x40] sm:$0xff] %v80
  %91 = vst [vmem:[%s3 + $0x48] sm:$0xff] %v81
  // Predicated region
  $region14: #{conv3d_bn_lrelu.3} parent=0 // pred_check
    _
  $region15: #{conv3d_bn_lrelu.3} parent=0 // pred_check_branch
    %93 = sbr.rel (0) target = $region17
  $region16: #{conv3d_bn_lrelu.3} parent=0 // pred_region
    _
  $region17: #{conv3d_bn_lrelu.3} parent=0 // pred_fallthru
    _
  // Predicated region
  $region18: #{conv3d_bn_lrelu.3} parent=0 // pred_check
    _
  $region19: #{conv3d_bn_lrelu.3} parent=0 // pred_check_branch
    %95 = sbr.rel (0) target = $region21
  $region20: #{conv3d_bn_lrelu.3} parent=0 // pred_region
    _
  $region21: #{conv3d_bn_lrelu.3} parent=0 // pred_fallthru
    _

// kernel: conv3d_bn_lrelu.2
$region0: #{conv3d_bn_lrelu.2}
  #allocation0 [shape = 'u32[]', space=smem, size = 0x4, offset = 0x4, fixed_abs, tag = 'smem constant byte address 0x4 - core index']
  #allocation1 [shape = 'u32[72,128]{1,0:T(1,128)}', space=vmem, size = 0x9000, scoped, tag = 'internal scratch']
  %s0 = inlined_call_operand.vmem [shape: bf16[2,10,110,4], index: 0, kind: input, shape index: {}, may-alias: {0,1,2}]
  %s1 = inlined_call_operand.vmem [shape: bf16[2,10,110,4], index: 1, kind: input, shape index: {}, may-alias: {0,1,2}]
  %s2 = inlined_call_operand.vmem [shape: bf16[2,10,110,4], index: 2, kind: input, shape index: {}, may-alias: {0,1,2}]
  %s3 = inlined_call_operand.vmem [shape: bf16[3,9,4,8], index: 3, kind: input, shape index: {}]
  %s4 = inlined_call_operand.vmem [shape: f32[80,1], index: 4, kind: input, shape index: {}]
  %s5 = inlined_call_operand.vmem [shape: f32[2,8,80,8], index: 5, kind: output, shape index: {0}]
  %s6 = inlined_call_operand.vmem [shape: f32[2,8,1,8], index: 6, kind: output, shape index: {1}]
  %s7 = inlined_call_operand.vmem [shape: f32[2,8,1,8], index: 7, kind: output, shape index: {2}]
  %8 = xla_tuple %s5, %s6, %s7
  %s9 = sld [smem:[#allocation0]]
  $region69: #{conv3d_bn_lrelu.2} parent=0
    _
  %s11 = ssub.s32 1, %s9
  %s12 = scalar_select 0, %s11, %s9
  loop: start=0, step=1, limit=18
  $region2: #{conv3d_bn_lrelu.2} parent=0 // loop_pre_header
    _
  $region3: #{conv3d_bn_lrelu.2} parent=0 // loop_header
    %s14 = sphi 0, %s18
    %p15 = scmp.ge.s32.totalorder %s14, 18
    %s21 = sphi 0, %s33
    %s22 = sphi 0, %s29
    %s23 = sphi 0, %s21
    %s24 = sphi 0, %s22
    %s25 = sphi 0, %s23
    %s26 = sphi 0, %s24
    %s38 = sphi 0, %s40
    %s41 = sphi 0, %s38
    %s42 = sphi 0, %s41
    %s58 = sphi 0, %s42
    %s68 = sphi 0, %s70
    %s71 = sphi 0, %s68
    %s72 = sphi 0, %s71
    %s88 = sphi 0, %s72
    %s98 = sphi 0, %s100
    %s101 = sphi 0, %s98
    %s102 = sphi 0, %s101
    %s118 = sphi 0, %s102
    %s122 = sphi 0, %s122
    %s124 = sphi 0, %s122
    %s125 = sphi 0, %s124
    %s139 = sphi 0, %s125
    %s143 = sphi 0, %s143
    %s145 = sphi 0, %s143
    %s146 = sphi 0, %s145
    %s160 = sphi 0, %s146
    %s168 = sphi 0, %s170
    %s171 = sphi 0, %s168
    %s172 = sphi 0, %s171
    %s188 = sphi 0, %s172
    %s196 = sphi 0, %s198
    %s199 = sphi 0, %s196
    %s200 = sphi 0, %s199
    %s216 = sphi 0, %s200
    %s224 = sphi 0, %s226
    %s227 = sphi 0, %s224
    %s228 = sphi 0, %s227
    %s244 = sphi 0, %s228
  $region4: #{conv3d_bn_lrelu.2} parent=0 // loop_header_branch
    %17 = sbr.rel (%p15) target = $region8
  $region5: #{conv3d_bn_lrelu.2} parent=0 // loop_body
    %s19 = ssub.s32 %s14, 1
    %s20 = ssub.s32 %s14, 2
    %s27 = sadd.s32 1, %s22
    %p28 = scmp.ge.s32.totalorder %s27, 8
    %s29 = scalar_select %p28, 0, %s27
    %s30 = sadd.s32 1, %s21
    %s31 = scalar_select %p28, %s30, %s21
    %p32 = scmp.ge.s32.totalorder %s31, 2
    %s33 = scalar_select %p32, 0, %s31
    %s34 = ssub.s32 %s21, %s33
    %s35 = ssub.s32 %s22, %s29
    %s36 = sor.u32 %s34, %s35
    %p37 = scmp.eq.s32.totalorder %s36, 0
    %s39 = sadd.s32 %s38, 1
    %s40 = scalar_select %p37, %s38, %s39
    %p43 = pneg %p37
    %p44 = scmp.eq.s32.totalorder %s14, 15
    %p45 = por %p43, %p44
    %p46 = scmp.ne.s32.totalorder %s38, %s41
    %p47 = scmp.eq.s32.totalorder %s14, 0
    %p48 = por %p46, %p47
    %p49 = scmp.ne.s32.totalorder %s38, %s41
    %p50 = scmp.eq.s32.totalorder %s19, 15
    %p51 = por %p49, %p50
    %p52 = scmp.ne.s32.totalorder %s41, %s42
    %p53 = scmp.eq.s32.totalorder %s19, 0
    %p54 = por %p52, %p53
    %p55 = scmp.ne.s32.totalorder %s41, %s42
    %p56 = scmp.eq.s32.totalorder %s20, 15
    %p57 = por %p55, %p56
    %p59 = scmp.ne.s32.totalorder %s42, %s58
    %p60 = scmp.eq.s32.totalorder %s20, 0
    %p61 = por %p59, %p60
    %s62 = sadd.s32 %s22, 1
    %s63 = sadd.s32 %s29, 1
    %s64 = ssub.s32 %s21, %s33
    %s65 = ssub.s32 %s62, %s63
    %s66 = sor.u32 %s64, %s65
    %p67 = scmp.eq.s32.totalorder %s66, 0
    %s69 = sadd.s32 %s68, 1
    %s70 = scalar_select %p67, %s68, %s69
    %p73 = pneg %p67
    %p74 = scmp.eq.s32.totalorder %s14, 15
    %p75 = por %p73, %p74
    %p76 = scmp.ne.s32.totalorder %s68, %s71
    %p77 = scmp.eq.s32.totalorder %s14, 0
    %p78 = por %p76, %p77
    %p79 = scmp.ne.s32.totalorder %s68, %s71
    %p80 = scmp.eq.s32.totalorder %s19, 15
    %p81 = por %p79, %p80
    %p82 = scmp.ne.s32.totalorder %s71, %s72
    %p83 = scmp.eq.s32.totalorder %s19, 0
    %p84 = por %p82, %p83
    %p85 = scmp.ne.s32.totalorder %s71, %s72
    %p86 = scmp.eq.s32.totalorder %s20, 15
    %p87 = por %p85, %p86
    %p89 = scmp.ne.s32.totalorder %s72, %s88
    %p90 = scmp.eq.s32.totalorder %s20, 0
    %p91 = por %p89, %p90
    %s92 = sadd.s32 %s22, 2
    %s93 = sadd.s32 %s29, 2
    %s94 = ssub.s32 %s21, %s33
    %s95 = ssub.s32 %s92, %s93
    %s96 = sor.u32 %s94, %s95
    %p97 = scmp.eq.s32.totalorder %s96, 0
    %s99 = sadd.s32 %s98, 1
    %s100 = scalar_select %p97, %s98, %s99
    %p103 = pneg %p97
    %p104 = scmp.eq.s32.totalorder %s14, 15
    %p105 = por %p103, %p104
    %p106 = scmp.ne.s32.totalorder %s98, %s101
    %p107 = scmp.eq.s32.totalorder %s14, 0
    %p108 = por %p106, %p107
    %p109 = scmp.ne.s32.totalorder %s98, %s101
    %p110 = scmp.eq.s32.totalorder %s19, 15
    %p111 = por %p109, %p110
    %p112 = scmp.ne.s32.totalorder %s101, %s102
    %p113 = scmp.eq.s32.totalorder %s19, 0
    %p114 = por %p112, %p113
    %p115 = scmp.ne.s32.totalorder %s101, %s102
    %p116 = scmp.eq.s32.totalorder %s20, 15
    %p117 = por %p115, %p116
    %p119 = scmp.ne.s32.totalorder %s102, %s118
    %p120 = scmp.eq.s32.totalorder %s20, 0
    %p121 = por %p119, %p120
    %s123 = sadd.s32 %s122, 1
    %p126 = scmp.eq.s32.totalorder %s14, 15
    %p127 = scmp.ne.s32.totalorder %s122, %s124
    %p128 = scmp.eq.s32.totalorder %s14, 0
    %p129 = por %p127, %p128
    %p130 = scmp.ne.s32.totalorder %s122, %s124
    %p131 = scmp.eq.s32.totalorder %s19, 15
    %p132 = por %p130, %p131
    %p133 = scmp.ne.s32.totalorder %s124, %s125
    %p134 = scmp.eq.s32.totalorder %s19, 0
    %p135 = por %p133, %p134
    %p136 = scmp.ne.s32.totalorder %s124, %s125
    %p137 = scmp.eq.s32.totalorder %s20, 15
    %p138 = por %p136, %p137
    %p140 = scmp.ne.s32.totalorder %s125, %s139
    %p141 = scmp.eq.s32.totalorder %s20, 0
    %p142 = por %p140, %p141
    %s144 = sadd.s32 %s143, 1
    %p147 = scmp.eq.s32.totalorder %s14, 15
    %p148 = scmp.ne.s32.totalorder %s143, %s145
    %p149 = scmp.eq.s32.totalorder %s14, 0
    %p150 = por %p148, %p149
    %p151 = scmp.ne.s32.totalorder %s143, %s145
    %p152 = scmp.eq.s32.totalorder %s19, 15
    %p153 = por %p151, %p152
    %p154 = scmp.ne.s32.totalorder %s145, %s146
    %p155 = scmp.eq.s32.totalorder %s19, 0
    %p156 = por %p154, %p155
    %p157 = scmp.ne.s32.totalorder %s145, %s146
    %p158 = scmp.eq.s32.totalorder %s20, 15
    %p159 = por %p157, %p158
    %p161 = scmp.ne.s32.totalorder %s146, %s160
    %p162 = scmp.eq.s32.totalorder %s20, 0
    %p163 = por %p161, %p162
    %s164 = ssub.s32 %s21, %s33
    %s165 = ssub.s32 %s22, %s29
    %s166 = sor.u32 %s164, %s165
    %p167 = scmp.eq.s32.totalorder %s166, 0
    %s169 = sadd.s32 %s168, 1
    %s170 = scalar_select %p167, %s168, %s169
    %p173 = pneg %p167
    %p174 = scmp.eq.s32.totalorder %s14, 15
    %p175 = por %p173, %p174
    %p176 = scmp.ne.s32.totalorder %s168, %s171
    %p177 = scmp.eq.s32.totalorder %s14, 0
    %p178 = por %p176, %p177
    %p179 = scmp.ne.s32.totalorder %s168, %s171
    %p180 = scmp.eq.s32.totalorder %s19, 15
    %p181 = por %p179, %p180
    %p182 = scmp.ne.s32.totalorder %s171, %s172
    %p183 = scmp.eq.s32.totalorder %s19, 0
    %p184 = por %p182, %p183
    %p185 = scmp.ne.s32.totalorder %s171, %s172
    %p186 = scmp.eq.s32.totalorder %s20, 15
    %p187 = por %p185, %p186
    %p189 = scmp.ne.s32.totalorder %s172, %s188
    %p190 = scmp.eq.s32.totalorder %s20, 0
    %p191 = por %p189, %p190
    %s192 = ssub.s32 %s21, %s33
    %s193 = ssub.s32 %s22, %s29
    %s194 = sor.u32 %s192, %s193
    %p195 = scmp.eq.s32.totalorder %s194, 0
    %s197 = sadd.s32 %s196, 1
    %s198 = scalar_select %p195, %s196, %s197
    %p201 = pneg %p195
    %p202 = scmp.eq.s32.totalorder %s14, 15
    %p203 = por %p201, %p202
    %p204 = scmp.ne.s32.totalorder %s196, %s199
    %p205 = scmp.eq.s32.totalorder %s14, 0
    %p206 = por %p204, %p205
    %p207 = scmp.ne.s32.totalorder %s196, %s199
    %p208 = scmp.eq.s32.totalorder %s19, 15
    %p209 = por %p207, %p208
    %p210 = scmp.ne.s32.totalorder %s199, %s200
    %p211 = scmp.eq.s32.totalorder %s19, 0
    %p212 = por %p210, %p211
    %p213 = scmp.ne.s32.totalorder %s199, %s200
    %p214 = scmp.eq.s32.totalorder %s20, 15
    %p215 = por %p213, %p214
    %p217 = scmp.ne.s32.totalorder %s200, %s216
    %p218 = scmp.eq.s32.totalorder %s20, 0
    %p219 = por %p217, %p218
    %s220 = ssub.s32 %s21, %s33
    %s221 = ssub.s32 %s22, %s29
    %s222 = sor.u32 %s220, %s221
    %p223 = scmp.eq.s32.totalorder %s222, 0
    %s225 = sadd.s32 %s224, 1
    %s226 = scalar_select %p223, %s224, %s225
    %p229 = pneg %p223
    %p230 = scmp.eq.s32.totalorder %s14, 15
    %p231 = por %p229, %p230
    %p232 = scmp.ne.s32.totalorder %s224, %s227
    %p233 = scmp.eq.s32.totalorder %s14, 0
    %p234 = por %p232, %p233
    %p235 = scmp.ne.s32.totalorder %s224, %s227
    %p236 = scmp.eq.s32.totalorder %s19, 15
    %p237 = por %p235, %p236
    %p238 = scmp.ne.s32.totalorder %s227, %s228
    %p239 = scmp.eq.s32.totalorder %s19, 0
    %p240 = por %p238, %p239
    %p241 = scmp.ne.s32.totalorder %s227, %s228
    %p242 = scmp.eq.s32.totalorder %s20, 15
    %p243 = por %p241, %p242
    %p245 = scmp.ne.s32.totalorder %s228, %s244
    %p246 = scmp.eq.s32.totalorder %s20, 0
    %p247 = por %p245, %p246
    %p248 = scmp.le.s32.totalorder 1, %s14
    %p249 = scmp.lt.s32.totalorder %s14, 17
    %p250 = pnand %p248, %p249
    %p251 = pneg %p250
    // Predicated region
    $region9: #{conv3d_bn_lrelu.2} parent=5 // pred_check
      _
    $region10: #{conv3d_bn_lrelu.2} parent=5 // pred_check_branch
      %253 = sbr.rel (%p250) target = $region12
    $region11: #{conv3d_bn_lrelu.2} parent=5 // pred_region
      %s254 = ssub.s32 %s14, 1
      // Predicated region
      $region13: #{conv3d_bn_lrelu.2} parent=11 // pred_check
        %p255 = pneg %p135
      $region14: #{conv3d_bn_lrelu.2} parent=11 // pred_check_branch
        %257 = sbr.rel (%p255) target = $region16
      $region15: #{conv3d_bn_lrelu.2} parent=11 // pred_region
        _
      $region16: #{conv3d_bn_lrelu.2} parent=11 // pred_fallthru
        _
      // Predicated region
      $region17: #{conv3d_bn_lrelu.2} parent=11 // pred_check
        %p258 = pneg %p156
      $region18: #{conv3d_bn_lrelu.2} parent=11 // pred_check_branch
        %260 = sbr.rel (%p258) target = $region20
      $region19: #{conv3d_bn_lrelu.2} parent=11 // pred_region
        _
      $region20: #{conv3d_bn_lrelu.2} parent=11 // pred_fallthru
        _
    $region12: #{conv3d_bn_lrelu.2} parent=5 // pred_fallthru
      _
    %p261 = scmp.lt.s32.totalorder %s14, 16
    // Predicated region
    $region21: #{conv3d_bn_lrelu.2} parent=5 // pred_check
      %p262 = pneg %p261
    $region22: #{conv3d_bn_lrelu.2} parent=5 // pred_check_branch
      %264 = sbr.rel (%p262) target = $region24
    $region23: #{conv3d_bn_lrelu.2} parent=5 // pred_region
      // Predicated region
      $region25: #{conv3d_bn_lrelu.2} parent=23 // pred_check
        %p265 = pneg %p48
      $region26: #{conv3d_bn_lrelu.2} parent=23 // pred_check_branch
        %267 = sbr.rel (%p265) target = $region28
      $region27: #{conv3d_bn_lrelu.2} parent=23 // pred_region
        %p268 = scmp.lt.s32.totalorder %s21, 1
        %s269 = scalar_select %p268, %s21, 1
        %p270 = scmp.lt.s32.totalorder %s22, 9
        %s271 = scalar_select %p270, %s22, 9
        %s272 = smul.addr %s271, 14
        %s273 = smul.addr %s269, 140
        %s274 = sadd.s32 %s272, %s273
        %s275 = smul.addr %s274, 4
        %s276 = scalar_lea.vmem %s0, %s275
      $region28: #{conv3d_bn_lrelu.2} parent=23 // pred_fallthru
        _
      // Predicated region
      $region29: #{conv3d_bn_lrelu.2} parent=23 // pred_check
        %p277 = pneg %p78
      $region30: #{conv3d_bn_lrelu.2} parent=23 // pred_check_branch
        %279 = sbr.rel (%p277) target = $region32
      $region31: #{conv3d_bn_lrelu.2} parent=23 // pred_region
        %s280 = sadd.s32 %s22, 1
        %p281 = scmp.lt.s32.totalorder %s21, 1
        %s282 = scalar_select %p281, %s21, 1
        %p283 = scmp.lt.s32.totalorder %s280, 9
        %s284 = scalar_select %p283, %s280, 9
        %s285 = smul.addr %s284, 14
        %s286 = smul.addr %s282, 140
        %s287 = sadd.s32 %s285, %s286
        %s288 = smul.addr %s287, 4
        %s289 = scalar_lea.vmem %s1, %s288
        %s290 = sadd.s32 %s22, 1
      $region32: #{conv3d_bn_lrelu.2} parent=23 // pred_fallthru
        _
      // Predicated region
      $region33: #{conv3d_bn_lrelu.2} parent=23 // pred_check
        %p291 = pneg %p108
      $region34: #{conv3d_bn_lrelu.2} parent=23 // pred_check_branch
        %293 = sbr.rel (%p291) target = $region36
      $region35: #{conv3d_bn_lrelu.2} parent=23 // pred_region
        %s294 = sadd.s32 %s22, 2
        %p295 = scmp.lt.s32.totalorder %s21, 1
        %s296 = scalar_select %p295, %s21, 1
        %p297 = scmp.lt.s32.totalorder %s294, 9
        %s298 = scalar_select %p297, %s294, 9
        %s299 = smul.addr %s298, 14
        %s300 = smul.addr %s296, 140
        %s301 = sadd.s32 %s299, %s300
        %s302 = smul.addr %s301, 4
        %s303 = scalar_lea.vmem %s2, %s302
        %s304 = sadd.s32 %s22, 2
      $region36: #{conv3d_bn_lrelu.2} parent=23 // pred_fallthru
        _
    $region24: #{conv3d_bn_lrelu.2} parent=5 // pred_fallthru
      _
    %p305 = scmp.le.s32.totalorder 1, %s14
    %p306 = scmp.lt.s32.totalorder %s14, 17
    %p307 = pnand %p305, %p306
    %p308 = pneg %p307
    // Predicated region
    $region37: #{conv3d_bn_lrelu.2} parent=5 // pred_check
      _
    $region38: #{conv3d_bn_lrelu.2} parent=5 // pred_check_branch
      %310 = sbr.rel (%p307) target = $region40
    $region39: #{conv3d_bn_lrelu.2} parent=5 // pred_region
      %s311 = ssub.s32 %s14, 1
      %p312 = scmp.lt.s32.totalorder %s23, 1
      %s313 = scalar_select %p312, %s23, 1
      %p314 = scmp.lt.s32.totalorder %s24, 9
      %s315 = scalar_select %p314, %s24, 9
      %s316 = smul.addr %s315, 14
      %s317 = smul.addr %s313, 140
      %s318 = sadd.s32 %s316, %s317
      %s319 = smul.addr %s318, 4
      %s320 = scalar_lea.vmem %s0, %s319
      %p321 = pneg %p54
      %p322 = pneg %p51
      %s323 = sadd.s32 %s24, 1
      %p324 = scmp.lt.s32.totalorder %s23, 1
      %s325 = scalar_select %p324, %s23, 1
      %p326 = scmp.lt.s32.totalorder %s323, 9
      %s327 = scalar_select %p326, %s323, 9
      %s328 = smul.addr %s327, 14
      %s329 = smul.addr %s325, 140
      %s330 = sadd.s32 %s328, %s329
      %s331 = smul.addr %s330, 4
      %s332 = scalar_lea.vmem %s1, %s331
      %p333 = pneg %p84
      %p334 = pneg %p81
      %s335 = sadd.s32 %s24, 2
      %p336 = scmp.lt.s32.totalorder %s23, 1
      %s337 = scalar_select %p336, %s23, 1
      %p338 = scmp.lt.s32.totalorder %s335, 9
      %s339 = scalar_select %p338, %s335, 9
      %s340 = smul.addr %s339, 14
      %s341 = smul.addr %s337, 140
      %s342 = sadd.s32 %s340, %s341
      %s343 = smul.addr %s342, 4
      %s344 = scalar_lea.vmem %s2, %s343
      %p345 = pneg %p114
      %p346 = pneg %p111
      %p347 = pneg %p135
      %p348 = pneg %p132
      %p349 = pneg %p156
      %p350 = pneg %p153
      %p351 = pneg %p184
      %p352 = pneg %p181
      %p353 = scmp.lt.s32.totalorder %s23, 1
      %s354 = scalar_select %p353, %s23, 1
      %p355 = scmp.lt.s32.totalorder %s24, 7
      %s356 = scalar_select %p355, %s24, 7
      %s357 = smul.addr %s356, 10
      %s358 = smul.addr %s354, 80
      %s359 = sadd.s32 %s357, %s358
      %s360 = smul.addr %s359, 8
      %s361 = scalar_lea.vmem %s5, %s360
      %p362 = pneg %p212
      %p363 = pneg %p209
      %p364 = scmp.lt.s32.totalorder %s23, 1
      %s365 = scalar_select %p364, %s23, 1
      %p366 = scmp.lt.s32.totalorder %s24, 7
      %s367 = scalar_select %p366, %s24, 7
      %s368 = smul.addr %s365, 8
      %s369 = sadd.s32 %s367, %s368
      %s370 = scalar_lea.vmem %s6, %s369
      %p371 = pneg %p240
      %p372 = pneg %p237
      %p373 = scmp.lt.s32.totalorder %s23, 1
      %s374 = scalar_select %p373, %s23, 1
      %p375 = scmp.lt.s32.totalorder %s24, 7
      %s376 = scalar_select %p375, %s24, 7
      %s377 = smul.addr %s374, 8
      %s378 = sadd.s32 %s376, %s377
      %s379 = scalar_lea.vmem %s7, %s378
      %p380 = scmp.lt.s32.totalorder %s23, 1
      %s381 = scalar_select %p380, %s23, 1
      %p382 = scmp.lt.s32.totalorder %s24, 9
      %s383 = scalar_select %p382, %s24, 9
      %s384 = smul.addr %s383, 14
      %s385 = smul.addr %s381, 140
      %s386 = sadd.s32 %s384, %s385
      %s387 = smul.addr %s386, 4
      %s388 = scalar_lea.vmem %s0, %s387
      %s389 = sadd.s32 %s24, 1
      %p390 = scmp.lt.s32.totalorder %s23, 1
      %s391 = scalar_select %p390, %s23, 1
      %p392 = scmp.lt.s32.totalorder %s389, 9
      %s393 = scalar_select %p392, %s389, 9
      %s394 = smul.addr %s393, 14
      %s395 = smul.addr %s391, 140
      %s396 = sadd.s32 %s394, %s395
      %s397 = smul.addr %s396, 4
      %s398 = scalar_lea.vmem %s1, %s397
      %s399 = sadd.s32 %s24, 1
      %s400 = sadd.s32 %s24, 2
      %p401 = scmp.lt.s32.totalorder %s23, 1
      %s402 = scalar_select %p401, %s23, 1
      %p403 = scmp.lt.s32.totalorder %s400, 9
      %s404 = scalar_select %p403, %s400, 9
      %s405 = smul.addr %s404, 14
      %s406 = smul.addr %s402, 140
      %s407 = sadd.s32 %s405, %s406
      %s408 = smul.addr %s407, 4
      %s409 = scalar_lea.vmem %s2, %s408
      %s410 = sadd.s32 %s24, 2
      %p411 = scmp.lt.s32.totalorder %s23, 1
      %s412 = scalar_select %p411, %s23, 1
      %p413 = scmp.lt.s32.totalorder %s24, 7
      %s414 = scalar_select %p413, %s24, 7
      %s415 = smul.addr %s414, 10
      %s416 = smul.addr %s412, 80
      %s417 = sadd.s32 %s415, %s416
      %s418 = smul.addr %s417, 8
      %s419 = scalar_lea.vmem %s5, %s418
      %p420 = scmp.lt.s32.totalorder %s23, 1
      %s421 = scalar_select %p420, %s23, 1
      %p422 = scmp.lt.s32.totalorder %s24, 7
      %s423 = scalar_select %p422, %s24, 7
      %s424 = smul.addr %s421, 8
      %s425 = sadd.s32 %s423, %s424
      %s426 = scalar_lea.vmem %s6, %s425
      %p427 = scmp.lt.s32.totalorder %s23, 1
      %s428 = scalar_select %p427, %s23, 1
      %p429 = scmp.lt.s32.totalorder %s24, 7
      %s430 = scalar_select %p429, %s24, 7
      %s431 = smul.addr %s428, 8
      %s432 = sadd.s32 %s430, %s431
      %s433 = scalar_lea.vmem %s7, %s432
      %v435 = vld [vmem:[%s388] sm:$0xf]
      %v436 = vld [vmem:[%s388 + $0x4] sm:$0xf]
      %v437 = vld [vmem:[%s388 + $0x8] sm:$0xf]
      %v438 = vld [vmem:[%s388 + $0xc] sm:$0xf]
      %v439 = vld [vmem:[%s388 + $0x10] sm:$0xf]
      %v440 = vld [vmem:[%s388 + $0x14] sm:$0xf]
      %v441 = vld [vmem:[%s388 + $0x18] sm:$0xf]
      %v442 = vld [vmem:[%s388 + $0x1c] sm:$0xf]
      %v443 = vld [vmem:[%s388 + $0x20] sm:$0xf]
      %v444 = vld [vmem:[%s388 + $0x24] sm:$0xf]
      %v445 = vld [vmem:[%s3] sm:$0x3]
      %v446 = vld [vmem:[%s388 + $0x28] sm:$0x1]
      %s447 = scalar_lea.vmem %s3, 2
      %v448 = vld [vmem:[%s447] sm:$0x3]
      %v460 = vunpack.c.l.b16 %v435
      %v461 = vunpack.c.l.b16 %v436
      %v462 = vunpack.c.l.b16 %v437
      %v463 = vunpack.c.l.b16 %v438
      %v464 = vunpack.c.l.b16 %v439
      %v465 = vunpack.c.l.b16 %v440
      %v466 = vunpack.c.l.b16 %v441
      %v467 = vunpack.c.l.b16 %v442
      %v468 = vunpack.c.l.b16 %v443
      %v469 = vunpack.c.l.b16 %v444
      %v470 = vunpack.c.l.b16 %v446
      %v471 = vpack.c.b16 %v461, %v460
      %v472 = vpack.c.b16 %v463, %v462
      %v473 = vpack.c.b16 %v465, %v464
      %v474 = vpack.c.b16 %v467, %v466
      %v475 = vpack.c.b16 %v469, %v468
      %v476 = vpack.c.b16 %v470, %v470
      %vm477 = vsmask.f32 7424
      %v479 = vshrl.u32 %v471, 16
      %v481 = vshll.u32 %v471, 16
      %v483 = vrot.slane %v481, 1
      %v484 = vor.u32 %v479, %v483
      %v486 = vshll.u32 %v472, 16
      %v488 = vrot.slane %v486, 1
      %v489 = vsel %vm477, %v484, %v488
      %v490 = vshrl.u32 %v472, 16
      %v492 = vor.u32 %v490, %v488
      %v494 = vshll.u32 %v473, 16
      %v496 = vrot.slane %v494, 1
      %v497 = vsel %vm477, %v492, %v496
      %v498 = vshrl.u32 %v473, 16
      %v500 = vor.u32 %v498, %v496
      %v502 = vshll.u32 %v474, 16
      %v504 = vrot.slane %v502, 1
      %v505 = vsel %vm477, %v500, %v504
      %v506 = vshrl.u32 %v474, 16
      %v508 = vor.u32 %v506, %v504
      %v510 = vshll.u32 %v475, 16
      %v512 = vrot.slane %v510, 1
      %v513 = vsel %vm477, %v508, %v512
      %v514 = vshrl.u32 %v475, 16
      %v516 = vor.u32 %v514, %v512
      %v518 = vshll.u32 %v476, 16
      %v520 = vrot.slane %v518, 1
      %v521 = vsel %vm477, %v516, %v520
      %vm522 = vcmask 31744
      %v524 = vsel %vm522, %v489, 0
      %v527 = vsel %vm522, %v497, 0
      %v530 = vsel %vm522, %v505, 0
      %v533 = vsel %vm522, %v513, 0
      %v536 = vsel %vm522, %v521, 0
      %vm538 = vcmask 1041408
      %v540 = vsel %vm538, %v448, 0
      %542 = vmatpush.bf16.msra.mxu0 0
      %543 = vmatpush.bf16.msra.mxu0 0
      %544 = vmatpush.bf16.msra.mxu0 0
      %545 = vmatpush.bf16.msra.mxu0 0
      %546 = vmatpush.bf16.msra.mxu0 0
      %547 = vmatpush.bf16.msra.mxu0 0
      %548 = vmatpush.bf16.msra.mxu0 0
      %549 = vmatpush.bf16.msra.mxu0 %v540
      %550 = vmatmul.bf16.gmra.mxu0 %v524
      %v551 = vpop.f32.mrf.mxu0
      %v552 = vadd.f32 0.0, %v551
      %v553 = vpop.f32.mrf.mxu0
      %v554 = vadd.f32 0.0, %v553
      %555 = vmatmul.bf16.gmra.mxu0 %v527
      %v556 = vpop.f32.mrf.mxu0
      %v557 = vadd.f32 0.0, %v556
      %v558 = vpop.f32.mrf.mxu0
      %v559 = vadd.f32 0.0, %v558
      %560 = vmatmul.bf16.gmra.mxu0 %v530
      %v561 = vpop.f32.mrf.mxu0
      %v562 = vadd.f32 0.0, %v561
      %v563 = vpop.f32.mrf.mxu0
      %v564 = vadd.f32 0.0, %v563
      %565 = vmatmul.bf16.gmra.mxu0 %v533
      %v566 = vpop.f32.mrf.mxu0
      %v567 = vadd.f32 0.0, %v566
      %v568 = vpop.f32.mrf.mxu0
      %v569 = vadd.f32 0.0, %v568
      %570 = vmatmul.bf16.gmra.mxu0 %v536
      %v571 = vpop.f32.mrf.mxu0
      %v572 = vadd.f32 0.0, %v571
      %v573 = vpop.f32.mrf.mxu0
      %v574 = vadd.f32 0.0, %v573
      %575 = vdwg.mxu0
      %v576 = vsel %vm522, %v471, 0
      %v578 = vsel %vm522, %v472, 0
      %v580 = vsel %vm522, %v473, 0
      %v582 = vsel %vm522, %v474, 0
      %v584 = vsel %vm522, %v475, 0
      %v587 = vsel %vm538, %v445, 0
      %589 = vmatpush.bf16.msra.mxu0 0
      %590 = vmatpush.bf16.msra.mxu0 0
      %591 = vmatpush.bf16.msra.mxu0 0
      %592 = vmatpush.bf16.msra.mxu0 0
      %593 = vmatpush.bf16.msra.mxu0 0
      %594 = vmatpush.bf16.msra.mxu0 0
      %595 = vmatpush.bf16.msra.mxu0 0
      %596 = vmatpush.bf16.msra.mxu0 %v587
      %597 = vmatmul.bf16.gmra.mxu0 %v576
      %v598 = vpop.f32.mrf.mxu0
      %v599 = vadd.f32 %v552, %v598
      %v600 = vpop.f32.mrf.mxu0
      %v601 = vadd.f32 %v554, %v600
      %602 = vmatmul.bf16.gmra.mxu0 %v578
      %v603 = vpop.f32.mrf.mxu0
      %v604 = vadd.f32 %v557, %v603
      %v605 = vpop.f32.mrf.mxu0
      %v606 = vadd.f32 %v559, %v605
      %607 = vmatmul.bf16.gmra.mxu0 %v580
      %v608 = vpop.f32.mrf.mxu0
      %v609 = vadd.f32 %v562, %v608
      %v610 = vpop.f32.mrf.mxu0
      %v611 = vadd.f32 %v564, %v610
      %612 = vmatmul.bf16.gmra.mxu0 %v582
      %v613 = vpop.f32.mrf.mxu0
      %v614 = vadd.f32 %v567, %v613
      %v615 = vpop.f32.mrf.mxu0
      %v616 = vadd.f32 %v569, %v615
      %617 = vmatmul.bf16.gmra.mxu0 %v584
      %v618 = vpop.f32.mrf.mxu0
      %v619 = vadd.f32 %v572, %v618
      %v620 = vpop.f32.mrf.mxu0
      %v621 = vadd.f32 %v574, %v620
      %622 = vdwg.mxu0
      %v623 = vld [vmem:[%s388] sm:$0xe]
      %s624 = scalar_lea.vmem %s3, 4
      %v625 = vld [vmem:[%s624] sm:$0x3]
      %v627 = vunpack.c.l.b16 %v623
      %v628 = vpack.c.b16 %v461, %v627
      %vm629 = vcmask 1046528
      %v630 = vrot.slane %v628, 1
      %v631 = vrot.slane %v472, 1
      %v632 = vsel %vm629, %v630, %v631
      %v633 = vrot.slane %v473, 1
      %v634 = vsel %vm629, %v631, %v633
      %v635 = vrot.slane %v474, 1
      %v636 = vsel %vm629, %v633, %v635
      %v637 = vrot.slane %v475, 1
      %v638 = vsel %vm629, %v635, %v637
      %v639 = vrot.slane %v476, 1
      %v640 = vsel %vm629, %v637, %v639
      %v642 = vsel %vm522, %v632, 0
      %v645 = vsel %vm522, %v634, 0
      %v648 = vsel %vm522, %v636, 0
      %v651 = vsel %vm522, %v638, 0
      %v654 = vsel %vm522, %v640, 0
      %v657 = vsel %vm538, %v625, 0
      %659 = vmatpush.bf16.msra.mxu0 0
      %660 = vmatpush.bf16.msra.mxu0 0
      %661 = vmatpush.bf16.msra.mxu0 0
      %662 = vmatpush.bf16.msra.mxu0 0
      %663 = vmatpush.bf16.msra.mxu0 0
      %664 = vmatpush.bf16.msra.mxu0 0
      %665 = vmatpush.bf16.msra.mxu0 0
      %666 = vmatpush.bf16.msra.mxu0 %v657
      %667 = vmatmul.bf16.gmra.mxu0 %v642
      %v668 = vpop.f32.mrf.mxu0
      %v669 = vadd.f32 0.0, %v668
      %v670 = vpop.f32.mrf.mxu0
      %v671 = vadd.f32 0.0, %v670
      %672 = vmatmul.bf16.gmra.mxu0 %v645
      %v673 = vpop.f32.mrf.mxu0
      %v674 = vadd.f32 0.0, %v673
      %v675 = vpop.f32.mrf.mxu0
      %v676 = vadd.f32 0.0, %v675
      %677 = vmatmul.bf16.gmra.mxu0 %v648
      %v678 = vpop.f32.mrf.mxu0
      %v679 = vadd.f32 0.0, %v678
      %v680 = vpop.f32.mrf.mxu0
      %v681 = vadd.f32 0.0, %v680
      %682 = vmatmul.bf16.gmra.mxu0 %v651
      %v683 = vpop.f32.mrf.mxu0
      %v684 = vadd.f32 0.0, %v683
      %v685 = vpop.f32.mrf.mxu0
      %v686 = vadd.f32 0.0, %v685
      %687 = vmatmul.bf16.gmra.mxu0 %v654
      %v688 = vpop.f32.mrf.mxu0
      %v689 = vadd.f32 0.0, %v688
      %v690 = vpop.f32.mrf.mxu0
      %v691 = vadd.f32 0.0, %v690
      %692 = vdwg.mxu0
      %v693 = vadd.f32 %v599, %v669
      %v694 = vadd.f32 %v601, %v671
      %v695 = vadd.f32 %v604, %v674
      %v696 = vadd.f32 %v606, %v676
      %v697 = vadd.f32 %v609, %v679
      %v698 = vadd.f32 %v611, %v681
      %v699 = vadd.f32 %v614, %v684
      %v700 = vadd.f32 %v616, %v686
      %v701 = vadd.f32 %v619, %v689
      %v702 = vadd.f32 %v621, %v691
      %v703 = vld [vmem:[%s388 + $0x4] sm:$0xe]
      %v704 = vld [vmem:[%s388 + $0x8] sm:$0xf]
      %v705 = vld [vmem:[%s388 + $0xc] sm:$0xf]
      %v706 = vld [vmem:[%s388 + $0x10] sm:$0xf]
      %v707 = vld [vmem:[%s388 + $0x14] sm:$0xf]
      %v708 = vld [vmem:[%s388 + $0x18] sm:$0xf]
      %v709 = vld [vmem:[%s388 + $0x1c] sm:$0xf]
      %v710 = vld [vmem:[%s388 + $0x20] sm:$0xf]
      %v711 = vld [vmem:[%s388 + $0x24] sm:$0xf]
      %v712 = vld [vmem:[%s388 + $0x28] sm:$0xf]
      %v713 = vld [vmem:[%s388 + $0x2c] sm:$0x1]
      %s714 = scalar_lea.vmem %s3, 6
      %v715 = vld [vmem:[%s714] sm:$0x3]
      %v727 = vunpack.c.l.b16 %v703
      %v728 = vunpack.c.l.b16 %v704
      %v729 = vunpack.c.l.b16 %v705
      %v730 = vunpack.c.l.b16 %v706
      %v731 = vunpack.c.l.b16 %v707
      %v732 = vunpack.c.l.b16 %v708
      %v733 = vunpack.c.l.b16 %v709
      %v734 = vunpack.c.l.b16 %v710
      %v735 = vunpack.c.l.b16 %v711
      %v736 = vunpack.c.l.b16 %v712
      %v737 = vunpack.c.l.b16 %v713
      %v738 = vpack.c.b16 %v728, %v727
      %v739 = vpack.c.b16 %v730, %v729
      %v740 = vpack.c.b16 %v732, %v731
      %v741 = vpack.c.b16 %v734, %v733
      %v742 = vpack.c.b16 %v736, %v735
      %v743 = vpack.c.b16 %v737, %v737
      %v744 = vrot.slane %v738, 1
      %v745 = vrot.slane %v739, 1
      %v746 = vsel %vm629, %v744, %v745
      %v747 = vrot.slane %v740, 1
      %v748 = vsel %vm629, %v745, %v747
      %v749 = vrot.slane %v741, 1
      %v750 = vsel %vm629, %v747, %v749
      %v751 = vrot.slane %v742, 1
      %v752 = vsel %vm629, %v749, %v751
      %v753 = vrot.slane %v743, 1
      %v754 = vsel %vm629, %v751, %v753
      %v756 = vsel %vm522, %v746, 0
      %v759 = vsel %vm522, %v748, 0
      %v762 = vsel %vm522, %v750, 0
      %v765 = vsel %vm522, %v752, 0
      %v768 = vsel %vm522, %v754, 0
      %v771 = vsel %vm538, %v715, 0
      %773 = vmatpush.bf16.msra.mxu0 0
      %774 = vmatpush.bf16.msra.mxu0 0
      %775 = vmatpush.bf16.msra.mxu0 0
      %776 = vmatpush.bf16.msra.mxu0 0
      %777 = vmatpush.bf16.msra.mxu0 0
      %778 = vmatpush.bf16.msra.mxu0 0
      %779 = vmatpush.bf16.msra.mxu0 0
      %780 = vmatpush.bf16.msra.mxu0 %v771
      %781 = vmatmul.bf16.gmra.mxu0 %v756
      %v782 = vpop.f32.mrf.mxu0
      %v783 = vadd.f32 0.0, %v782
      %v784 = vpop.f32.mrf.mxu0
      %v785 = vadd.f32 0.0, %v784
      %786 = vmatmul.bf16.gmra.mxu0 %v759
      %v787 = vpop.f32.mrf.mxu0
      %v788 = vadd.f32 0.0, %v787
      %v789 = vpop.f32.mrf.mxu0
      %v790 = vadd.f32 0.0, %v789
      %791 = vmatmul.bf16.gmra.mxu0 %v762
      %v792 = vpop.f32.mrf.mxu0
      %v793 = vadd.f32 0.0, %v792
      %v794 = vpop.f32.mrf.mxu0
      %v795 = vadd.f32 0.0, %v794
      %796 = vmatmul.bf16.gmra.mxu0 %v765
      %v797 = vpop.f32.mrf.mxu0
      %v798 = vadd.f32 0.0, %v797
      %v799 = vpop.f32.mrf.mxu0
      %v800 = vadd.f32 0.0, %v799
      %801 = vmatmul.bf16.gmra.mxu0 %v768
      %v802 = vpop.f32.mrf.mxu0
      %v803 = vadd.f32 0.0, %v802
      %v804 = vpop.f32.mrf.mxu0
      %v805 = vadd.f32 0.0, %v804
      %806 = vdwg.mxu0
      %v807 = vadd.f32 %v693, %v783
      %v808 = vadd.f32 %v694, %v785
      %v809 = vadd.f32 %v695, %v788
      %v810 = vadd.f32 %v696, %v790
      %v811 = vadd.f32 %v697, %v793
      %v812 = vadd.f32 %v698, %v795
      %v813 = vadd.f32 %v699, %v798
      %v814 = vadd.f32 %v700, %v800
      %v815 = vadd.f32 %v701, %v803
      %v816 = vadd.f32 %v702, %v805
      %v817 = vld [vmem:[%s388 + $0x2c] sm:$0x3]
      %s818 = scalar_lea.vmem %s3, 8
      %v819 = vld [vmem:[%s818] sm:$0x3]
      %v821 = vunpack.c.l.b16 %v817
      %v822 = vpack.c.b16 %v821, %v821
      %vm823 = vsmask.f32 6400
      %v825 = vshrl.u32 %v738, 16
      %v827 = vrot.slane %v825, 1
      %v828 = vshll.u32 %v738, 16
      %v830 = vrot.slane %v828, 2
      %v831 = vor.u32 %v827, %v830
      %v833 = vshrl.u32 %v739, 16
      %v835 = vrot.slane %v833, 1
      %v836 = vshll.u32 %v739, 16
      %v838 = vrot.slane %v836, 2
      %v839 = vor.u32 %v835, %v838
      %v840 = vsel %vm823, %v831, %v839
      %v842 = vshrl.u32 %v740, 16
      %v844 = vrot.slane %v842, 1
      %v845 = vshll.u32 %v740, 16
      %v847 = vrot.slane %v845, 2
      %v848 = vor.u32 %v844, %v847
      %v849 = vsel %vm823, %v839, %v848
      %v851 = vshrl.u32 %v741, 16
      %v853 = vrot.slane %v851, 1
      %v854 = vshll.u32 %v741, 16
      %v856 = vrot.slane %v854, 2
      %v857 = vor.u32 %v853, %v856
      %v858 = vsel %vm823, %v848, %v857
      %v860 = vshrl.u32 %v742, 16
      %v862 = vrot.slane %v860, 1
      %v863 = vshll.u32 %v742, 16
      %v865 = vrot.slane %v863, 2
      %v866 = vor.u32 %v862, %v865
      %v867 = vsel %vm823, %v857, %v866
      %v869 = vshrl.u32 %v822, 16
      %v871 = vrot.slane %v869, 1
      %v872 = vshll.u32 %v822, 16
      %v874 = vrot.slane %v872, 2
      %v875 = vor.u32 %v871, %v874
      %v876 = vsel %vm823, %v866, %v875
      %v878 = vsel %vm522, %v840, 0
      %v881 = vsel %vm522, %v849, 0
      %v884 = vsel %vm522, %v858, 0
      %v887 = vsel %vm522, %v867, 0
      %v890 = vsel %vm522, %v876, 0
      %v893 = vsel %vm538, %v819, 0
      %895 = vmatpush.bf16.msra.mxu0 0
      %896 = vmatpush.bf16.msra.mxu0 0
      %897 = vmatpush.bf16.msra.mxu0 0
      %898 = vmatpush.bf16.msra.mxu0 0
      %899 = vmatpush.bf16.msra.mxu0 0
      %900 = vmatpush.bf16.msra.mxu0 0
      %901 = vmatpush.bf16.msra.mxu0 0
      %902 = vmatpush.bf16.msra.mxu0 %v893
      %903 = vmatmul.bf16.gmra.mxu0 %v878
      %v904 = vpop.f32.mrf.mxu0
      %v905 = vadd.f32 0.0, %v904
      %v906 = vpop.f32.mrf.mxu0
      %v907 = vadd.f32 0.0, %v906
      %908 = vmatmul.bf16.gmra.mxu0 %v881
      %v909 = vpop.f32.mrf.mxu0
      %v910 = vadd.f32 0.0, %v909
      %v911 = vpop.f32.mrf.mxu0
      %v912 = vadd.f32 0.0, %v911
      %913 = vmatmul.bf16.gmra.mxu0 %v884
      %v914 = vpop.f32.mrf.mxu0
      %v915 = vadd.f32 0.0, %v914
      %v916 = vpop.f32.mrf.mxu0
      %v917 = vadd.f32 0.0, %v916
      %918 = vmatmul.bf16.gmra.mxu0 %v887
      %v919 = vpop.f32.mrf.mxu0
      %v920 = vadd.f32 0.0, %v919
      %v921 = vpop.f32.mrf.mxu0
      %v922 = vadd.f32 0.0, %v921
      %923 = vmatmul.bf16.gmra.mxu0 %v890
      %v924 = vpop.f32.mrf.mxu0
      %v925 = vadd.f32 0.0, %v924
      %v926 = vpop.f32.mrf.mxu0
      %v927 = vadd.f32 0.0, %v926
      %928 = vdwg.mxu0
      %v929 = vadd.f32 %v807, %v905
      %v930 = vadd.f32 %v808, %v907
      %v931 = vadd.f32 %v809, %v910
      %v932 = vadd.f32 %v810, %v912
      %v933 = vadd.f32 %v811, %v915
      %v934 = vadd.f32 %v812, %v917
      %v935 = vadd.f32 %v813, %v920
      %v936 = vadd.f32 %v814, %v922
      %v937 = vadd.f32 %v815, %v925
      %v938 = vadd.f32 %v816, %v927
      %v939 = vld [vmem:[%s388 + $0x4] sm:$0xc]
      %s940 = scalar_lea.vmem %s3, 10
      %v941 = vld [vmem:[%s940] sm:$0x3]
      %v943 = vunpack.c.l.b16 %v939
      %v944 = vpack.c.b16 %v728, %v943
      %vm945 = vcmask 1045504
      %v946 = vrot.slane %v944, 2
      %v947 = vrot.slane %v739, 2
      %v948 = vsel %vm945, %v946, %v947
      %v949 = vrot.slane %v740, 2
      %v950 = vsel %vm945, %v947, %v949
      %v951 = vrot.slane %v741, 2
      %v952 = vsel %vm945, %v949, %v951
      %v953 = vrot.slane %v742, 2
      %v954 = vsel %vm945, %v951, %v953
      %v955 = vrot.slane %v822, 2
      %v956 = vsel %vm945, %v953, %v955
      %v958 = vsel %vm522, %v948, 0
      %v961 = vsel %vm522, %v950, 0
      %v964 = vsel %vm522, %v952, 0
      %v967 = vsel %vm522, %v954, 0
      %v970 = vsel %vm522, %v956, 0
      %v973 = vsel %vm538, %v941, 0
      %975 = vmatpush.bf16.msra.mxu0 0
      %976 = vmatpush.bf16.msra.mxu0 0
      %977 = vmatpush.bf16.msra.mxu0 0
      %978 = vmatpush.bf16.msra.mxu0 0
      %979 = vmatpush.bf16.msra.mxu0 0
      %980 = vmatpush.bf16.msra.mxu0 0
      %981 = vmatpush.bf16.msra.mxu0 0
      %982 = vmatpush.bf16.msra.mxu0 %v973
      %983 = vmatmul.bf16.gmra.mxu0 %v958
      %v984 = vpop.f32.mrf.mxu0
      %v985 = vadd.f32 0.0, %v984
      %v986 = vpop.f32.mrf.mxu0
      %v987 = vadd.f32 0.0, %v986
      %988 = vmatmul.bf16.gmra.mxu0 %v961
      %v989 = vpop.f32.mrf.mxu0
      %v990 = vadd.f32 0.0, %v989
      %v991 = vpop.f32.mrf.mxu0
      %v992 = vadd.f32 0.0, %v991
      %993 = vmatmul.bf16.gmra.mxu0 %v964
      %v994 = vpop.f32.mrf.mxu0
      %v995 = vadd.f32 0.0, %v994
      %v996 = vpop.f32.mrf.mxu0
      %v997 = vadd.f32 0.0, %v996
      %998 = vmatmul.bf16.gmra.mxu0 %v967
      %v999 = vpop.f32.mrf.mxu0
      %v1000 = vadd.f32 0.0, %v999
      %v1001 = vpop.f32.mrf.mxu0
      %v1002 = vadd.f32 0.0, %v1001
      %1003 = vmatmul.bf16.gmra.mxu0 %v970
      %v1004 = vpop.f32.mrf.mxu0
      %v1005 = vadd.f32 0.0, %v1004
      %v1006 = vpop.f32.mrf.mxu0
      %v1007 = vadd.f32 0.0, %v1006
      %1008 = vdwg.mxu0
      %v1009 = vadd.f32 %v929, %v985
      %v1010 = vadd.f32 %v930, %v987
      %v1011 = vadd.f32 %v931, %v990
      %v1012 = vadd.f32 %v932, %v992
      %v1013 = vadd.f32 %v933, %v995
      %v1014 = vadd.f32 %v934, %v997
      %v1015 = vadd.f32 %v935, %v1000
      %v1016 = vadd.f32 %v936, %v1002
      %v1017 = vadd.f32 %v937, %v1005
      %v1018 = vadd.f32 %v938, %v1007
      %v1019 = vld [vmem:[%s388 + $0x8] sm:$0xc]
      %v1020 = vld [vmem:[%s388 + $0xc] sm:$0xf]
      %v1021 = vld [vmem:[%s388 + $0x10] sm:$0xf]
      %v1022 = vld [vmem:[%s388 + $0x14] sm:$0xf]
      %v1023 = vld [vmem:[%s388 + $0x18] sm:$0xf]
      %v1024 = vld [vmem:[%s388 + $0x1c] sm:$0xf]
      %v1025 = vld [vmem:[%s388 + $0x20] sm:$0xf]
      %v1026 = vld [vmem:[%s388 + $0x24] sm:$0xf]
      %v1027 = vld [vmem:[%s388 + $0x28] sm:$0xf]
      %v1028 = vld [vmem:[%s388 + $0x2c] sm:$0xf]
      %v1029 = vld [vmem:[%s388 + $0x30] sm:$0x3]
      %s1030 = scalar_lea.vmem %s3, 12
      %v1031 = vld [vmem:[%s1030] sm:$0x3]
      %v1043 = vunpack.c.l.b16 %v1019
      %v1044 = vunpack.c.l.b16 %v1020
      %v1045 = vunpack.c.l.b16 %v1021
      %v1046 = vunpack.c.l.b16 %v1022
      %v1047 = vunpack.c.l.b16 %v1023
      %v1048 = vunpack.c.l.b16 %v1024
      %v1049 = vunpack.c.l.b16 %v1025
      %v1050 = vunpack.c.l.b16 %v1026
      %v1051 = vunpack.c.l.b16 %v1027
      %v1052 = vunpack.c.l.b16 %v1028
      %v1053 = vunpack.c.l.b16 %v1029
      %v1054 = vpack.c.b16 %v1044, %v1043
      %v1055 = vpack.c.b16 %v1046, %v1045
      %v1056 = vpack.c.b16 %v1048, %v1047
      %v1057 = vpack.c.b16 %v1050, %v1049
      %v1058 = vpack.c.b16 %v1052, %v1051
      %v1059 = vpack.c.b16 %v1053, %v1053
      %v1060 = vrot.slane %v1054, 2
      %v1061 = vrot.slane %v1055, 2
      %v1062 = vsel %vm945, %v1060, %v1061
      %v1063 = vrot.slane %v1056, 2
      %v1064 = vsel %vm945, %v1061, %v1063
      %v1065 = vrot.slane %v1057, 2
      %v1066 = vsel %vm945, %v1063, %v1065
      %v1067 = vrot.slane %v1058, 2
      %v1068 = vsel %vm945, %v1065, %v1067
      %v1069 = vrot.slane %v1059, 2
      %v1070 = vsel %vm945, %v1067, %v1069
      %v1072 = vsel %vm522, %v1062, 0
      %v1075 = vsel %vm522, %v1064, 0
      %v1078 = vsel %vm522, %v1066, 0
      %v1081 = vsel %vm522, %v1068, 0
      %v1084 = vsel %vm522, %v1070, 0
      %v1087 = vsel %vm538, %v1031, 0
      %1089 = vmatpush.bf16.msra.mxu0 0
      %1090 = vmatpush.bf16.msra.mxu0 0
      %1091 = vmatpush.bf16.msra.mxu0 0
      %1092 = vmatpush.bf16.msra.mxu0 0
      %1093 = vmatpush.bf16.msra.mxu0 0
      %1094 = vmatpush.bf16.msra.mxu0 0
      %1095 = vmatpush.bf16.msra.mxu0 0
      %1096 = vmatpush.bf16.msra.mxu0 %v1087
      %1097 = vmatmul.bf16.gmra.mxu0 %v1072
      %v1098 = vpop.f32.mrf.mxu0
      %v1099 = vadd.f32 0.0, %v1098
      %v1100 = vpop.f32.mrf.mxu0
      %v1101 = vadd.f32 0.0, %v1100
      %1102 = vmatmul.bf16.gmra.mxu0 %v1075
      %v1103 = vpop.f32.mrf.mxu0
      %v1104 = vadd.f32 0.0, %v1103
      %v1105 = vpop.f32.mrf.mxu0
      %v1106 = vadd.f32 0.0, %v1105
      %1107 = vmatmul.bf16.gmra.mxu0 %v1078
      %v1108 = vpop.f32.mrf.mxu0
      %v1109 = vadd.f32 0.0, %v1108
      %v1110 = vpop.f32.mrf.mxu0
      %v1111 = vadd.f32 0.0, %v1110
      %1112 = vmatmul.bf16.gmra.mxu0 %v1081
      %v1113 = vpop.f32.mrf.mxu0
      %v1114 = vadd.f32 0.0, %v1113
      %v1115 = vpop.f32.mrf.mxu0
      %v1116 = vadd.f32 0.0, %v1115
      %1117 = vmatmul.bf16.gmra.mxu0 %v1084
      %v1118 = vpop.f32.mrf.mxu0
      %v1119 = vadd.f32 0.0, %v1118
      %v1120 = vpop.f32.mrf.mxu0
      %v1121 = vadd.f32 0.0, %v1120
      %1122 = vdwg.mxu0
      %v1123 = vadd.f32 %v1009, %v1099
      %v1124 = vadd.f32 %v1010, %v1101
      %v1125 = vadd.f32 %v1011, %v1104
      %v1126 = vadd.f32 %v1012, %v1106
      %v1127 = vadd.f32 %v1013, %v1109
      %v1128 = vadd.f32 %v1014, %v1111
      %v1129 = vadd.f32 %v1015, %v1114
      %v1130 = vadd.f32 %v1016, %v1116
      %v1131 = vadd.f32 %v1017, %v1119
      %v1132 = vadd.f32 %v1018, %v1121
      %v1133 = vld [vmem:[%s388 + $0x30] sm:$0x7]
      %s1134 = scalar_lea.vmem %s3, 14
      %v1135 = vld [vmem:[%s1134] sm:$0x3]
      %v1137 = vunpack.c.l.b16 %v1133
      %v1138 = vpack.c.b16 %v1137, %v1137
      %vm1139 = vsmask.f32 5376
      %v1141 = vshrl.u32 %v1054, 16
      %v1143 = vrot.slane %v1141, 2
      %v1144 = vshll.u32 %v1054, 16
      %v1146 = vrot.slane %v1144, 3
      %v1147 = vor.u32 %v1143, %v1146
      %v1149 = vshrl.u32 %v1055, 16
      %v1151 = vrot.slane %v1149, 2
      %v1152 = vshll.u32 %v1055, 16
      %v1154 = vrot.slane %v1152, 3
      %v1155 = vor.u32 %v1151, %v1154
      %v1156 = vsel %vm1139, %v1147, %v1155
      %v1158 = vshrl.u32 %v1056, 16
      %v1160 = vrot.slane %v1158, 2
      %v1161 = vshll.u32 %v1056, 16
      %v1163 = vrot.slane %v1161, 3
      %v1164 = vor.u32 %v1160, %v1163
      %v1165 = vsel %vm1139, %v1155, %v1164
      %v1167 = vshrl.u32 %v1057, 16
      %v1169 = vrot.slane %v1167, 2
      %v1170 = vshll.u32 %v1057, 16
      %v1172 = vrot.slane %v1170, 3
      %v1173 = vor.u32 %v1169, %v1172
      %v1174 = vsel %vm1139, %v1164, %v1173
      %v1176 = vshrl.u32 %v1058, 16
      %v1178 = vrot.slane %v1176, 2
      %v1179 = vshll.u32 %v1058, 16
      %v1181 = vrot.slane %v1179, 3
      %v1182 = vor.u32 %v1178, %v1181
      %v1183 = vsel %vm1139, %v1173, %v1182
      %v1185 = vshrl.u32 %v1138, 16
      %v1187 = vrot.slane %v1185, 2
      %v1188 = vshll.u32 %v1138, 16
      %v1190 = vrot.slane %v1188, 3
      %v1191 = vor.u32 %v1187, %v1190
      %v1192 = vsel %vm1139, %v1182, %v1191
      %v1194 = vsel %vm522, %v1156, 0
      %v1197 = vsel %vm522, %v1165, 0
      %v1200 = vsel %vm522, %v1174, 0
      %v1203 = vsel %vm522, %v1183, 0
      %v1206 = vsel %vm522, %v1192, 0
      %v1209 = vsel %vm538, %v1135, 0
      %1211 = vmatpush.bf16.msra.mxu0 0
      %1212 = vmatpush.bf16.msra.mxu0 0
      %1213 = vmatpush.bf16.msra.mxu0 0
      %1214 = vmatpush.bf16.msra.mxu0 0
      %1215 = vmatpush.bf16.msra.mxu0 0
      %1216 = vmatpush.bf16.msra.mxu0 0
      %1217 = vmatpush.bf16.msra.mxu0 0
      %1218 = vmatpush.bf16.msra.mxu0 %v1209
      %1219 = vmatmul.bf16.gmra.mxu0 %v1194
      %v1220 = vpop.f32.mrf.mxu0
      %v1221 = vadd.f32 0.0, %v1220
      %v1222 = vpop.f32.mrf.mxu0
      %v1223 = vadd.f32 0.0, %v1222
      %1224 = vmatmul.bf16.gmra.mxu0 %v1197
      %v1225 = vpop.f32.mrf.mxu0
      %v1226 = vadd.f32 0.0, %v1225
      %v1227 = vpop.f32.mrf.mxu0
      %v1228 = vadd.f32 0.0, %v1227
      %1229 = vmatmul.bf16.gmra.mxu0 %v1200
      %v1230 = vpop.f32.mrf.mxu0
      %v1231 = vadd.f32 0.0, %v1230
      %v1232 = vpop.f32.mrf.mxu0
      %v1233 = vadd.f32 0.0, %v1232
      %1234 = vmatmul.bf16.gmra.mxu0 %v1203
      %v1235 = vpop.f32.mrf.mxu0
      %v1236 = vadd.f32 0.0, %v1235
      %v1237 = vpop.f32.mrf.mxu0
      %v1238 = vadd.f32 0.0, %v1237
      %1239 = vmatmul.bf16.gmra.mxu0 %v1206
      %v1240 = vpop.f32.mrf.mxu0
      %v1241 = vadd.f32 0.0, %v1240
      %v1242 = vpop.f32.mrf.mxu0
      %v1243 = vadd.f32 0.0, %v1242
      %1244 = vdwg.mxu0
      %v1245 = vadd.f32 %v1123, %v1221
      %v1246 = vadd.f32 %v1124, %v1223
      %v1247 = vadd.f32 %v1125, %v1226
      %v1248 = vadd.f32 %v1126, %v1228
      %v1249 = vadd.f32 %v1127, %v1231
      %v1250 = vadd.f32 %v1128, %v1233
      %v1251 = vadd.f32 %v1129, %v1236
      %v1252 = vadd.f32 %v1130, %v1238
      %v1253 = vadd.f32 %v1131, %v1241
      %v1254 = vadd.f32 %v1132, %v1243
      %v1255 = vld [vmem:[%s388 + $0x8] sm:$0x8]
      %s1256 = scalar_lea.vmem %s3, 16
      %v1257 = vld [vmem:[%s1256] sm:$0x3]
      %v1259 = vunpack.c.l.b16 %v1255
      %v1260 = vpack.c.b16 %v1044, %v1259
      %vm1261 = vcmask 1044480
      %v1262 = vrot.slane %v1260, 3
      %v1263 = vrot.slane %v1055, 3
      %v1264 = vsel %vm1261, %v1262, %v1263
      %v1265 = vrot.slane %v1056, 3
      %v1266 = vsel %vm1261, %v1263, %v1265
      %v1267 = vrot.slane %v1057, 3
      %v1268 = vsel %vm1261, %v1265, %v1267
      %v1269 = vrot.slane %v1058, 3
      %v1270 = vsel %vm1261, %v1267, %v1269
      %v1271 = vrot.slane %v1138, 3
      %v1272 = vsel %vm1261, %v1269, %v1271
      %v1274 = vsel %vm522, %v1264, 0
      %v1277 = vsel %vm522, %v1266, 0
      %v1280 = vsel %vm522, %v1268, 0
      %v1283 = vsel %vm522, %v1270, 0
      %v1286 = vsel %vm522, %v1272, 0
      %v1289 = vsel %vm538, %v1257, 0
      %1291 = vmatpush.bf16.msra.mxu0 0
      %1292 = vmatpush.bf16.msra.mxu0 0
      %1293 = vmatpush.bf16.msra.mxu0 0
      %1294 = vmatpush.bf16.msra.mxu0 0
      %1295 = vmatpush.bf16.msra.mxu0 0
      %1296 = vmatpush.bf16.msra.mxu0 0
      %1297 = vmatpush.bf16.msra.mxu0 0
      %1298 = vmatpush.bf16.msra.mxu0 %v1289
      %1299 = vmatmul.bf16.gmra.mxu0 %v1274
      %v1300 = vpop.f32.mrf.mxu0
      %v1301 = vadd.f32 0.0, %v1300
      %v1302 = vpop.f32.mrf.mxu0
      %v1303 = vadd.f32 0.0, %v1302
      %1304 = vmatmul.bf16.gmra.mxu0 %v1277
      %v1305 = vpop.f32.mrf.mxu0
      %v1306 = vadd.f32 0.0, %v1305
      %v1307 = vpop.f32.mrf.mxu0
      %v1308 = vadd.f32 0.0, %v1307
      %1309 = vmatmul.bf16.gmra.mxu0 %v1280
      %v1310 = vpop.f32.mrf.mxu0
      %v1311 = vadd.f32 0.0, %v1310
      %v1312 = vpop.f32.mrf.mxu0
      %v1313 = vadd.f32 0.0, %v1312
      %1314 = vmatmul.bf16.gmra.mxu0 %v1283
      %v1315 = vpop.f32.mrf.mxu0
      %v1316 = vadd.f32 0.0, %v1315
      %v1317 = vpop.f32.mrf.mxu0
      %v1318 = vadd.f32 0.0, %v1317
      %1319 = vmatmul.bf16.gmra.mxu0 %v1286
      %v1320 = vpop.f32.mrf.mxu0
      %v1321 = vadd.f32 0.0, %v1320
      %v1322 = vpop.f32.mrf.mxu0
      %v1323 = vadd.f32 0.0, %v1322
      %1324 = vdwg.mxu0
      %v1325 = vadd.f32 %v1245, %v1301
      %v1326 = vadd.f32 %v1246, %v1303
      %v1327 = vadd.f32 %v1247, %v1306
      %v1328 = vadd.f32 %v1248, %v1308
      %v1329 = vadd.f32 %v1249, %v1311
      %v1330 = vadd.f32 %v1250, %v1313
      %v1331 = vadd.f32 %v1251, %v1316
      %v1332 = vadd.f32 %v1252, %v1318
      %v1333 = vadd.f32 %v1253, %v1321
      %v1334 = vadd.f32 %v1254, %v1323
      %v1335 = vld [vmem:[%s398] sm:$0xf]
      %v1336 = vld [vmem:[%s398 + $0x4] sm:$0xf]
      %v1337 = vld [vmem:[%s398 + $0x8] sm:$0xf]
      %v1338 = vld [vmem:[%s398 + $0xc] sm:$0xf]
      %v1339 = vld [vmem:[%s398 + $0x10] sm:$0xf]
      %v1340 = vld [vmem:[%s398 + $0x14] sm:$0xf]
      %v1341 = vld [vmem:[%s398 + $0x18] sm:$0xf]
      %v1342 = vld [vmem:[%s398 + $0x1c] sm:$0xf]
      %v1343 = vld [vmem:[%s398 + $0x20] sm:$0xf]
      %v1344 = vld [vmem:[%s398 + $0x24] sm:$0xf]
      %s1345 = scalar_lea.vmem %s3, 18
      %v1346 = vld [vmem:[%s1345] sm:$0x3]
      %v1357 = vunpack.c.l.b16 %v1335
      %v1358 = vunpack.c.l.b16 %v1336
      %v1359 = vunpack.c.l.b16 %v1337
      %v1360 = vunpack.c.l.b16 %v1338
      %v1361 = vunpack.c.l.b16 %v1339
      %v1362 = vunpack.c.l.b16 %v1340
      %v1363 = vunpack.c.l.b16 %v1341
      %v1364 = vunpack.c.l.b16 %v1342
      %v1365 = vunpack.c.l.b16 %v1343
      %v1366 = vunpack.c.l.b16 %v1344
      %v1367 = vpack.c.b16 %v1358, %v1357
      %v1368 = vpack.c.b16 %v1360, %v1359
      %v1369 = vpack.c.b16 %v1362, %v1361
      %v1370 = vpack.c.b16 %v1364, %v1363
      %v1371 = vpack.c.b16 %v1366, %v1365
      %v1373 = vsel %vm522, %v1367, 0
      %v1376 = vsel %vm522, %v1368, 0
      %v1379 = vsel %vm522, %v1369, 0
      %v1382 = vsel %vm522, %v1370, 0
      %v1385 = vsel %vm522, %v1371, 0
      %v1388 = vsel %vm538, %v1346, 0
      %1390 = vmatpush.bf16.msra.mxu0 0
      %1391 = vmatpush.bf16.msra.mxu0 0
      %1392 = vmatpush.bf16.msra.mxu0 0
      %1393 = vmatpush.bf16.msra.mxu0 0
      %1394 = vmatpush.bf16.msra.mxu0 0
      %1395 = vmatpush.bf16.msra.mxu0 0
      %1396 = vmatpush.bf16.msra.mxu0 0
      %1397 = vmatpush.bf16.msra.mxu0 %v1388
      %1398 = vmatmul.bf16.gmra.mxu0 %v1373
      %v1399 = vpop.f32.mrf.mxu0
      %v1400 = vadd.f32 0.0, %v1399
      %v1401 = vpop.f32.mrf.mxu0
      %v1402 = vadd.f32 0.0, %v1401
      %1403 = vmatmul.bf16.gmra.mxu0 %v1376
      %v1404 = vpop.f32.mrf.mxu0
      %v1405 = vadd.f32 0.0, %v1404
      %v1406 = vpop.f32.mrf.mxu0
      %v1407 = vadd.f32 0.0, %v1406
      %1408 = vmatmul.bf16.gmra.mxu0 %v1379
      %v1409 = vpop.f32.mrf.mxu0
      %v1410 = vadd.f32 0.0, %v1409
      %v1411 = vpop.f32.mrf.mxu0
      %v1412 = vadd.f32 0.0, %v1411
      %1413 = vmatmul.bf16.gmra.mxu0 %v1382
      %v1414 = vpop.f32.mrf.mxu0
      %v1415 = vadd.f32 0.0, %v1414
      %v1416 = vpop.f32.mrf.mxu0
      %v1417 = vadd.f32 0.0, %v1416
      %1418 = vmatmul.bf16.gmra.mxu0 %v1385
      %v1419 = vpop.f32.mrf.mxu0
      %v1420 = vadd.f32 0.0, %v1419
      %v1421 = vpop.f32.mrf.mxu0
      %v1422 = vadd.f32 0.0, %v1421
      %1423 = vdwg.mxu0
      %v1424 = vadd.f32 %v1325, %v1400
      %v1425 = vadd.f32 %v1326, %v1402
      %v1426 = vadd.f32 %v1327, %v1405
      %v1427 = vadd.f32 %v1328, %v1407
      %v1428 = vadd.f32 %v1329, %v1410
      %v1429 = vadd.f32 %v1330, %v1412
      %v1430 = vadd.f32 %v1331, %v1415
      %v1431 = vadd.f32 %v1332, %v1417
      %v1432 = vadd.f32 %v1333, %v1420
      %v1433 = vadd.f32 %v1334, %v1422
      %v1434 = vld [vmem:[%s398] sm:$0xf]
      %v1435 = vld [vmem:[%s398 + $0x4] sm:$0xf]
      %v1436 = vld [vmem:[%s398 + $0x8] sm:$0xf]
      %v1437 = vld [vmem:[%s398 + $0xc] sm:$0xf]
      %v1438 = vld [vmem:[%s398 + $0x10] sm:$0xf]
      %v1439 = vld [vmem:[%s398 + $0x14] sm:$0xf]
      %v1440 = vld [vmem:[%s398 + $0x18] sm:$0xf]
      %v1441 = vld [vmem:[%s398 + $0x1c] sm:$0xf]
      %v1442 = vld [vmem:[%s398 + $0x20] sm:$0xf]
      %v1443 = vld [vmem:[%s398 + $0x24] sm:$0xf]
      %v1444 = vld [vmem:[%s398 + $0x28] sm:$0x1]
      %s1445 = scalar_lea.vmem %s3, 20
      %v1446 = vld [vmem:[%s1445] sm:$0x3]
      %v1458 = vunpack.c.l.b16 %v1434
      %v1459 = vunpack.c.l.b16 %v1435
      %v1460 = vunpack.c.l.b16 %v1436
      %v1461 = vunpack.c.l.b16 %v1437
      %v1462 = vunpack.c.l.b16 %v1438
      %v1463 = vunpack.c.l.b16 %v1439
      %v1464 = vunpack.c.l.b16 %v1440
      %v1465 = vunpack.c.l.b16 %v1441
      %v1466 = vunpack.c.l.b16 %v1442
      %v1467 = vunpack.c.l.b16 %v1443
      %v1468 = vunpack.c.l.b16 %v1444
      %v1469 = vpack.c.b16 %v1459, %v1458
      %v1470 = vpack.c.b16 %v1461, %v1460
      %v1471 = vpack.c.b16 %v1463, %v1462
      %v1472 = vpack.c.b16 %v1465, %v1464
      %v1473 = vpack.c.b16 %v1467, %v1466
      %v1474 = vpack.c.b16 %v1468, %v1468
      %v1476 = vshrl.u32 %v1469, 16
      %v1478 = vshll.u32 %v1469, 16
      %v1480 = vrot.slane %v1478, 1
      %v1481 = vor.u32 %v1476, %v1480
      %v1483 = vshll.u32 %v1470, 16
      %v1485 = vrot.slane %v1483, 1
      %v1486 = vsel %vm477, %v1481, %v1485
      %v1487 = vshrl.u32 %v1470, 16
      %v1489 = vor.u32 %v1487, %v1485
      %v1491 = vshll.u32 %v1471, 16
      %v1493 = vrot.slane %v1491, 1
      %v1494 = vsel %vm477, %v1489, %v1493
      %v1495 = vshrl.u32 %v1471, 16
      %v1497 = vor.u32 %v1495, %v1493
      %v1499 = vshll.u32 %v1472, 16
      %v1501 = vrot.slane %v1499, 1
      %v1502 = vsel %vm477, %v1497, %v1501
      %v1503 = vshrl.u32 %v1472, 16
      %v1505 = vor.u32 %v1503, %v1501
      %v1507 = vshll.u32 %v1473, 16
      %v1509 = vrot.slane %v1507, 1
      %v1510 = vsel %vm477, %v1505, %v1509
      %v1511 = vshrl.u32 %v1473, 16
      %v1513 = vor.u32 %v1511, %v1509
      %v1515 = vshll.u32 %v1474, 16
      %v1517 = vrot.slane %v1515, 1
      %v1518 = vsel %vm477, %v1513, %v1517
      %v1520 = vsel %vm522, %v1486, 0
      %v1523 = vsel %vm522, %v1494, 0
      %v1526 = vsel %vm522, %v1502, 0
      %v1529 = vsel %vm522, %v1510, 0
      %v1532 = vsel %vm522, %v1518, 0
      %v1535 = vsel %vm538, %v1446, 0
      %1537 = vmatpush.bf16.msra.mxu0 0
      %1538 = vmatpush.bf16.msra.mxu0 0
      %1539 = vmatpush.bf16.msra.mxu0 0
      %1540 = vmatpush.bf16.msra.mxu0 0
      %1541 = vmatpush.bf16.msra.mxu0 0
      %1542 = vmatpush.bf16.msra.mxu0 0
      %1543 = vmatpush.bf16.msra.mxu0 0
      %1544 = vmatpush.bf16.msra.mxu0 %v1535
      %1545 = vmatmul.bf16.gmra.mxu0 %v1520
      %v1546 = vpop.f32.mrf.mxu0
      %v1547 = vadd.f32 0.0, %v1546
      %v1548 = vpop.f32.mrf.mxu0
      %v1549 = vadd.f32 0.0, %v1548
      %1550 = vmatmul.bf16.gmra.mxu0 %v1523
      %v1551 = vpop.f32.mrf.mxu0
      %v1552 = vadd.f32 0.0, %v1551
      %v1553 = vpop.f32.mrf.mxu0
      %v1554 = vadd.f32 0.0, %v1553
      %1555 = vmatmul.bf16.gmra.mxu0 %v1526
      %v1556 = vpop.f32.mrf.mxu0
      %v1557 = vadd.f32 0.0, %v1556
      %v1558 = vpop.f32.mrf.mxu0
      %v1559 = vadd.f32 0.0, %v1558
      %1560 = vmatmul.bf16.gmra.mxu0 %v1529
      %v1561 = vpop.f32.mrf.mxu0
      %v1562 = vadd.f32 0.0, %v1561
      %v1563 = vpop.f32.mrf.mxu0
      %v1564 = vadd.f32 0.0, %v1563
      %1565 = vmatmul.bf16.gmra.mxu0 %v1532
      %v1566 = vpop.f32.mrf.mxu0
      %v1567 = vadd.f32 0.0, %v1566
      %v1568 = vpop.f32.mrf.mxu0
      %v1569 = vadd.f32 0.0, %v1568
      %1570 = vdwg.mxu0
      %v1571 = vadd.f32 %v1424, %v1547
      %v1572 = vadd.f32 %v1425, %v1549
      %v1573 = vadd.f32 %v1426, %v1552
      %v1574 = vadd.f32 %v1427, %v1554
      %v1575 = vadd.f32 %v1428, %v1557
      %v1576 = vadd.f32 %v1429, %v1559
      %v1577 = vadd.f32 %v1430, %v1562
      %v1578 = vadd.f32 %v1431, %v1564
      %v1579 = vadd.f32 %v1432, %v1567
      %v1580 = vadd.f32 %v1433, %v1569
      %v1581 = vld [vmem:[%s398] sm:$0xe]
      %s1582 = scalar_lea.vmem %s3, 22
      %v1583 = vld [vmem:[%s1582] sm:$0x3]
      %v1585 = vunpack.c.l.b16 %v1581
      %v1586 = vpack.c.b16 %v1459, %v1585
      %v1587 = vrot.slane %v1586, 1
      %v1588 = vrot.slane %v1470, 1
      %v1589 = vsel %vm629, %v1587, %v1588
      %v1590 = vrot.slane %v1471, 1
      %v1591 = vsel %vm629, %v1588, %v1590
      %v1592 = vrot.slane %v1472, 1
      %v1593 = vsel %vm629, %v1590, %v1592
      %v1594 = vrot.slane %v1473, 1
      %v1595 = vsel %vm629, %v1592, %v1594
      %v1596 = vrot.slane %v1474, 1
      %v1597 = vsel %vm629, %v1594, %v1596
      %v1599 = vsel %vm522, %v1589, 0
      %v1602 = vsel %vm522, %v1591, 0
      %v1605 = vsel %vm522, %v1593, 0
      %v1608 = vsel %vm522, %v1595, 0
      %v1611 = vsel %vm522, %v1597, 0
      %v1614 = vsel %vm538, %v1583, 0
      %1616 = vmatpush.bf16.msra.mxu0 0
      %1617 = vmatpush.bf16.msra.mxu0 0
      %1618 = vmatpush.bf16.msra.mxu0 0
      %1619 = vmatpush.bf16.msra.mxu0 0
      %1620 = vmatpush.bf16.msra.mxu0 0
      %1621 = vmatpush.bf16.msra.mxu0 0
      %1622 = vmatpush.bf16.msra.mxu0 0
      %1623 = vmatpush.bf16.msra.mxu0 %v1614
      %1624 = vmatmul.bf16.gmra.mxu0 %v1599
      %v1625 = vpop.f32.mrf.mxu0
      %v1626 = vadd.f32 0.0, %v1625
      %v1627 = vpop.f32.mrf.mxu0
      %v1628 = vadd.f32 0.0, %v1627
      %1629 = vmatmul.bf16.gmra.mxu0 %v1602
      %v1630 = vpop.f32.mrf.mxu0
      %v1631 = vadd.f32 0.0, %v1630
      %v1632 = vpop.f32.mrf.mxu0
      %v1633 = vadd.f32 0.0, %v1632
      %1634 = vmatmul.bf16.gmra.mxu0 %v1605
      %v1635 = vpop.f32.mrf.mxu0
      %v1636 = vadd.f32 0.0, %v1635
      %v1637 = vpop.f32.mrf.mxu0
      %v1638 = vadd.f32 0.0, %v1637
      %1639 = vmatmul.bf16.gmra.mxu0 %v1608
      %v1640 = vpop.f32.mrf.mxu0
      %v1641 = vadd.f32 0.0, %v1640
      %v1642 = vpop.f32.mrf.mxu0
      %v1643 = vadd.f32 0.0, %v1642
      %1644 = vmatmul.bf16.gmra.mxu0 %v1611
      %v1645 = vpop.f32.mrf.mxu0
      %v1646 = vadd.f32 0.0, %v1645
      %v1647 = vpop.f32.mrf.mxu0
      %v1648 = vadd.f32 0.0, %v1647
      %1649 = vdwg.mxu0
      %v1650 = vadd.f32 %v1571, %v1626
      %v1651 = vadd.f32 %v1572, %v1628
      %v1652 = vadd.f32 %v1573, %v1631
      %v1653 = vadd.f32 %v1574, %v1633
      %v1654 = vadd.f32 %v1575, %v1636
      %v1655 = vadd.f32 %v1576, %v1638
      %v1656 = vadd.f32 %v1577, %v1641
      %v1657 = vadd.f32 %v1578, %v1643
      %v1658 = vadd.f32 %v1579, %v1646
      %v1659 = vadd.f32 %v1580, %v1648
      %v1660 = vld [vmem:[%s398 + $0x4] sm:$0xe]
      %v1661 = vld [vmem:[%s398 + $0x8] sm:$0xf]
      %v1662 = vld [vmem:[%s398 + $0xc] sm:$0xf]
      %v1663 = vld [vmem:[%s398 + $0x10] sm:$0xf]
      %v1664 = vld [vmem:[%s398 + $0x14] sm:$0xf]
      %v1665 = vld [vmem:[%s398 + $0x18] sm:$0xf]
      %v1666 = vld [vmem:[%s398 + $0x1c] sm:$0xf]
      %v1667 = vld [vmem:[%s398 + $0x20] sm:$0xf]
      %v1668 = vld [vmem:[%s398 + $0x24] sm:$0xf]
      %v1669 = vld [vmem:[%s398 + $0x28] sm:$0xf]
      %v1670 = vld [vmem:[%s398 + $0x2c] sm:$0x1]
      %s1671 = scalar_lea.vmem %s3, 24
      %v1672 = vld [vmem:[%s1671] sm:$0x3]
      %v1684 = vunpack.c.l.b16 %v1660
      %v1685 = vunpack.c.l.b16 %v1661
      %v1686 = vunpack.c.l.b16 %v1662
      %v1687 = vunpack.c.l.b16 %v1663
      %v1688 = vunpack.c.l.b16 %v1664
      %v1689 = vunpack.c.l.b16 %v1665
      %v1690 = vunpack.c.l.b16 %v1666
      %v1691 = vunpack.c.l.b16 %v1667
      %v1692 = vunpack.c.l.b16 %v1668
      %v1693 = vunpack.c.l.b16 %v1669
      %v1694 = vunpack.c.l.b16 %v1670
      %v1695 = vpack.c.b16 %v1685, %v1684
      %v1696 = vpack.c.b16 %v1687, %v1686
      %v1697 = vpack.c.b16 %v1689, %v1688
      %v1698 = vpack.c.b16 %v1691, %v1690
      %v1699 = vpack.c.b16 %v1693, %v1692
      %v1700 = vpack.c.b16 %v1694, %v1694
      %v1701 = vrot.slane %v1695, 1
      %v1702 = vrot.slane %v1696, 1
      %v1703 = vsel %vm629, %v1701, %v1702
      %v1704 = vrot.slane %v1697, 1
      %v1705 = vsel %vm629, %v1702, %v1704
      %v1706 = vrot.slane %v1698, 1
      %v1707 = vsel %vm629, %v1704, %v1706
      %v1708 = vrot.slane %v1699, 1
      %v1709 = vsel %vm629, %v1706, %v1708
      %v1710 = vrot.slane %v1700, 1
      %v1711 = vsel %vm629, %v1708, %v1710
      %v1713 = vsel %vm522, %v1703, 0
      %v1716 = vsel %vm522, %v1705, 0
      %v1719 = vsel %vm522, %v1707, 0
      %v1722 = vsel %vm522, %v1709, 0
      %v1725 = vsel %vm522, %v1711, 0
      %v1728 = vsel %vm538, %v1672, 0
      %1730 = vmatpush.bf16.msra.mxu0 0
      %1731 = vmatpush.bf16.msra.mxu0 0
      %1732 = vmatpush.bf16.msra.mxu0 0
      %1733 = vmatpush.bf16.msra.mxu0 0
      %1734 = vmatpush.bf16.msra.mxu0 0
      %1735 = vmatpush.bf16.msra.mxu0 0
      %1736 = vmatpush.bf16.msra.mxu0 0
      %1737 = vmatpush.bf16.msra.mxu0 %v1728
      %1738 = vmatmul.bf16.gmra.mxu0 %v1713
      %v1739 = vpop.f32.mrf.mxu0
      %v1740 = vadd.f32 0.0, %v1739
      %v1741 = vpop.f32.mrf.mxu0
      %v1742 = vadd.f32 0.0, %v1741
      %1743 = vmatmul.bf16.gmra.mxu0 %v1716
      %v1744 = vpop.f32.mrf.mxu0
      %v1745 = vadd.f32 0.0, %v1744
      %v1746 = vpop.f32.mrf.mxu0
      %v1747 = vadd.f32 0.0, %v1746
      %1748 = vmatmul.bf16.gmra.mxu0 %v1719
      %v1749 = vpop.f32.mrf.mxu0
      %v1750 = vadd.f32 0.0, %v1749
      %v1751 = vpop.f32.mrf.mxu0
      %v1752 = vadd.f32 0.0, %v1751
      %1753 = vmatmul.bf16.gmra.mxu0 %v1722
      %v1754 = vpop.f32.mrf.mxu0
      %v1755 = vadd.f32 0.0, %v1754
      %v1756 = vpop.f32.mrf.mxu0
      %v1757 = vadd.f32 0.0, %v1756
      %1758 = vmatmul.bf16.gmra.mxu0 %v1725
      %v1759 = vpop.f32.mrf.mxu0
      %v1760 = vadd.f32 0.0, %v1759
      %v1761 = vpop.f32.mrf.mxu0
      %v1762 = vadd.f32 0.0, %v1761
      %1763 = vdwg.mxu0
      %v1764 = vadd.f32 %v1650, %v1740
      %v1765 = vadd.f32 %v1651, %v1742
      %v1766 = vadd.f32 %v1652, %v1745
      %v1767 = vadd.f32 %v1653, %v1747
      %v1768 = vadd.f32 %v1654, %v1750
      %v1769 = vadd.f32 %v1655, %v1752
      %v1770 = vadd.f32 %v1656, %v1755
      %v1771 = vadd.f32 %v1657, %v1757
      %v1772 = vadd.f32 %v1658, %v1760
      %v1773 = vadd.f32 %v1659, %v1762
      %v1774 = vld [vmem:[%s398 + $0x2c] sm:$0x3]
      %s1775 = scalar_lea.vmem %s3, 26
      %v1776 = vld [vmem:[%s1775] sm:$0x3]
      %v1778 = vunpack.c.l.b16 %v1774
      %v1779 = vpack.c.b16 %v1778, %v1778
      %v1781 = vshrl.u32 %v1695, 16
      %v1783 = vrot.slane %v1781, 1
      %v1784 = vshll.u32 %v1695, 16
      %v1786 = vrot.slane %v1784, 2
      %v1787 = vor.u32 %v1783, %v1786
      %v1789 = vshrl.u32 %v1696, 16
      %v1791 = vrot.slane %v1789, 1
      %v1792 = vshll.u32 %v1696, 16
      %v1794 = vrot.slane %v1792, 2
      %v1795 = vor.u32 %v1791, %v1794
      %v1796 = vsel %vm823, %v1787, %v1795
      %v1798 = vshrl.u32 %v1697, 16
      %v1800 = vrot.slane %v1798, 1
      %v1801 = vshll.u32 %v1697, 16
      %v1803 = vrot.slane %v1801, 2
      %v1804 = vor.u32 %v1800, %v1803
      %v1805 = vsel %vm823, %v1795, %v1804
      %v1807 = vshrl.u32 %v1698, 16
      %v1809 = vrot.slane %v1807, 1
      %v1810 = vshll.u32 %v1698, 16
      %v1812 = vrot.slane %v1810, 2
      %v1813 = vor.u32 %v1809, %v1812
      %v1814 = vsel %vm823, %v1804, %v1813
      %v1816 = vshrl.u32 %v1699, 16
      %v1818 = vrot.slane %v1816, 1
      %v1819 = vshll.u32 %v1699, 16
      %v1821 = vrot.slane %v1819, 2
      %v1822 = vor.u32 %v1818, %v1821
      %v1823 = vsel %vm823, %v1813, %v1822
      %v1825 = vshrl.u32 %v1779, 16
      %v1827 = vrot.slane %v1825, 1
      %v1828 = vshll.u32 %v1779, 16
      %v1830 = vrot.slane %v1828, 2
      %v1831 = vor.u32 %v1827, %v1830
      %v1832 = vsel %vm823, %v1822, %v1831
      %v1834 = vsel %vm522, %v1796, 0
      %v1837 = vsel %vm522, %v1805, 0
      %v1840 = vsel %vm522, %v1814, 0
      %v1843 = vsel %vm522, %v1823, 0
      %v1846 = vsel %vm522, %v1832, 0
      %v1849 = vsel %vm538, %v1776, 0
      %1851 = vmatpush.bf16.msra.mxu0 0
      %1852 = vmatpush.bf16.msra.mxu0 0
      %1853 = vmatpush.bf16.msra.mxu0 0
      %1854 = vmatpush.bf16.msra.mxu0 0
      %1855 = vmatpush.bf16.msra.mxu0 0
      %1856 = vmatpush.bf16.msra.mxu0 0
      %1857 = vmatpush.bf16.msra.mxu0 0
      %1858 = vmatpush.bf16.msra.mxu0 %v1849
      %1859 = vmatmul.bf16.gmra.mxu0 %v1834
      %v1860 = vpop.f32.mrf.mxu0
      %v1861 = vadd.f32 0.0, %v1860
      %v1862 = vpop.f32.mrf.mxu0
      %v1863 = vadd.f32 0.0, %v1862
      %1864 = vmatmul.bf16.gmra.mxu0 %v1837
      %v1865 = vpop.f32.mrf.mxu0
      %v1866 = vadd.f32 0.0, %v1865
      %v1867 = vpop.f32.mrf.mxu0
      %v1868 = vadd.f32 0.0, %v1867
      %1869 = vmatmul.bf16.gmra.mxu0 %v1840
      %v1870 = vpop.f32.mrf.mxu0
      %v1871 = vadd.f32 0.0, %v1870
      %v1872 = vpop.f32.mrf.mxu0
      %v1873 = vadd.f32 0.0, %v1872
      %1874 = vmatmul.bf16.gmra.mxu0 %v1843
      %v1875 = vpop.f32.mrf.mxu0
      %v1876 = vadd.f32 0.0, %v1875
      %v1877 = vpop.f32.mrf.mxu0
      %v1878 = vadd.f32 0.0, %v1877
      %1879 = vmatmul.bf16.gmra.mxu0 %v1846
      %v1880 = vpop.f32.mrf.mxu0
      %v1881 = vadd.f32 0.0, %v1880
      %v1882 = vpop.f32.mrf.mxu0
      %v1883 = vadd.f32 0.0, %v1882
      %1884 = vdwg.mxu0
      %v1885 = vadd.f32 %v1764, %v1861
      %v1886 = vadd.f32 %v1765, %v1863
      %v1887 = vadd.f32 %v1766, %v1866
      %v1888 = vadd.f32 %v1767, %v1868
      %v1889 = vadd.f32 %v1768, %v1871
      %v1890 = vadd.f32 %v1769, %v1873
      %v1891 = vadd.f32 %v1770, %v1876
      %v1892 = vadd.f32 %v1771, %v1878
      %v1893 = vadd.f32 %v1772, %v1881
      %v1894 = vadd.f32 %v1773, %v1883
      %v1895 = vld [vmem:[%s398 + $0x4] sm:$0xc]
      %s1896 = scalar_lea.vmem %s3, 28
      %v1897 = vld [vmem:[%s1896] sm:$0x3]
      %v1899 = vunpack.c.l.b16 %v1895
      %v1900 = vpack.c.b16 %v1685, %v1899
      %v1901 = vrot.slane %v1900, 2
      %v1902 = vrot.slane %v1696, 2
      %v1903 = vsel %vm945, %v1901, %v1902
      %v1904 = vrot.slane %v1697, 2
      %v1905 = vsel %vm945, %v1902, %v1904
      %v1906 = vrot.slane %v1698, 2
      %v1907 = vsel %vm945, %v1904, %v1906
      %v1908 = vrot.slane %v1699, 2
      %v1909 = vsel %vm945, %v1906, %v1908
      %v1910 = vrot.slane %v1779, 2
      %v1911 = vsel %vm945, %v1908, %v1910
      %v1913 = vsel %vm522, %v1903, 0
      %v1916 = vsel %vm522, %v1905, 0
      %v1919 = vsel %vm522, %v1907, 0
      %v1922 = vsel %vm522, %v1909, 0
      %v1925 = vsel %vm522, %v1911, 0
      %v1928 = vsel %vm538, %v1897, 0
      %1930 = vmatpush.bf16.msra.mxu0 0
      %1931 = vmatpush.bf16.msra.mxu0 0
      %1932 = vmatpush.bf16.msra.mxu0 0
      %1933 = vmatpush.bf16.msra.mxu0 0
      %1934 = vmatpush.bf16.msra.mxu0 0
      %1935 = vmatpush.bf16.msra.mxu0 0
      %1936 = vmatpush.bf16.msra.mxu0 0
      %1937 = vmatpush.bf16.msra.mxu0 %v1928
      %1938 = vmatmul.bf16.gmra.mxu0 %v1913
      %v1939 = vpop.f32.mrf.mxu0
      %v1940 = vadd.f32 0.0, %v1939
      %v1941 = vpop.f32.mrf.mxu0
      %v1942 = vadd.f32 0.0, %v1941
      %1943 = vmatmul.bf16.gmra.mxu0 %v1916
      %v1944 = vpop.f32.mrf.mxu0
      %v1945 = vadd.f32 0.0, %v1944
      %v1946 = vpop.f32.mrf.mxu0
      %v1947 = vadd.f32 0.0, %v1946
      %1948 = vmatmul.bf16.gmra.mxu0 %v1919
      %v1949 = vpop.f32.mrf.mxu0
      %v1950 = vadd.f32 0.0, %v1949
      %v1951 = vpop.f32.mrf.mxu0
      %v1952 = vadd.f32 0.0, %v1951
      %1953 = vmatmul.bf16.gmra.mxu0 %v1922
      %v1954 = vpop.f32.mrf.mxu0
      %v1955 = vadd.f32 0.0, %v1954
      %v1956 = vpop.f32.mrf.mxu0
      %v1957 = vadd.f32 0.0, %v1956
      %1958 = vmatmul.bf16.gmra.mxu0 %v1925
      %v1959 = vpop.f32.mrf.mxu0
      %v1960 = vadd.f32 0.0, %v1959
      %v1961 = vpop.f32.mrf.mxu0
      %v1962 = vadd.f32 0.0, %v1961
      %1963 = vdwg.mxu0
      %v1964 = vadd.f32 %v1885, %v1940
      %v1965 = vadd.f32 %v1886, %v1942
      %v1966 = vadd.f32 %v1887, %v1945
      %v1967 = vadd.f32 %v1888, %v1947
      %v1968 = vadd.f32 %v1889, %v1950
      %v1969 = vadd.f32 %v1890, %v1952
      %v1970 = vadd.f32 %v1891, %v1955
      %v1971 = vadd.f32 %v1892, %v1957
      %v1972 = vadd.f32 %v1893, %v1960
      %v1973 = vadd.f32 %v1894, %v1962
      %v1974 = vld [vmem:[%s398 + $0x8] sm:$0xc]
      %v1975 = vld [vmem:[%s398 + $0xc] sm:$0xf]
      %v1976 = vld [vmem:[%s398 + $0x10] sm:$0xf]
      %v1977 = vld [vmem:[%s398 + $0x14] sm:$0xf]
      %v1978 = vld [vmem:[%s398 + $0x18] sm:$0xf]
      %v1979 = vld [vmem:[%s398 + $0x1c] sm:$0xf]
      %v1980 = vld [vmem:[%s398 + $0x20] sm:$0xf]
      %v1981 = vld [vmem:[%s398 + $0x24] sm:$0xf]
      %v1982 = vld [vmem:[%s398 + $0x28] sm:$0xf]
      %v1983 = vld [vmem:[%s398 + $0x2c] sm:$0xf]
      %v1984 = vld [vmem:[%s398 + $0x30] sm:$0x3]
      %s1985 = scalar_lea.vmem %s3, 30
      %v1986 = vld [vmem:[%s1985] sm:$0x3]
      %v1998 = vunpack.c.l.b16 %v1974
      %v1999 = vunpack.c.l.b16 %v1975
      %v2000 = vunpack.c.l.b16 %v1976
      %v2001 = vunpack.c.l.b16 %v1977
      %v2002 = vunpack.c.l.b16 %v1978
      %v2003 = vunpack.c.l.b16 %v1979
      %v2004 = vunpack.c.l.b16 %v1980
      %v2005 = vunpack.c.l.b16 %v1981
      %v2006 = vunpack.c.l.b16 %v1982
      %v2007 = vunpack.c.l.b16 %v1983
      %v2008 = vunpack.c.l.b16 %v1984
      %v2009 = vpack.c.b16 %v1999, %v1998
      %v2010 = vpack.c.b16 %v2001, %v2000
      %v2011 = vpack.c.b16 %v2003, %v2002
      %v2012 = vpack.c.b16 %v2005, %v2004
      %v2013 = vpack.c.b16 %v2007, %v2006
      %v2014 = vpack.c.b16 %v2008, %v2008
      %v2015 = vrot.slane %v2009, 2
      %v2016 = vrot.slane %v2010, 2
      %v2017 = vsel %vm945, %v2015, %v2016
      %v2018 = vrot.slane %v2011, 2
      %v2019 = vsel %vm945, %v2016, %v2018
      %v2020 = vrot.slane %v2012, 2
      %v2021 = vsel %vm945, %v2018, %v2020
      %v2022 = vrot.slane %v2013, 2
      %v2023 = vsel %vm945, %v2020, %v2022
      %v2024 = vrot.slane %v2014, 2
      %v2025 = vsel %vm945, %v2022, %v2024
      %v2027 = vsel %vm522, %v2017, 0
      %v2030 = vsel %vm522, %v2019, 0
      %v2033 = vsel %vm522, %v2021, 0
      %v2036 = vsel %vm522, %v2023, 0
      %v2039 = vsel %vm522, %v2025, 0
      %v2042 = vsel %vm538, %v1986, 0
      %2044 = vmatpush.bf16.msra.mxu0 0
      %2045 = vmatpush.bf16.msra.mxu0 0
      %2046 = vmatpush.bf16.msra.mxu0 0
      %2047 = vmatpush.bf16.msra.mxu0 0
      %2048 = vmatpush.bf16.msra.mxu0 0
      %2049 = vmatpush.bf16.msra.mxu0 0
      %2050 = vmatpush.bf16.msra.mxu0 0
      %2051 = vmatpush.bf16.msra.mxu0 %v2042
      %2052 = vmatmul.bf16.gmra.mxu0 %v2027
      %v2053 = vpop.f32.mrf.mxu0
      %v2054 = vadd.f32 0.0, %v2053
      %v2055 = vpop.f32.mrf.mxu0
      %v2056 = vadd.f32 0.0, %v2055
      %2057 = vmatmul.bf16.gmra.mxu0 %v2030
      %v2058 = vpop.f32.mrf.mxu0
      %v2059 = vadd.f32 0.0, %v2058
      %v2060 = vpop.f32.mrf.mxu0
      %v2061 = vadd.f32 0.0, %v2060
      %2062 = vmatmul.bf16.gmra.mxu0 %v2033
      %v2063 = vpop.f32.mrf.mxu0
      %v2064 = vadd.f32 0.0, %v2063
      %v2065 = vpop.f32.mrf.mxu0
      %v2066 = vadd.f32 0.0, %v2065
      %2067 = vmatmul.bf16.gmra.mxu0 %v2036
      %v2068 = vpop.f32.mrf.mxu0
      %v2069 = vadd.f32 0.0, %v2068
      %v2070 = vpop.f32.mrf.mxu0
      %v2071 = vadd.f32 0.0, %v2070
      %2072 = vmatmul.bf16.gmra.mxu0 %v2039
      %v2073 = vpop.f32.mrf.mxu0
      %v2074 = vadd.f32 0.0, %v2073
      %v2075 = vpop.f32.mrf.mxu0
      %v2076 = vadd.f32 0.0, %v2075
      %2077 = vdwg.mxu0
      %v2078 = vadd.f32 %v1964, %v2054
      %v2079 = vadd.f32 %v1965, %v2056
      %v2080 = vadd.f32 %v1966, %v2059
      %v2081 = vadd.f32 %v1967, %v2061
      %v2082 = vadd.f32 %v1968, %v2064
      %v2083 = vadd.f32 %v1969, %v2066
      %v2084 = vadd.f32 %v1970, %v2069
      %v2085 = vadd.f32 %v1971, %v2071
      %v2086 = vadd.f32 %v1972, %v2074
      %v2087 = vadd.f32 %v1973, %v2076
      %v2088 = vld [vmem:[%s398 + $0x30] sm:$0x7]
      %s2089 = scalar_lea.vmem %s3, 32
      %v2090 = vld [vmem:[%s2089] sm:$0x3]
      %v2092 = vunpack.c.l.b16 %v2088
      %v2093 = vpack.c.b16 %v2092, %v2092
      %v2095 = vshrl.u32 %v2009, 16
      %v2097 = vrot.slane %v2095, 2
      %v2098 = vshll.u32 %v2009, 16
      %v2100 = vrot.slane %v2098, 3
      %v2101 = vor.u32 %v2097, %v2100
      %v2103 = vshrl.u32 %v2010, 16
      %v2105 = vrot.slane %v2103, 2
      %v2106 = vshll.u32 %v2010, 16
      %v2108 = vrot.slane %v2106, 3
      %v2109 = vor.u32 %v2105, %v2108
      %v2110 = vsel %vm1139, %v2101, %v2109
      %v2112 = vshrl.u32 %v2011, 16
      %v2114 = vrot.slane %v2112, 2
      %v2115 = vshll.u32 %v2011, 16
      %v2117 = vrot.slane %v2115, 3
      %v2118 = vor.u32 %v2114, %v2117
      %v2119 = vsel %vm1139, %v2109, %v2118
      %v2121 = vshrl.u32 %v2012, 16
      %v2123 = vrot.slane %v2121, 2
      %v2124 = vshll.u32 %v2012, 16
      %v2126 = vrot.slane %v2124, 3
      %v2127 = vor.u32 %v2123, %v2126
      %v2128 = vsel %vm1139, %v2118, %v2127
      %v2130 = vshrl.u32 %v2013, 16
      %v2132 = vrot.slane %v2130, 2
      %v2133 = vshll.u32 %v2013, 16
      %v2135 = vrot.slane %v2133, 3
      %v2136 = vor.u32 %v2132, %v2135
      %v2137 = vsel %vm1139, %v2127, %v2136
      %v2139 = vshrl.u32 %v2093, 16
      %v2141 = vrot.slane %v2139, 2
      %v2142 = vshll.u32 %v2093, 16
      %v2144 = vrot.slane %v2142, 3
      %v2145 = vor.u32 %v2141, %v2144
      %v2146 = vsel %vm1139, %v2136, %v2145
      %v2148 = vsel %vm522, %v2110, 0
      %v2151 = vsel %vm522, %v2119, 0
      %v2154 = vsel %vm522, %v2128, 0
      %v2157 = vsel %vm522, %v2137, 0
      %v2160 = vsel %vm522, %v2146, 0
      %v2163 = vsel %vm538, %v2090, 0
      %2165 = vmatpush.bf16.msra.mxu0 0
      %2166 = vmatpush.bf16.msra.mxu0 0
      %2167 = vmatpush.bf16.msra.mxu0 0
      %2168 = vmatpush.bf16.msra.mxu0 0
      %2169 = vmatpush.bf16.msra.mxu0 0
      %2170 = vmatpush.bf16.msra.mxu0 0
      %2171 = vmatpush.bf16.msra.mxu0 0
      %2172 = vmatpush.bf16.msra.mxu0 %v2163
      %2173 = vmatmul.bf16.gmra.mxu0 %v2148
      %v2174 = vpop.f32.mrf.mxu0
      %v2175 = vadd.f32 0.0, %v2174
      %v2176 = vpop.f32.mrf.mxu0
      %v2177 = vadd.f32 0.0, %v2176
      %2178 = vmatmul.bf16.gmra.mxu0 %v2151
      %v2179 = vpop.f32.mrf.mxu0
      %v2180 = vadd.f32 0.0, %v2179
      %v2181 = vpop.f32.mrf.mxu0
      %v2182 = vadd.f32 0.0, %v2181
      %2183 = vmatmul.bf16.gmra.mxu0 %v2154
      %v2184 = vpop.f32.mrf.mxu0
      %v2185 = vadd.f32 0.0, %v2184
      %v2186 = vpop.f32.mrf.mxu0
      %v2187 = vadd.f32 0.0, %v2186
      %2188 = vmatmul.bf16.gmra.mxu0 %v2157
      %v2189 = vpop.f32.mrf.mxu0
      %v2190 = vadd.f32 0.0, %v2189
      %v2191 = vpop.f32.mrf.mxu0
      %v2192 = vadd.f32 0.0, %v2191
      %2193 = vmatmul.bf16.gmra.mxu0 %v2160
      %v2194 = vpop.f32.mrf.mxu0
      %v2195 = vadd.f32 0.0, %v2194
      %v2196 = vpop.f32.mrf.mxu0
      %v2197 = vadd.f32 0.0, %v2196
      %2198 = vdwg.mxu0
      %v2199 = vadd.f32 %v2078, %v2175
      %v2200 = vadd.f32 %v2079, %v2177
      %v2201 = vadd.f32 %v2080, %v2180
      %v2202 = vadd.f32 %v2081, %v2182
      %v2203 = vadd.f32 %v2082, %v2185
      %v2204 = vadd.f32 %v2083, %v2187
      %v2205 = vadd.f32 %v2084, %v2190
      %v2206 = vadd.f32 %v2085, %v2192
      %v2207 = vadd.f32 %v2086, %v2195
      %v2208 = vadd.f32 %v2087, %v2197
      %v2209 = vld [vmem:[%s398 + $0x8] sm:$0x8]
      %s2210 = scalar_lea.vmem %s3, 34
      %v2211 = vld [vmem:[%s2210] sm:$0x3]
      %v2213 = vunpack.c.l.b16 %v2209
      %v2214 = vpack.c.b16 %v1999, %v2213
      %v2215 = vrot.slane %v2214, 3
      %v2216 = vrot.slane %v2010, 3
      %v2217 = vsel %vm1261, %v2215, %v2216
      %v2218 = vrot.slane %v2011, 3
      %v2219 = vsel %vm1261, %v2216, %v2218
      %v2220 = vrot.slane %v2012, 3
      %v2221 = vsel %vm1261, %v2218, %v2220
      %v2222 = vrot.slane %v2013, 3
      %v2223 = vsel %vm1261, %v2220, %v2222
      %v2224 = vrot.slane %v2093, 3
      %v2225 = vsel %vm1261, %v2222, %v2224
      %v2227 = vsel %vm522, %v2217, 0
      %v2230 = vsel %vm522, %v2219, 0
      %v2233 = vsel %vm522, %v2221, 0
      %v2236 = vsel %vm522, %v2223, 0
      %v2239 = vsel %vm522, %v2225, 0
      %v2242 = vsel %vm538, %v2211, 0
      %2244 = vmatpush.bf16.msra.mxu0 0
      %2245 = vmatpush.bf16.msra.mxu0 0
      %2246 = vmatpush.bf16.msra.mxu0 0
      %2247 = vmatpush.bf16.msra.mxu0 0
      %2248 = vmatpush.bf16.msra.mxu0 0
      %2249 = vmatpush.bf16.msra.mxu0 0
      %2250 = vmatpush.bf16.msra.mxu0 0
      %2251 = vmatpush.bf16.msra.mxu0 %v2242
      %2252 = vmatmul.bf16.gmra.mxu0 %v2227
      %v2253 = vpop.f32.mrf.mxu0
      %v2254 = vadd.f32 0.0, %v2253
      %v2255 = vpop.f32.mrf.mxu0
      %v2256 = vadd.f32 0.0, %v2255
      %2257 = vmatmul.bf16.gmra.mxu0 %v2230
      %v2258 = vpop.f32.mrf.mxu0
      %v2259 = vadd.f32 0.0, %v2258
      %v2260 = vpop.f32.mrf.mxu0
      %v2261 = vadd.f32 0.0, %v2260
      %2262 = vmatmul.bf16.gmra.mxu0 %v2233
      %v2263 = vpop.f32.mrf.mxu0
      %v2264 = vadd.f32 0.0, %v2263
      %v2265 = vpop.f32.mrf.mxu0
      %v2266 = vadd.f32 0.0, %v2265
      %2267 = vmatmul.bf16.gmra.mxu0 %v2236
      %v2268 = vpop.f32.mrf.mxu0
      %v2269 = vadd.f32 0.0, %v2268
      %v2270 = vpop.f32.mrf.mxu0
      %v2271 = vadd.f32 0.0, %v2270
      %2272 = vmatmul.bf16.gmra.mxu0 %v2239
      %v2273 = vpop.f32.mrf.mxu0
      %v2274 = vadd.f32 0.0, %v2273
      %v2275 = vpop.f32.mrf.mxu0
      %v2276 = vadd.f32 0.0, %v2275
      %2277 = vdwg.mxu0
      %v2278 = vadd.f32 %v2199, %v2254
      %v2279 = vadd.f32 %v2200, %v2256
      %v2280 = vadd.f32 %v2201, %v2259
      %v2281 = vadd.f32 %v2202, %v2261
      %v2282 = vadd.f32 %v2203, %v2264
      %v2283 = vadd.f32 %v2204, %v2266
      %v2284 = vadd.f32 %v2205, %v2269
      %v2285 = vadd.f32 %v2206, %v2271
      %v2286 = vadd.f32 %v2207, %v2274
      %v2287 = vadd.f32 %v2208, %v2276
      %v2288 = vld [vmem:[%s409] sm:$0xf]
      %v2289 = vld [vmem:[%s409 + $0x4] sm:$0xf]
      %v2290 = vld [vmem:[%s409 + $0x8] sm:$0xf]
      %v2291 = vld [vmem:[%s409 + $0xc] sm:$0xf]
      %v2292 = vld [vmem:[%s409 + $0x10] sm:$0xf]
      %v2293 = vld [vmem:[%s409 + $0x14] sm:$0xf]
      %v2294 = vld [vmem:[%s409 + $0x18] sm:$0xf]
      %v2295 = vld [vmem:[%s409 + $0x1c] sm:$0xf]
      %v2296 = vld [vmem:[%s409 + $0x20] sm:$0xf]
      %v2297 = vld [vmem:[%s409 + $0x24] sm:$0xf]
      %s2298 = scalar_lea.vmem %s3, 36
      %v2299 = vld [vmem:[%s2298] sm:$0x3]
      %v2310 = vunpack.c.l.b16 %v2288
      %v2311 = vunpack.c.l.b16 %v2289
      %v2312 = vunpack.c.l.b16 %v2290
      %v2313 = vunpack.c.l.b16 %v2291
      %v2314 = vunpack.c.l.b16 %v2292
      %v2315 = vunpack.c.l.b16 %v2293
      %v2316 = vunpack.c.l.b16 %v2294
      %v2317 = vunpack.c.l.b16 %v2295
      %v2318 = vunpack.c.l.b16 %v2296
      %v2319 = vunpack.c.l.b16 %v2297
      %v2320 = vpack.c.b16 %v2311, %v2310
      %v2321 = vpack.c.b16 %v2313, %v2312
      %v2322 = vpack.c.b16 %v2315, %v2314
      %v2323 = vpack.c.b16 %v2317, %v2316
      %v2324 = vpack.c.b16 %v2319, %v2318
      %v2326 = vsel %vm522, %v2320, 0
      %v2329 = vsel %vm522, %v2321, 0
      %v2332 = vsel %vm522, %v2322, 0
      %v2335 = vsel %vm522, %v2323, 0
      %v2338 = vsel %vm522, %v2324, 0
      %v2341 = vsel %vm538, %v2299, 0
      %2343 = vmatpush.bf16.msra.mxu0 0
      %2344 = vmatpush.bf16.msra.mxu0 0
      %2345 = vmatpush.bf16.msra.mxu0 0
      %2346 = vmatpush.bf16.msra.mxu0 0
      %2347 = vmatpush.bf16.msra.mxu0 0
      %2348 = vmatpush.bf16.msra.mxu0 0
      %2349 = vmatpush.bf16.msra.mxu0 0
      %2350 = vmatpush.bf16.msra.mxu0 %v2341
      %2351 = vmatmul.bf16.gmra.mxu0 %v2326
      %v2352 = vpop.f32.mrf.mxu0
      %v2353 = vadd.f32 0.0, %v2352
      %v2354 = vpop.f32.mrf.mxu0
      %v2355 = vadd.f32 0.0, %v2354
      %2356 = vmatmul.bf16.gmra.mxu0 %v2329
      %v2357 = vpop.f32.mrf.mxu0
      %v2358 = vadd.f32 0.0, %v2357
      %v2359 = vpop.f32.mrf.mxu0
      %v2360 = vadd.f32 0.0, %v2359
      %2361 = vmatmul.bf16.gmra.mxu0 %v2332
      %v2362 = vpop.f32.mrf.mxu0
      %v2363 = vadd.f32 0.0, %v2362
      %v2364 = vpop.f32.mrf.mxu0
      %v2365 = vadd.f32 0.0, %v2364
      %2366 = vmatmul.bf16.gmra.mxu0 %v2335
      %v2367 = vpop.f32.mrf.mxu0
      %v2368 = vadd.f32 0.0, %v2367
      %v2369 = vpop.f32.mrf.mxu0
      %v2370 = vadd.f32 0.0, %v2369
      %2371 = vmatmul.bf16.gmra.mxu0 %v2338
      %v2372 = vpop.f32.mrf.mxu0
      %v2373 = vadd.f32 0.0, %v2372
      %v2374 = vpop.f32.mrf.mxu0
      %v2375 = vadd.f32 0.0, %v2374
      %2376 = vdwg.mxu0
      %v2377 = vadd.f32 %v2278, %v2353
      %v2378 = vadd.f32 %v2279, %v2355
      %v2379 = vadd.f32 %v2280, %v2358
      %v2380 = vadd.f32 %v2281, %v2360
      %v2381 = vadd.f32 %v2282, %v2363
      %v2382 = vadd.f32 %v2283, %v2365
      %v2383 = vadd.f32 %v2284, %v2368
      %v2384 = vadd.f32 %v2285, %v2370
      %v2385 = vadd.f32 %v2286, %v2373
      %v2386 = vadd.f32 %v2287, %v2375
      %v2387 = vld [vmem:[%s409] sm:$0xf]
      %v2388 = vld [vmem:[%s409 + $0x4] sm:$0xf]
      %v2389 = vld [vmem:[%s409 + $0x8] sm:$0xf]
      %v2390 = vld [vmem:[%s409 + $0xc] sm:$0xf]
      %v2391 = vld [vmem:[%s409 + $0x10] sm:$0xf]
      %v2392 = vld [vmem:[%s409 + $0x14] sm:$0xf]
      %v2393 = vld [vmem:[%s409 + $0x18] sm:$0xf]
      %v2394 = vld [vmem:[%s409 + $0x1c] sm:$0xf]
      %v2395 = vld [vmem:[%s409 + $0x20] sm:$0xf]
      %v2396 = vld [vmem:[%s409 + $0x24] sm:$0xf]
      %v2397 = vld [vmem:[%s409 + $0x28] sm:$0x1]
      %s2398 = scalar_lea.vmem %s3, 38
      %v2399 = vld [vmem:[%s2398] sm:$0x3]
      %v2411 = vunpack.c.l.b16 %v2387
      %v2412 = vunpack.c.l.b16 %v2388
      %v2413 = vunpack.c.l.b16 %v2389
      %v2414 = vunpack.c.l.b16 %v2390
      %v2415 = vunpack.c.l.b16 %v2391
      %v2416 = vunpack.c.l.b16 %v2392
      %v2417 = vunpack.c.l.b16 %v2393
      %v2418 = vunpack.c.l.b16 %v2394
      %v2419 = vunpack.c.l.b16 %v2395
      %v2420 = vunpack.c.l.b16 %v2396
      %v2421 = vunpack.c.l.b16 %v2397
      %v2422 = vpack.c.b16 %v2412, %v2411
      %v2423 = vpack.c.b16 %v2414, %v2413
      %v2424 = vpack.c.b16 %v2416, %v2415
      %v2425 = vpack.c.b16 %v2418, %v2417
      %v2426 = vpack.c.b16 %v2420, %v2419
      %v2427 = vpack.c.b16 %v2421, %v2421
      %v2429 = vshrl.u32 %v2422, 16
      %v2431 = vshll.u32 %v2422, 16
      %v2433 = vrot.slane %v2431, 1
      %v2434 = vor.u32 %v2429, %v2433
      %v2436 = vshll.u32 %v2423, 16
      %v2438 = vrot.slane %v2436, 1
      %v2439 = vsel %vm477, %v2434, %v2438
      %v2440 = vshrl.u32 %v2423, 16
      %v2442 = vor.u32 %v2440, %v2438
      %v2444 = vshll.u32 %v2424, 16
      %v2446 = vrot.slane %v2444, 1
      %v2447 = vsel %vm477, %v2442, %v2446
      %v2448 = vshrl.u32 %v2424, 16
      %v2450 = vor.u32 %v2448, %v2446
      %v2452 = vshll.u32 %v2425, 16
      %v2454 = vrot.slane %v2452, 1
      %v2455 = vsel %vm477, %v2450, %v2454
      %v2456 = vshrl.u32 %v2425, 16
      %v2458 = vor.u32 %v2456, %v2454
      %v2460 = vshll.u32 %v2426, 16
      %v2462 = vrot.slane %v2460, 1
      %v2463 = vsel %vm477, %v2458, %v2462
      %v2464 = vshrl.u32 %v2426, 16
      %v2466 = vor.u32 %v2464, %v2462
      %v2468 = vshll.u32 %v2427, 16
      %v2470 = vrot.slane %v2468, 1
      %v2471 = vsel %vm477, %v2466, %v2470
      %v2473 = vsel %vm522, %v2439, 0
      %v2476 = vsel %vm522, %v2447, 0
      %v2479 = vsel %vm522, %v2455, 0
      %v2482 = vsel %vm522, %v2463, 0
      %v2485 = vsel %vm522, %v2471, 0
      %v2488 = vsel %vm538, %v2399, 0
      %2490 = vmatpush.bf16.msra.mxu0 0
      %2491 = vmatpush.bf16.msra.mxu0 0
      %2492 = vmatpush.bf16.msra.mxu0 0
      %2493 = vmatpush.bf16.msra.mxu0 0
      %2494 = vmatpush.bf16.msra.mxu0 0
      %2495 = vmatpush.bf16.msra.mxu0 0
      %2496 = vmatpush.bf16.msra.mxu0 0
      %2497 = vmatpush.bf16.msra.mxu0 %v2488
      %2498 = vmatmul.bf16.gmra.mxu0 %v2473
      %v2499 = vpop.f32.mrf.mxu0
      %v2500 = vadd.f32 0.0, %v2499
      %v2501 = vpop.f32.mrf.mxu0
      %v2502 = vadd.f32 0.0, %v2501
      %2503 = vmatmul.bf16.gmra.mxu0 %v2476
      %v2504 = vpop.f32.mrf.mxu0
      %v2505 = vadd.f32 0.0, %v2504
      %v2506 = vpop.f32.mrf.mxu0
      %v2507 = vadd.f32 0.0, %v2506
      %2508 = vmatmul.bf16.gmra.mxu0 %v2479
      %v2509 = vpop.f32.mrf.mxu0
      %v2510 = vadd.f32 0.0, %v2509
      %v2511 = vpop.f32.mrf.mxu0
      %v2512 = vadd.f32 0.0, %v2511
      %2513 = vmatmul.bf16.gmra.mxu0 %v2482
      %v2514 = vpop.f32.mrf.mxu0
      %v2515 = vadd.f32 0.0, %v2514
      %v2516 = vpop.f32.mrf.mxu0
      %v2517 = vadd.f32 0.0, %v2516
      %2518 = vmatmul.bf16.gmra.mxu0 %v2485
      %v2519 = vpop.f32.mrf.mxu0
      %v2520 = vadd.f32 0.0, %v2519
      %v2521 = vpop.f32.mrf.mxu0
      %v2522 = vadd.f32 0.0, %v2521
      %2523 = vdwg.mxu0
      %v2524 = vadd.f32 %v2377, %v2500
      %v2525 = vadd.f32 %v2378, %v2502
      %v2526 = vadd.f32 %v2379, %v2505
      %v2527 = vadd.f32 %v2380, %v2507
      %v2528 = vadd.f32 %v2381, %v2510
      %v2529 = vadd.f32 %v2382, %v2512
      %v2530 = vadd.f32 %v2383, %v2515
      %v2531 = vadd.f32 %v2384, %v2517
      %v2532 = vadd.f32 %v2385, %v2520
      %v2533 = vadd.f32 %v2386, %v2522
      %v2534 = vld [vmem:[%s409] sm:$0xe]
      %s2535 = scalar_lea.vmem %s3, 40
      %v2536 = vld [vmem:[%s2535] sm:$0x3]
      %v2538 = vunpack.c.l.b16 %v2534
      %v2539 = vpack.c.b16 %v2412, %v2538
      %v2540 = vrot.slane %v2539, 1
      %v2541 = vrot.slane %v2423, 1
      %v2542 = vsel %vm629, %v2540, %v2541
      %v2543 = vrot.slane %v2424, 1
      %v2544 = vsel %vm629, %v2541, %v2543
      %v2545 = vrot.slane %v2425, 1
      %v2546 = vsel %vm629, %v2543, %v2545
      %v2547 = vrot.slane %v2426, 1
      %v2548 = vsel %vm629, %v2545, %v2547
      %v2549 = vrot.slane %v2427, 1
      %v2550 = vsel %vm629, %v2547, %v2549
      %v2552 = vsel %vm522, %v2542, 0
      %v2555 = vsel %vm522, %v2544, 0
      %v2558 = vsel %vm522, %v2546, 0
      %v2561 = vsel %vm522, %v2548, 0
      %v2564 = vsel %vm522, %v2550, 0
      %v2567 = vsel %vm538, %v2536, 0
      %2569 = vmatpush.bf16.msra.mxu0 0
      %2570 = vmatpush.bf16.msra.mxu0 0
      %2571 = vmatpush.bf16.msra.mxu0 0
      %2572 = vmatpush.bf16.msra.mxu0 0
      %2573 = vmatpush.bf16.msra.mxu0 0
      %2574 = vmatpush.bf16.msra.mxu0 0
      %2575 = vmatpush.bf16.msra.mxu0 0
      %2576 = vmatpush.bf16.msra.mxu0 %v2567
      %2577 = vmatmul.bf16.gmra.mxu0 %v2552
      %v2578 = vpop.f32.mrf.mxu0
      %v2579 = vadd.f32 0.0, %v2578
      %v2580 = vpop.f32.mrf.mxu0
      %v2581 = vadd.f32 0.0, %v2580
      %2582 = vmatmul.bf16.gmra.mxu0 %v2555
      %v2583 = vpop.f32.mrf.mxu0
      %v2584 = vadd.f32 0.0, %v2583
      %v2585 = vpop.f32.mrf.mxu0
      %v2586 = vadd.f32 0.0, %v2585
      %2587 = vmatmul.bf16.gmra.mxu0 %v2558
      %v2588 = vpop.f32.mrf.mxu0
      %v2589 = vadd.f32 0.0, %v2588
      %v2590 = vpop.f32.mrf.mxu0
      %v2591 = vadd.f32 0.0, %v2590
      %2592 = vmatmul.bf16.gmra.mxu0 %v2561
      %v2593 = vpop.f32.mrf.mxu0
      %v2594 = vadd.f32 0.0, %v2593
      %v2595 = vpop.f32.mrf.mxu0
      %v2596 = vadd.f32 0.0, %v2595
      %2597 = vmatmul.bf16.gmra.mxu0 %v2564
      %v2598 = vpop.f32.mrf.mxu0
      %v2599 = vadd.f32 0.0, %v2598
      %v2600 = vpop.f32.mrf.mxu0
      %v2601 = vadd.f32 0.0, %v2600
      %2602 = vdwg.mxu0
      %v2603 = vadd.f32 %v2524, %v2579
      %v2604 = vadd.f32 %v2525, %v2581
      %v2605 = vadd.f32 %v2526, %v2584
      %v2606 = vadd.f32 %v2527, %v2586
      %v2607 = vadd.f32 %v2528, %v2589
      %v2608 = vadd.f32 %v2529, %v2591
      %v2609 = vadd.f32 %v2530, %v2594
      %v2610 = vadd.f32 %v2531, %v2596
      %v2611 = vadd.f32 %v2532, %v2599
      %v2612 = vadd.f32 %v2533, %v2601
      %v2613 = vld [vmem:[%s409 + $0x4] sm:$0xe]
      %v2614 = vld [vmem:[%s409 + $0x8] sm:$0xf]
      %v2615 = vld [vmem:[%s409 + $0xc] sm:$0xf]
      %v2616 = vld [vmem:[%s409 + $0x10] sm:$0xf]
      %v2617 = vld [vmem:[%s409 + $0x14] sm:$0xf]
      %v2618 = vld [vmem:[%s409 + $0x18] sm:$0xf]
      %v2619 = vld [vmem:[%s409 + $0x1c] sm:$0xf]
      %v2620 = vld [vmem:[%s409 + $0x20] sm:$0xf]
      %v2621 = vld [vmem:[%s409 + $0x24] sm:$0xf]
      %v2622 = vld [vmem:[%s409 + $0x28] sm:$0xf]
      %v2623 = vld [vmem:[%s409 + $0x2c] sm:$0x1]
      %s2624 = scalar_lea.vmem %s3, 42
      %v2625 = vld [vmem:[%s2624] sm:$0x3]
      %v2637 = vunpack.c.l.b16 %v2613
      %v2638 = vunpack.c.l.b16 %v2614
      %v2639 = vunpack.c.l.b16 %v2615
      %v2640 = vunpack.c.l.b16 %v2616
      %v2641 = vunpack.c.l.b16 %v2617
      %v2642 = vunpack.c.l.b16 %v2618
      %v2643 = vunpack.c.l.b16 %v2619
      %v2644 = vunpack.c.l.b16 %v2620
      %v2645 = vunpack.c.l.b16 %v2621
      %v2646 = vunpack.c.l.b16 %v2622
      %v2647 = vunpack.c.l.b16 %v2623
      %v2648 = vpack.c.b16 %v2638, %v2637
      %v2649 = vpack.c.b16 %v2640, %v2639
      %v2650 = vpack.c.b16 %v2642, %v2641
      %v2651 = vpack.c.b16 %v2644, %v2643
      %v2652 = vpack.c.b16 %v2646, %v2645
      %v2653 = vpack.c.b16 %v2647, %v2647
      %v2654 = vrot.slane %v2648, 1
      %v2655 = vrot.slane %v2649, 1
      %v2656 = vsel %vm629, %v2654, %v2655
      %v2657 = vrot.slane %v2650, 1
      %v2658 = vsel %vm629, %v2655, %v2657
      %v2659 = vrot.slane %v2651, 1
      %v2660 = vsel %vm629, %v2657, %v2659
      %v2661 = vrot.slane %v2652, 1
      %v2662 = vsel %vm629, %v2659, %v2661
      %v2663 = vrot.slane %v2653, 1
      %v2664 = vsel %vm629, %v2661, %v2663
      %v2666 = vsel %vm522, %v2656, 0
      %v2669 = vsel %vm522, %v2658, 0
      %v2672 = vsel %vm522, %v2660, 0
      %v2675 = vsel %vm522, %v2662, 0
      %v2678 = vsel %vm522, %v2664, 0
      %v2681 = vsel %vm538, %v2625, 0
      %2683 = vmatpush.bf16.msra.mxu0 0
      %2684 = vmatpush.bf16.msra.mxu0 0
      %2685 = vmatpush.bf16.msra.mxu0 0
      %2686 = vmatpush.bf16.msra.mxu0 0
      %2687 = vmatpush.bf16.msra.mxu0 0
      %2688 = vmatpush.bf16.msra.mxu0 0
      %2689 = vmatpush.bf16.msra.mxu0 0
      %2690 = vmatpush.bf16.msra.mxu0 %v2681
      %2691 = vmatmul.bf16.gmra.mxu0 %v2666
      %v2692 = vpop.f32.mrf.mxu0
      %v2693 = vadd.f32 0.0, %v2692
      %v2694 = vpop.f32.mrf.mxu0
      %v2695 = vadd.f32 0.0, %v2694
      %2696 = vmatmul.bf16.gmra.mxu0 %v2669
      %v2697 = vpop.f32.mrf.mxu0
      %v2698 = vadd.f32 0.0, %v2697
      %v2699 = vpop.f32.mrf.mxu0
      %v2700 = vadd.f32 0.0, %v2699
      %2701 = vmatmul.bf16.gmra.mxu0 %v2672
      %v2702 = vpop.f32.mrf.mxu0
      %v2703 = vadd.f32 0.0, %v2702
      %v2704 = vpop.f32.mrf.mxu0
      %v2705 = vadd.f32 0.0, %v2704
      %2706 = vmatmul.bf16.gmra.mxu0 %v2675
      %v2707 = vpop.f32.mrf.mxu0
      %v2708 = vadd.f32 0.0, %v2707
      %v2709 = vpop.f32.mrf.mxu0
      %v2710 = vadd.f32 0.0, %v2709
      %2711 = vmatmul.bf16.gmra.mxu0 %v2678
      %v2712 = vpop.f32.mrf.mxu0
      %v2713 = vadd.f32 0.0, %v2712
      %v2714 = vpop.f32.mrf.mxu0
      %v2715 = vadd.f32 0.0, %v2714
      %2716 = vdwg.mxu0
      %v2717 = vadd.f32 %v2603, %v2693
      %v2718 = vadd.f32 %v2604, %v2695
      %v2719 = vadd.f32 %v2605, %v2698
      %v2720 = vadd.f32 %v2606, %v2700
      %v2721 = vadd.f32 %v2607, %v2703
      %v2722 = vadd.f32 %v2608, %v2705
      %v2723 = vadd.f32 %v2609, %v2708
      %v2724 = vadd.f32 %v2610, %v2710
      %v2725 = vadd.f32 %v2611, %v2713
      %v2726 = vadd.f32 %v2612, %v2715
      %v2727 = vld [vmem:[%s409 + $0x2c] sm:$0x3]
      %s2728 = scalar_lea.vmem %s3, 44
      %v2729 = vld [vmem:[%s2728] sm:$0x3]
      %v2731 = vunpack.c.l.b16 %v2727
      %v2732 = vpack.c.b16 %v2731, %v2731
      %v2734 = vshrl.u32 %v2648, 16
      %v2736 = vrot.slane %v2734, 1
      %v2737 = vshll.u32 %v2648, 16
      %v2739 = vrot.slane %v2737, 2
      %v2740 = vor.u32 %v2736, %v2739
      %v2742 = vshrl.u32 %v2649, 16
      %v2744 = vrot.slane %v2742, 1
      %v2745 = vshll.u32 %v2649, 16
      %v2747 = vrot.slane %v2745, 2
      %v2748 = vor.u32 %v2744, %v2747
      %v2749 = vsel %vm823, %v2740, %v2748
      %v2751 = vshrl.u32 %v2650, 16
      %v2753 = vrot.slane %v2751, 1
      %v2754 = vshll.u32 %v2650, 16
      %v2756 = vrot.slane %v2754, 2
      %v2757 = vor.u32 %v2753, %v2756
      %v2758 = vsel %vm823, %v2748, %v2757
      %v2760 = vshrl.u32 %v2651, 16
      %v2762 = vrot.slane %v2760, 1
      %v2763 = vshll.u32 %v2651, 16
      %v2765 = vrot.slane %v2763, 2
      %v2766 = vor.u32 %v2762, %v2765
      %v2767 = vsel %vm823, %v2757, %v2766
      %v2769 = vshrl.u32 %v2652, 16
      %v2771 = vrot.slane %v2769, 1
      %v2772 = vshll.u32 %v2652, 16
      %v2774 = vrot.slane %v2772, 2
      %v2775 = vor.u32 %v2771, %v2774
      %v2776 = vsel %vm823, %v2766, %v2775
      %v2778 = vshrl.u32 %v2732, 16
      %v2780 = vrot.slane %v2778, 1
      %v2781 = vshll.u32 %v2732, 16
      %v2783 = vrot.slane %v2781, 2
      %v2784 = vor.u32 %v2780, %v2783
      %v2785 = vsel %vm823, %v2775, %v2784
      %v2787 = vsel %vm522, %v2749, 0
      %v2790 = vsel %vm522, %v2758, 0
      %v2793 = vsel %vm522, %v2767, 0
      %v2796 = vsel %vm522, %v2776, 0
      %v2799 = vsel %vm522, %v2785, 0
      %v2802 = vsel %vm538, %v2729, 0
      %2804 = vmatpush.bf16.msra.mxu0 0
      %2805 = vmatpush.bf16.msra.mxu0 0
      %2806 = vmatpush.bf16.msra.mxu0 0
      %2807 = vmatpush.bf16.msra.mxu0 0
      %2808 = vmatpush.bf16.msra.mxu0 0
      %2809 = vmatpush.bf16.msra.mxu0 0
      %2810 = vmatpush.bf16.msra.mxu0 0
      %2811 = vmatpush.bf16.msra.mxu0 %v2802
      %2812 = vmatmul.bf16.gmra.mxu0 %v2787
      %v2813 = vpop.f32.mrf.mxu0
      %v2814 = vadd.f32 0.0, %v2813
      %v2815 = vpop.f32.mrf.mxu0
      %v2816 = vadd.f32 0.0, %v2815
      %2817 = vmatmul.bf16.gmra.mxu0 %v2790
      %v2818 = vpop.f32.mrf.mxu0
      %v2819 = vadd.f32 0.0, %v2818
      %v2820 = vpop.f32.mrf.mxu0
      %v2821 = vadd.f32 0.0, %v2820
      %2822 = vmatmul.bf16.gmra.mxu0 %v2793
      %v2823 = vpop.f32.mrf.mxu0
      %v2824 = vadd.f32 0.0, %v2823
      %v2825 = vpop.f32.mrf.mxu0
      %v2826 = vadd.f32 0.0, %v2825
      %2827 = vmatmul.bf16.gmra.mxu0 %v2796
      %v2828 = vpop.f32.mrf.mxu0
      %v2829 = vadd.f32 0.0, %v2828
      %v2830 = vpop.f32.mrf.mxu0
      %v2831 = vadd.f32 0.0, %v2830
      %2832 = vmatmul.bf16.gmra.mxu0 %v2799
      %v2833 = vpop.f32.mrf.mxu0
      %v2834 = vadd.f32 0.0, %v2833
      %v2835 = vpop.f32.mrf.mxu0
      %v2836 = vadd.f32 0.0, %v2835
      %2837 = vdwg.mxu0
      %v2838 = vadd.f32 %v2717, %v2814
      %v2839 = vadd.f32 %v2718, %v2816
      %v2840 = vadd.f32 %v2719, %v2819
      %v2841 = vadd.f32 %v2720, %v2821
      %v2842 = vadd.f32 %v2721, %v2824
      %v2843 = vadd.f32 %v2722, %v2826
      %v2844 = vadd.f32 %v2723, %v2829
      %v2845 = vadd.f32 %v2724, %v2831
      %v2846 = vadd.f32 %v2725, %v2834
      %v2847 = vadd.f32 %v2726, %v2836
      %v2848 = vld [vmem:[%s409 + $0x4] sm:$0xc]
      %s2849 = scalar_lea.vmem %s3, 46
      %v2850 = vld [vmem:[%s2849] sm:$0x3]
      %v2852 = vunpack.c.l.b16 %v2848
      %v2853 = vpack.c.b16 %v2638, %v2852
      %v2854 = vrot.slane %v2853, 2
      %v2855 = vrot.slane %v2649, 2
      %v2856 = vsel %vm945, %v2854, %v2855
      %v2857 = vrot.slane %v2650, 2
      %v2858 = vsel %vm945, %v2855, %v2857
      %v2859 = vrot.slane %v2651, 2
      %v2860 = vsel %vm945, %v2857, %v2859
      %v2861 = vrot.slane %v2652, 2
      %v2862 = vsel %vm945, %v2859, %v2861
      %v2863 = vrot.slane %v2732, 2
      %v2864 = vsel %vm945, %v2861, %v2863
      %v2866 = vsel %vm522, %v2856, 0
      %v2869 = vsel %vm522, %v2858, 0
      %v2872 = vsel %vm522, %v2860, 0
      %v2875 = vsel %vm522, %v2862, 0
      %v2878 = vsel %vm522, %v2864, 0
      %v2881 = vsel %vm538, %v2850, 0
      %2883 = vmatpush.bf16.msra.mxu0 0
      %2884 = vmatpush.bf16.msra.mxu0 0
      %2885 = vmatpush.bf16.msra.mxu0 0
      %2886 = vmatpush.bf16.msra.mxu0 0
      %2887 = vmatpush.bf16.msra.mxu0 0
      %2888 = vmatpush.bf16.msra.mxu0 0
      %2889 = vmatpush.bf16.msra.mxu0 0
      %2890 = vmatpush.bf16.msra.mxu0 %v2881
      %2891 = vmatmul.bf16.gmra.mxu0 %v2866
      %v2892 = vpop.f32.mrf.mxu0
      %v2893 = vadd.f32 0.0, %v2892
      %v2894 = vpop.f32.mrf.mxu0
      %v2895 = vadd.f32 0.0, %v2894
      %2896 = vmatmul.bf16.gmra.mxu0 %v2869
      %v2897 = vpop.f32.mrf.mxu0
      %v2898 = vadd.f32 0.0, %v2897
      %v2899 = vpop.f32.mrf.mxu0
      %v2900 = vadd.f32 0.0, %v2899
      %2901 = vmatmul.bf16.gmra.mxu0 %v2872
      %v2902 = vpop.f32.mrf.mxu0
      %v2903 = vadd.f32 0.0, %v2902
      %v2904 = vpop.f32.mrf.mxu0
      %v2905 = vadd.f32 0.0, %v2904
      %2906 = vmatmul.bf16.gmra.mxu0 %v2875
      %v2907 = vpop.f32.mrf.mxu0
      %v2908 = vadd.f32 0.0, %v2907
      %v2909 = vpop.f32.mrf.mxu0
      %v2910 = vadd.f32 0.0, %v2909
      %2911 = vmatmul.bf16.gmra.mxu0 %v2878
      %v2912 = vpop.f32.mrf.mxu0
      %v2913 = vadd.f32 0.0, %v2912
      %v2914 = vpop.f32.mrf.mxu0
      %v2915 = vadd.f32 0.0, %v2914
      %2916 = vdwg.mxu0
      %v2917 = vadd.f32 %v2838, %v2893
      %v2918 = vadd.f32 %v2839, %v2895
      %v2919 = vadd.f32 %v2840, %v2898
      %v2920 = vadd.f32 %v2841, %v2900
      %v2921 = vadd.f32 %v2842, %v2903
      %v2922 = vadd.f32 %v2843, %v2905
      %v2923 = vadd.f32 %v2844, %v2908
      %v2924 = vadd.f32 %v2845, %v2910
      %v2925 = vadd.f32 %v2846, %v2913
      %v2926 = vadd.f32 %v2847, %v2915
      %v2927 = vld [vmem:[%s409 + $0x8] sm:$0xc]
      %v2928 = vld [vmem:[%s409 + $0xc] sm:$0xf]
      %v2929 = vld [vmem:[%s409 + $0x10] sm:$0xf]
      %v2930 = vld [vmem:[%s409 + $0x14] sm:$0xf]
      %v2931 = vld [vmem:[%s409 + $0x18] sm:$0xf]
      %v2932 = vld [vmem:[%s409 + $0x1c] sm:$0xf]
      %v2933 = vld [vmem:[%s409 + $0x20] sm:$0xf]
      %v2934 = vld [vmem:[%s409 + $0x24] sm:$0xf]
      %v2935 = vld [vmem:[%s409 + $0x28] sm:$0xf]
      %v2936 = vld [vmem:[%s409 + $0x2c] sm:$0xf]
      %v2937 = vld [vmem:[%s409 + $0x30] sm:$0x3]
      %s2938 = scalar_lea.vmem %s3, 48
      %v2939 = vld [vmem:[%s2938] sm:$0x3]
      %v2951 = vunpack.c.l.b16 %v2927
      %v2952 = vunpack.c.l.b16 %v2928
      %v2953 = vunpack.c.l.b16 %v2929
      %v2954 = vunpack.c.l.b16 %v2930
      %v2955 = vunpack.c.l.b16 %v2931
      %v2956 = vunpack.c.l.b16 %v2932
      %v2957 = vunpack.c.l.b16 %v2933
      %v2958 = vunpack.c.l.b16 %v2934
      %v2959 = vunpack.c.l.b16 %v2935
      %v2960 = vunpack.c.l.b16 %v2936
      %v2961 = vunpack.c.l.b16 %v2937
      %v2962 = vpack.c.b16 %v2952, %v2951
      %v2963 = vpack.c.b16 %v2954, %v2953
      %v2964 = vpack.c.b16 %v2956, %v2955
      %v2965 = vpack.c.b16 %v2958, %v2957
      %v2966 = vpack.c.b16 %v2960, %v2959
      %v2967 = vpack.c.b16 %v2961, %v2961
      %v2968 = vrot.slane %v2962, 2
      %v2969 = vrot.slane %v2963, 2
      %v2970 = vsel %vm945, %v2968, %v2969
      %v2971 = vrot.slane %v2964, 2
      %v2972 = vsel %vm945, %v2969, %v2971
      %v2973 = vrot.slane %v2965, 2
      %v2974 = vsel %vm945, %v2971, %v2973
      %v2975 = vrot.slane %v2966, 2
      %v2976 = vsel %vm945, %v2973, %v2975
      %v2977 = vrot.slane %v2967, 2
      %v2978 = vsel %vm945, %v2975, %v2977
      %v2980 = vsel %vm522, %v2970, 0
      %v2983 = vsel %vm522, %v2972, 0
      %v2986 = vsel %vm522, %v2974, 0
      %v2989 = vsel %vm522, %v2976, 0
      %v2992 = vsel %vm522, %v2978, 0
      %v2995 = vsel %vm538, %v2939, 0
      %2997 = vmatpush.bf16.msra.mxu0 0
      %2998 = vmatpush.bf16.msra.mxu0 0
      %2999 = vmatpush.bf16.msra.mxu0 0
      %3000 = vmatpush.bf16.msra.mxu0 0
      %3001 = vmatpush.bf16.msra.mxu0 0
      %3002 = vmatpush.bf16.msra.mxu0 0
      %3003 = vmatpush.bf16.msra.mxu0 0
      %3004 = vmatpush.bf16.msra.mxu0 %v2995
      %3005 = vmatmul.bf16.gmra.mxu0 %v2980
      %v3006 = vpop.f32.mrf.mxu0
      %v3007 = vadd.f32 0.0, %v3006
      %v3008 = vpop.f32.mrf.mxu0
      %v3009 = vadd.f32 0.0, %v3008
      %3010 = vmatmul.bf16.gmra.mxu0 %v2983
      %v3011 = vpop.f32.mrf.mxu0
      %v3012 = vadd.f32 0.0, %v3011
      %v3013 = vpop.f32.mrf.mxu0
      %v3014 = vadd.f32 0.0, %v3013
      %3015 = vmatmul.bf16.gmra.mxu0 %v2986
      %v3016 = vpop.f32.mrf.mxu0
      %v3017 = vadd.f32 0.0, %v3016
      %v3018 = vpop.f32.mrf.mxu0
      %v3019 = vadd.f32 0.0, %v3018
      %3020 = vmatmul.bf16.gmra.mxu0 %v2989
      %v3021 = vpop.f32.mrf.mxu0
      %v3022 = vadd.f32 0.0, %v3021
      %v3023 = vpop.f32.mrf.mxu0
      %v3024 = vadd.f32 0.0, %v3023
      %3025 = vmatmul.bf16.gmra.mxu0 %v2992
      %v3026 = vpop.f32.mrf.mxu0
      %v3027 = vadd.f32 0.0, %v3026
      %v3028 = vpop.f32.mrf.mxu0
      %v3029 = vadd.f32 0.0, %v3028
      %3030 = vdwg.mxu0
      %v3031 = vadd.f32 %v2917, %v3007
      %v3032 = vadd.f32 %v2918, %v3009
      %v3033 = vadd.f32 %v2919, %v3012
      %v3034 = vadd.f32 %v2920, %v3014
      %v3035 = vadd.f32 %v2921, %v3017
      %v3036 = vadd.f32 %v2922, %v3019
      %v3037 = vadd.f32 %v2923, %v3022
      %v3038 = vadd.f32 %v2924, %v3024
      %v3039 = vadd.f32 %v2925, %v3027
      %v3040 = vadd.f32 %v2926, %v3029
      %v3041 = vld [vmem:[%s409 + $0x30] sm:$0x7]
      %s3042 = scalar_lea.vmem %s3, 50
      %v3043 = vld [vmem:[%s3042] sm:$0x3]
      %v3045 = vunpack.c.l.b16 %v3041
      %v3046 = vpack.c.b16 %v3045, %v3045
      %v3048 = vshrl.u32 %v2962, 16
      %v3050 = vrot.slane %v3048, 2
      %v3051 = vshll.u32 %v2962, 16
      %v3053 = vrot.slane %v3051, 3
      %v3054 = vor.u32 %v3050, %v3053
      %v3056 = vshrl.u32 %v2963, 16
      %v3058 = vrot.slane %v3056, 2
      %v3059 = vshll.u32 %v2963, 16
      %v3061 = vrot.slane %v3059, 3
      %v3062 = vor.u32 %v3058, %v3061
      %v3063 = vsel %vm1139, %v3054, %v3062
      %v3065 = vshrl.u32 %v2964, 16
      %v3067 = vrot.slane %v3065, 2
      %v3068 = vshll.u32 %v2964, 16
      %v3070 = vrot.slane %v3068, 3
      %v3071 = vor.u32 %v3067, %v3070
      %v3072 = vsel %vm1139, %v3062, %v3071
      %v3074 = vshrl.u32 %v2965, 16
      %v3076 = vrot.slane %v3074, 2
      %v3077 = vshll.u32 %v2965, 16
      %v3079 = vrot.slane %v3077, 3
      %v3080 = vor.u32 %v3076, %v3079
      %v3081 = vsel %vm1139, %v3071, %v3080
      %v3083 = vshrl.u32 %v2966, 16
      %v3085 = vrot.slane %v3083, 2
      %v3086 = vshll.u32 %v2966, 16
      %v3088 = vrot.slane %v3086, 3
      %v3089 = vor.u32 %v3085, %v3088
      %v3090 = vsel %vm1139, %v3080, %v3089
      %v3092 = vshrl.u32 %v3046, 16
      %v3094 = vrot.slane %v3092, 2
      %v3095 = vshll.u32 %v3046, 16
      %v3097 = vrot.slane %v3095, 3
      %v3098 = vor.u32 %v3094, %v3097
      %v3099 = vsel %vm1139, %v3089, %v3098
      %v3101 = vsel %vm522, %v3063, 0
      %v3104 = vsel %vm522, %v3072, 0
      %v3107 = vsel %vm522, %v3081, 0
      %v3110 = vsel %vm522, %v3090, 0
      %v3113 = vsel %vm522, %v3099, 0
      %v3116 = vsel %vm538, %v3043, 0
      %3118 = vmatpush.bf16.msra.mxu0 0
      %3119 = vmatpush.bf16.msra.mxu0 0
      %3120 = vmatpush.bf16.msra.mxu0 0
      %3121 = vmatpush.bf16.msra.mxu0 0
      %3122 = vmatpush.bf16.msra.mxu0 0
      %3123 = vmatpush.bf16.msra.mxu0 0
      %3124 = vmatpush.bf16.msra.mxu0 0
      %3125 = vmatpush.bf16.msra.mxu0 %v3116
      %3126 = vmatmul.bf16.gmra.mxu0 %v3101
      %v3127 = vpop.f32.mrf.mxu0
      %v3128 = vadd.f32 0.0, %v3127
      %v3129 = vpop.f32.mrf.mxu0
      %v3130 = vadd.f32 0.0, %v3129
      %3131 = vmatmul.bf16.gmra.mxu0 %v3104
      %v3132 = vpop.f32.mrf.mxu0
      %v3133 = vadd.f32 0.0, %v3132
      %v3134 = vpop.f32.mrf.mxu0
      %v3135 = vadd.f32 0.0, %v3134
      %3136 = vmatmul.bf16.gmra.mxu0 %v3107
      %v3137 = vpop.f32.mrf.mxu0
      %v3138 = vadd.f32 0.0, %v3137
      %v3139 = vpop.f32.mrf.mxu0
      %v3140 = vadd.f32 0.0, %v3139
      %3141 = vmatmul.bf16.gmra.mxu0 %v3110
      %v3142 = vpop.f32.mrf.mxu0
      %v3143 = vadd.f32 0.0, %v3142
      %v3144 = vpop.f32.mrf.mxu0
      %v3145 = vadd.f32 0.0, %v3144
      %3146 = vmatmul.bf16.gmra.mxu0 %v3113
      %v3147 = vpop.f32.mrf.mxu0
      %v3148 = vadd.f32 0.0, %v3147
      %v3149 = vpop.f32.mrf.mxu0
      %v3150 = vadd.f32 0.0, %v3149
      %3151 = vdwg.mxu0
      %v3152 = vadd.f32 %v3031, %v3128
      %v3153 = vadd.f32 %v3032, %v3130
      %v3154 = vadd.f32 %v3033, %v3133
      %v3155 = vadd.f32 %v3034, %v3135
      %v3156 = vadd.f32 %v3035, %v3138
      %v3157 = vadd.f32 %v3036, %v3140
      %v3158 = vadd.f32 %v3037, %v3143
      %v3159 = vadd.f32 %v3038, %v3145
      %v3160 = vadd.f32 %v3039, %v3148
      %v3161 = vadd.f32 %v3040, %v3150
      %v3162 = vld [vmem:[%s409 + $0x8] sm:$0x8]
      %s3163 = scalar_lea.vmem %s3, 52
      %v3164 = vld [vmem:[%s3163] sm:$0x3]
      %v3166 = vunpack.c.l.b16 %v3162
      %v3167 = vpack.c.b16 %v2952, %v3166
      %v3168 = vrot.slane %v3167, 3
      %v3169 = vrot.slane %v2963, 3
      %v3170 = vsel %vm1261, %v3168, %v3169
      %v3171 = vrot.slane %v2964, 3
      %v3172 = vsel %vm1261, %v3169, %v3171
      %v3173 = vrot.slane %v2965, 3
      %v3174 = vsel %vm1261, %v3171, %v3173
      %v3175 = vrot.slane %v2966, 3
      %v3176 = vsel %vm1261, %v3173, %v3175
      %v3177 = vrot.slane %v3046, 3
      %v3178 = vsel %vm1261, %v3175, %v3177
      %v3180 = vsel %vm522, %v3170, 0
      %v3183 = vsel %vm522, %v3172, 0
      %v3186 = vsel %vm522, %v3174, 0
      %v3189 = vsel %vm522, %v3176, 0
      %v3192 = vsel %vm522, %v3178, 0
      %v3195 = vsel %vm538, %v3164, 0
      %3197 = vmatpush.bf16.msra.mxu0 0
      %3198 = vmatpush.bf16.msra.mxu0 0
      %3199 = vmatpush.bf16.msra.mxu0 0
      %3200 = vmatpush.bf16.msra.mxu0 0
      %3201 = vmatpush.bf16.msra.mxu0 0
      %3202 = vmatpush.bf16.msra.mxu0 0
      %3203 = vmatpush.bf16.msra.mxu0 0
      %3204 = vmatpush.bf16.msra.mxu0 %v3195
      %3205 = vmatmul.bf16.gmra.mxu0 %v3180
      %v3206 = vpop.f32.mrf.mxu0
      %v3207 = vadd.f32 0.0, %v3206
      %v3208 = vpop.f32.mrf.mxu0
      %v3209 = vadd.f32 0.0, %v3208
      %3210 = vmatmul.bf16.gmra.mxu0 %v3183
      %v3211 = vpop.f32.mrf.mxu0
      %v3212 = vadd.f32 0.0, %v3211
      %v3213 = vpop.f32.mrf.mxu0
      %v3214 = vadd.f32 0.0, %v3213
      %3215 = vmatmul.bf16.gmra.mxu0 %v3186
      %v3216 = vpop.f32.mrf.mxu0
      %v3217 = vadd.f32 0.0, %v3216
      %v3218 = vpop.f32.mrf.mxu0
      %v3219 = vadd.f32 0.0, %v3218
      %3220 = vmatmul.bf16.gmra.mxu0 %v3189
      %v3221 = vpop.f32.mrf.mxu0
      %v3222 = vadd.f32 0.0, %v3221
      %v3223 = vpop.f32.mrf.mxu0
      %v3224 = vadd.f32 0.0, %v3223
      %3225 = vmatmul.bf16.gmra.mxu0 %v3192
      %v3226 = vpop.f32.mrf.mxu0
      %v3227 = vadd.f32 0.0, %v3226
      %v3228 = vpop.f32.mrf.mxu0
      %v3229 = vadd.f32 0.0, %v3228
      %3230 = vdwg.mxu0
      %v3231 = vadd.f32 %v3152, %v3207
      %v3232 = vadd.f32 %v3153, %v3209
      %v3233 = vadd.f32 %v3154, %v3212
      %v3234 = vadd.f32 %v3155, %v3214
      %v3235 = vadd.f32 %v3156, %v3217
      %v3236 = vadd.f32 %v3157, %v3219
      %v3237 = vadd.f32 %v3158, %v3222
      %v3238 = vadd.f32 %v3159, %v3224
      %v3239 = vadd.f32 %v3160, %v3227
      %v3240 = vadd.f32 %v3161, %v3229
      %vm3241 = vcmask 64512
      %3242 = vst.msk [vmem:[%s419] sm:$0xff] %vm3241, %v3231
      %3243 = vst.msk [vmem:[%s419 + $0x8] sm:$0xff] %vm3241, %v3232
      %3244 = vst.msk [vmem:[%s419 + $0x10] sm:$0xff] %vm3241, %v3233
      %3245 = vst.msk [vmem:[%s419 + $0x18] sm:$0xff] %vm3241, %v3234
      %3246 = vst.msk [vmem:[%s419 + $0x20] sm:$0xff] %vm3241, %v3235
      %3247 = vst.msk [vmem:[%s419 + $0x28] sm:$0xff] %vm3241, %v3236
      %3248 = vst.msk [vmem:[%s419 + $0x30] sm:$0xff] %vm3241, %v3237
      %3249 = vst.msk [vmem:[%s419 + $0x38] sm:$0xff] %vm3241, %v3238
      %3250 = vst.msk [vmem:[%s419 + $0x40] sm:$0xff] %vm3241, %v3239
      %3251 = vst.msk [vmem:[%s419 + $0x48] sm:$0xff] %vm3241, %v3240
      %v3252 = vld [vmem:[%s4] sm:$0xff]
      %v3253 = vld [vmem:[%s4 + $0x8] sm:$0xff]
      %v3254 = vld [vmem:[%s4 + $0x10] sm:$0xff]
      %v3255 = vld [vmem:[%s4 + $0x18] sm:$0xff]
      %v3256 = vld [vmem:[%s4 + $0x20] sm:$0xff]
      %v3257 = vld [vmem:[%s4 + $0x28] sm:$0xff]
      %v3258 = vld [vmem:[%s4 + $0x30] sm:$0xff]
      %v3259 = vld [vmem:[%s4 + $0x38] sm:$0xff]
      %v3260 = vld [vmem:[%s4 + $0x40] sm:$0xff]
      %v3261 = vld [vmem:[%s4 + $0x48] sm:$0xff]
      %3263 = vset.pattern.permute.xlu0 0
      %3264 = vperm.xlu0 %3263, %v3252
      %v3265 = vpop.permute.xlu0 %3264
      %3268 = vset.pattern.permute.xlu0 0
      %3269 = vperm.xlu0 %3268, %v3253
      %v3270 = vpop.permute.xlu0 %3269
      %3273 = vset.pattern.permute.xlu0 0
      %3274 = vperm.xlu0 %3273, %v3254
      %v3275 = vpop.permute.xlu0 %3274
      %3278 = vset.pattern.permute.xlu0 0
      %3279 = vperm.xlu0 %3278, %v3255
      %v3280 = vpop.permute.xlu0 %3279
      %3283 = vset.pattern.permute.xlu0 0
      %3284 = vperm.xlu0 %3283, %v3256
      %v3285 = vpop.permute.xlu0 %3284
      %3288 = vset.pattern.permute.xlu0 0
      %3289 = vperm.xlu0 %3288, %v3257
      %v3290 = vpop.permute.xlu0 %3289
      %3293 = vset.pattern.permute.xlu0 0
      %3294 = vperm.xlu0 %3293, %v3258
      %v3295 = vpop.permute.xlu0 %3294
      %3298 = vset.pattern.permute.xlu0 0
      %3299 = vperm.xlu0 %3298, %v3259
      %v3300 = vpop.permute.xlu0 %3299
      %3303 = vset.pattern.permute.xlu0 0
      %3304 = vperm.xlu0 %3303, %v3260
      %v3305 = vpop.permute.xlu0 %3304
      %3308 = vset.pattern.permute.xlu0 0
      %3309 = vperm.xlu0 %3308, %v3261
      %v3310 = vpop.permute.xlu0 %3309
      %v3312 = vmul.f32 %v3231, %v3265
      %v3313 = vmul.f32 %v3232, %v3270
      %v3314 = vmul.f32 %v3233, %v3275
      %v3315 = vmul.f32 %v3234, %v3280
      %v3316 = vmul.f32 %v3235, %v3285
      %v3317 = vmul.f32 %v3236, %v3290
      %v3318 = vmul.f32 %v3237, %v3295
      %v3319 = vmul.f32 %v3238, %v3300
      %v3320 = vmul.f32 %v3239, %v3305
      %v3321 = vmul.f32 %v3240, %v3310
      %v3322 = vsel %vm3241, %v3312, 0.0
      %v3323 = vsel %vm3241, %v3313, 0.0
      %v3324 = vadd.f32 %v3322, %v3323
      %v3325 = vsel %vm3241, %v3314, 0.0
      %v3326 = vadd.f32 %v3324, %v3325
      %v3327 = vsel %vm3241, %v3315, 0.0
      %v3328 = vadd.f32 %v3326, %v3327
      %v3329 = vsel %vm3241, %v3316, 0.0
      %v3330 = vadd.f32 %v3328, %v3329
      %v3331 = vsel %vm3241, %v3317, 0.0
      %v3332 = vadd.f32 %v3330, %v3331
      %v3333 = vsel %vm3241, %v3318, 0.0
      %v3334 = vadd.f32 %v3332, %v3333
      %v3335 = vsel %vm3241, %v3319, 0.0
      %v3336 = vadd.f32 %v3334, %v3335
      %v3337 = vsel %vm3241, %v3320, 0.0
      %v3338 = vadd.f32 %v3336, %v3337
      %v3339 = vsel %vm3241, %v3321, 0.0
      %v3340 = vadd.f32 %v3338, %v3339
      %v3341 = vrot.slane %v3340, 4
      %v3342 = vadd.f32 %v3340, %v3341
      %v3343 = vrot.slane %v3342, 2
      %v3344 = vadd.f32 %v3342, %v3343
      %v3345 = vrot.slane %v3344, 1
      %v3346 = vadd.f32 %v3344, %v3345
      %vm3347 = vcmask 57344
      %3348 = vst.msk [vmem:[%s426] sm:$0x1] %vm3347, %v3346
      %v3349 = vmul.f32 %v3312, %v3231
      %v3350 = vmul.f32 %v3313, %v3232
      %v3351 = vmul.f32 %v3314, %v3233
      %v3352 = vmul.f32 %v3315, %v3234
      %v3353 = vmul.f32 %v3316, %v3235
      %v3354 = vmul.f32 %v3317, %v3236
      %v3355 = vmul.f32 %v3318, %v3237
      %v3356 = vmul.f32 %v3319, %v3238
      %v3357 = vmul.f32 %v3320, %v3239
      %v3358 = vmul.f32 %v3321, %v3240
      %v3359 = vsel %vm3241, %v3349, 0.0
      %v3360 = vsel %vm3241, %v3350, 0.0
      %v3361 = vadd.f32 %v3359, %v3360
      %v3362 = vsel %vm3241, %v3351, 0.0
      %v3363 = vadd.f32 %v3361, %v3362
      %v3364 = vsel %vm3241, %v3352, 0.0
      %v3365 = vadd.f32 %v3363, %v3364
      %v3366 = vsel %vm3241, %v3353, 0.0
      %v3367 = vadd.f32 %v3365, %v3366
      %v3368 = vsel %vm3241, %v3354, 0.0
      %v3369 = vadd.f32 %v3367, %v3368
      %v3370 = vsel %vm3241, %v3355, 0.0
      %v3371 = vadd.f32 %v3369, %v3370
      %v3372 = vsel %vm3241, %v3356, 0.0
      %v3373 = vadd.f32 %v3371, %v3372
      %v3374 = vsel %vm3241, %v3357, 0.0
      %v3375 = vadd.f32 %v3373, %v3374
      %v3376 = vsel %vm3241, %v3358, 0.0
      %v3377 = vadd.f32 %v3375, %v3376
      %v3378 = vrot.slane %v3377, 4
      %v3379 = vadd.f32 %v3377, %v3378
      %v3380 = vrot.slane %v3379, 2
      %v3381 = vadd.f32 %v3379, %v3380
      %v3382 = vrot.slane %v3381, 1
      %v3383 = vadd.f32 %v3381, %v3382
      %3384 = vst.msk [vmem:[%s433] sm:$0x1] %vm3347, %v3383
      %p3385 = scmp.lt.s32.totalorder %s23, 1
      %s3386 = scalar_select %p3385, %s23, 1
      %p3387 = scmp.lt.s32.totalorder %s24, 7
      %s3388 = scalar_select %p3387, %s24, 7
      %s3389 = smul.addr %s3388, 10
      %s3390 = smul.addr %s3386, 80
      %s3391 = sadd.s32 %s3389, %s3390
      %s3392 = smul.addr %s3391, 8
      %s3393 = scalar_lea.vmem %s5, %s3392
      %p3394 = scmp.lt.s32.totalorder %s23, 1
      %s3395 = scalar_select %p3394, %s23, 1
      %p3396 = scmp.lt.s32.totalorder %s24, 7
      %s3397 = scalar_select %p3396, %s24, 7
      %s3398 = smul.addr %s3395, 8
      %s3399 = sadd.s32 %s3397, %s3398
      %s3400 = scalar_lea.vmem %s6, %s3399
      %p3401 = scmp.lt.s32.totalorder %s23, 1
      %s3402 = scalar_select %p3401, %s23, 1
      %p3403 = scmp.lt.s32.totalorder %s24, 7
      %s3404 = scalar_select %p3403, %s24, 7
      %s3405 = smul.addr %s3402, 8
      %s3406 = sadd.s32 %s3404, %s3405
      %s3407 = scalar_lea.vmem %s7, %s3406
      // Predicated region
      $region41: #{conv3d_bn_lrelu.2} parent=39 // pred_check
        %p3408 = pneg %p181
      $region42: #{conv3d_bn_lrelu.2} parent=39 // pred_check_branch
        %3410 = sbr.rel (%p3408) target = $region44
      $region43: #{conv3d_bn_lrelu.2} parent=39 // pred_region
        _
      $region44: #{conv3d_bn_lrelu.2} parent=39 // pred_fallthru
        _
      // Predicated region
      $region45: #{conv3d_bn_lrelu.2} parent=39 // pred_check
        %p3411 = pneg %p209
      $region46: #{conv3d_bn_lrelu.2} parent=39 // pred_check_branch
        %3413 = sbr.rel (%p3411) target = $region48
      $region47: #{conv3d_bn_lrelu.2} parent=39 // pred_region
        _
      $region48: #{conv3d_bn_lrelu.2} parent=39 // pred_fallthru
        _
      // Predicated region
      $region49: #{conv3d_bn_lrelu.2} parent=39 // pred_check
        %p3414 = pneg %p237
      $region50: #{conv3d_bn_lrelu.2} parent=39 // pred_check_branch
        %3416 = sbr.rel (%p3414) target = $region52
      $region51: #{conv3d_bn_lrelu.2} parent=39 // pred_region
        _
      $region52: #{conv3d_bn_lrelu.2} parent=39 // pred_fallthru
        _
    $region40: #{conv3d_bn_lrelu.2} parent=5 // pred_fallthru
      _
    %p3417 = scmp.le.s32.totalorder 2, %s14
    // Predicated region
    $region53: #{conv3d_bn_lrelu.2} parent=5 // pred_check
      %p3418 = pneg %p3417
    $region54: #{conv3d_bn_lrelu.2} parent=5 // pred_check_branch
      %3420 = sbr.rel (%p3418) target = $region56
    $region55: #{conv3d_bn_lrelu.2} parent=5 // pred_region
      %s3421 = ssub.s32 %s14, 2
      // Predicated region
      $region57: #{conv3d_bn_lrelu.2} parent=55 // pred_check
        %p3422 = pneg %p187
      $region58: #{conv3d_bn_lrelu.2} parent=55 // pred_check_branch
        %3424 = sbr.rel (%p3422) target = $region60
      $region59: #{conv3d_bn_lrelu.2} parent=55 // pred_region
        %p3425 = scmp.lt.s32.totalorder %s25, 1
        %s3426 = scalar_select %p3425, %s25, 1
        %p3427 = scmp.lt.s32.totalorder %s26, 7
        %s3428 = scalar_select %p3427, %s26, 7
        %s3429 = smul.addr %s3428, 10
        %s3430 = smul.addr %s3426, 80
        %s3431 = sadd.s32 %s3429, %s3430
        %s3432 = smul.addr %s3431, 8
        %s3433 = scalar_lea.vmem %s5, %s3432
      $region60: #{conv3d_bn_lrelu.2} parent=55 // pred_fallthru
        _
      // Predicated region
      $region61: #{conv3d_bn_lrelu.2} parent=55 // pred_check
        %p3434 = pneg %p215
      $region62: #{conv3d_bn_lrelu.2} parent=55 // pred_check_branch
        %3436 = sbr.rel (%p3434) target = $region64
      $region63: #{conv3d_bn_lrelu.2} parent=55 // pred_region
        %p3437 = scmp.lt.s32.totalorder %s25, 1
        %s3438 = scalar_select %p3437, %s25, 1
        %p3439 = scmp.lt.s32.totalorder %s26, 7
        %s3440 = scalar_select %p3439, %s26, 7
        %s3441 = smul.addr %s3438, 8
        %s3442 = sadd.s32 %s3440, %s3441
        %s3443 = scalar_lea.vmem %s6, %s3442
      $region64: #{conv3d_bn_lrelu.2} parent=55 // pred_fallthru
        _
      // Predicated region
      $region65: #{conv3d_bn_lrelu.2} parent=55 // pred_check
        %p3444 = pneg %p243
      $region66: #{conv3d_bn_lrelu.2} parent=55 // pred_check_branch
        %3446 = sbr.rel (%p3444) target = $region68
      $region67: #{conv3d_bn_lrelu.2} parent=55 // pred_region
        %p3447 = scmp.lt.s32.totalorder %s25, 1
        %s3448 = scalar_select %p3447, %s25, 1
        %p3449 = scmp.lt.s32.totalorder %s26, 7
        %s3450 = scalar_select %p3449, %s26, 7
        %s3451 = smul.addr %s3448, 8
        %s3452 = sadd.s32 %s3450, %s3451
        %s3453 = scalar_lea.vmem %s7, %s3452
      $region68: #{conv3d_bn_lrelu.2} parent=55 // pred_fallthru
        _
    $region56: #{conv3d_bn_lrelu.2} parent=5 // pred_fallthru
      _
  $region6: #{conv3d_bn_lrelu.2} parent=0 // loop_footer
    %s18 = sadd.s32 1, %s14
  $region7: #{conv3d_bn_lrelu.2} parent=0 // loop_footer_branch
    %13 = sbr.rel target = $region3
  $region8: #{conv3d_bn_lrelu.2} parent=0 // loop_exit
    _

</llo_original>
